<compile_context>
chip_gen: v6e
topology: v6e:2x2x1
jax: 0.10.0
libtpu: 0.0.40
codegen_flags: <defaults>
</compile_context>

<pallas_src>
import numpy as np
import jax
import jax.numpy as jnp
from jax import lax
from jax.experimental import pallas as pl
from jax.experimental.pallas import tpu as pltpu


# ----------------------------------------------------------------------------
# Fused recurrent kernel.  One grid step == one chunk of Tc timesteps.
#   x_ref   : (Tc, B, I) bf16  streamed per chunk
#   wih0    : (I, 3H) bf16     resident        whh0 : (H, 3H) bf16 resident
#   b0      : (1, 3H) f32      [b_ir+b_hr | b_iz+b_hz | b_in]   (outside r*(.))
#   b0hn    : (1, H)  f32      b_hn                             (inside  r*(.))
#   wih1, whh1, b1, b1hn : same layout for layer 1
#   out_ref : (B, H) f32       written once at the final chunk
#   h0_ref, h1_ref : (B, H) f32 VMEM scratch, persist across grid steps
# ----------------------------------------------------------------------------
def gru_fused_kernel(x_ref,
                     wih0_ref, whh0_ref, b0_ref, b0hn_ref,
                     wih1_ref, whh1_ref, b1_ref, b1hn_ref,
                     out_ref, h0_ref, h1_ref):
    B, H = h0_ref.shape
    Tc = x_ref.shape[0]
    c = pl.program_id(0)

    @pl.when(c == 0)
    def _():
        h0_ref[...] = jnp.zeros_like(h0_ref)
        h1_ref[...] = jnp.zeros_like(h1_ref)

    wih0 = wih0_ref[...]
    whh0 = whh0_ref[...]
    wih1 = wih1_ref[...]
    whh1 = whh1_ref[...]
    # Pre-broadcast biases once per chunk; JAX does not CSE broadcast_in_dim,
    # so keep the broadcasts out of the per-timestep loop.
    b0 = jnp.broadcast_to(b0_ref[...], (B, 3 * H))
    b1 = jnp.broadcast_to(b1_ref[...], (B, 3 * H))
    b0hn = jnp.broadcast_to(b0hn_ref[...], (B, H))
    b1hn = jnp.broadcast_to(b1hn_ref[...], (B, H))

    def step(t, carry):
        h0, h1 = carry
        x_t = x_ref[t]                                         # (B, I) bf16

        # ---- layer 0: fused [r|z|n] matmuls (input proj done in-kernel) ----
        gi0 = jnp.dot(x_t, wih0, preferred_element_type=jnp.float32) + b0
        gh0 = jnp.dot(h0.astype(jnp.bfloat16), whh0,
                      preferred_element_type=jnp.float32)
        r0 = jax.nn.sigmoid(gi0[:, 0:H] + gh0[:, 0:H])
        z0 = jax.nn.sigmoid(gi0[:, H:2 * H] + gh0[:, H:2 * H])
        n0 = jnp.tanh(gi0[:, 2 * H:] + r0 * (gh0[:, 2 * H:] + b0hn))
        h0n = (1.0 - z0) * n0 + z0 * h0

        # TODO(synk): inter-layer dropout (p=0.2) is training-only; eval-mode
        # forward (what this kernel implements) treats it as identity.

        # ---- layer 1 ----
        gi1 = jnp.dot(h0n.astype(jnp.bfloat16), wih1,
                      preferred_element_type=jnp.float32) + b1
        gh1 = jnp.dot(h1.astype(jnp.bfloat16), whh1,
                      preferred_element_type=jnp.float32)
        r1 = jax.nn.sigmoid(gi1[:, 0:H] + gh1[:, 0:H])
        z1 = jax.nn.sigmoid(gi1[:, H:2 * H] + gh1[:, H:2 * H])
        n1 = jnp.tanh(gi1[:, 2 * H:] + r1 * (gh1[:, 2 * H:] + b1hn))
        h1n = (1.0 - z1) * n1 + z1 * h1
        return h0n, h1n

    # Short fixed-trip-count loop, fully unrolled for LLO scheduler visibility.
    h0, h1 = lax.fori_loop(0, Tc, step, (h0_ref[...], h1_ref[...]),
                           unroll=True)
    h0_ref[...] = h0
    h1_ref[...] = h1

    @pl.when(c == pl.num_programs(0) - 1)
    def _():
        out_ref[...] = h1.astype(out_ref.dtype)


# ----------------------------------------------------------------------------
# Wrapper
# ----------------------------------------------------------------------------
def _chunk_size(T, cap=16):
    """Largest divisor of T that is <= cap (keeps the unrolled body small)."""
    tc = min(T, cap)
    while T % tc:
        tc -= 1
    return tc


def gru_encoder(x, prep):
    """x: (B, T, I) batch-first f32, like the PyTorch module. Returns (B, H) f32."""
    B, T, I = x.shape
    H = prep["whh0"].shape[0]
    Tc = _chunk_size(T)

    # time-major bf16 so the grid streams contiguous (Tc, B, I) chunks
    x_tm = jnp.transpose(x, (1, 0, 2)).astype(jnp.bfloat16)     # (T, B, I)

    def resident(shape):
        return pl.BlockSpec(shape, lambda c: (0,) * len(shape))

    out = pl.pallas_call(
        gru_fused_kernel,
        out_shape=jax.ShapeDtypeStruct((B, H), jnp.float32),
        grid=(T // Tc,),
        in_specs=[
            pl.BlockSpec((Tc, B, I), lambda c: (c, 0, 0)),       # x streamed
            resident((I, 3 * H)),                                # wih0
            resident((H, 3 * H)),                                # whh0
            resident((1, 3 * H)),                                # b0 (outer)
            resident((1, H)),                                    # b0hn
            resident((H, 3 * H)),                                # wih1
            resident((H, 3 * H)),                                # whh1
            resident((1, 3 * H)),                                # b1 (outer)
            resident((1, H)),                                    # b1hn
        ],
        out_specs=pl.BlockSpec((B, H), lambda c: (0, 0)),
        scratch_shapes=[pltpu.VMEM((B, H), jnp.float32),          # h0 state
                        pltpu.VMEM((B, H), jnp.float32)],         # h1 state
        compiler_params=pltpu.CompilerParams(
            dimension_semantics=("arbitrary",)),                  # time is serial
    )(x_tm, prep["wih0"], prep["whh0"], prep["b0"], prep["b0hn"],
      prep["wih1"], prep["whh1"], prep["b1"], prep["b1hn"])
    return out


# ----------------------------------------------------------------------------
# Parameter handling
# ----------------------------------------------------------------------------
def init_gru_params(key, input_size, hidden_size, num_layers=2):
    """PyTorch-layout GRU params with U(-1/sqrt(H), 1/sqrt(H)) init."""
    k = 1.0 / np.sqrt(hidden_size)
    params = []
    for layer in range(num_layers):
        in_sz = input_size if layer == 0 else hidden_size
        key, k1, k2, k3, k4 = jax.random.split(key, 5)
        params.append(dict(
            w_ih=jax.random.uniform(k1, (3 * hidden_size, in_sz), jnp.float32, -k, k),
            w_hh=jax.random.uniform(k2, (3 * hidden_size, hidden_size), jnp.float32, -k, k),
            b_ih=jax.random.uniform(k3, (3 * hidden_size,), jnp.float32, -k, k),
            b_hh=jax.random.uniform(k4, (3 * hidden_size,), jnp.float32, -k, k),
        ))
    return params


def prepare_params(params):
    """PyTorch layout -> kernel layout: fused (in, 3H) bf16 weights (gate order
    [r|z|n] on the lane axis); r/z biases pre-summed and folded with b_in into
    b_outer; b_hn kept separate (it lives inside the r*(.) term)."""
    def layer(p):
        H = p["w_hh"].shape[1]
        w_ih = jnp.transpose(p["w_ih"], (1, 0)).astype(jnp.bfloat16)   # (in, 3H)
        w_hh = jnp.transpose(p["w_hh"], (1, 0)).astype(jnp.bfloat16)   # (H, 3H)
        b_ih = p["b_ih"].astype(jnp.float32)
        b_hh = p["b_hh"].astype(jnp.float32)
        b_outer = jnp.concatenate(
            [b_ih[:2 * H] + b_hh[:2 * H], b_ih[2 * H:]]).reshape(1, 3 * H)
        b_hn = b_hh[2 * H:].reshape(1, H)
        return w_ih, w_hh, b_outer, b_hn

    wih0, whh0, b0, b0hn = layer(params[0])
    wih1, whh1, b1, b1hn = layer(params[1])
    return dict(wih0=wih0, whh0=whh0, b0=b0, b0hn=b0hn,
                wih1=wih1, whh1=whh1, b1=b1, b1hn=b1hn)


# ----------------------------------------------------------------------------
# Pure-JAX reference mirroring the kernel numerics (PyTorch GRU gate structure,
# bf16 matmul operands, f32 accumulation / gate math).
# ----------------------------------------------------------------------------
def gru_encoder_ref(x, prep):
    B, T, I = x.shape
    H = prep["whh0"].shape[0]
    h0 = jnp.zeros((B, H), jnp.float32)
    h1 = jnp.zeros((B, H), jnp.float32)
    for t in range(T):
        x_t = x[:, t, :].astype(jnp.bfloat16)
        gi0 = jnp.dot(x_t, prep["wih0"],
                      preferred_element_type=jnp.float32) + prep["b0"]
        gh0 = jnp.dot(h0.astype(jnp.bfloat16), prep["whh0"],
                      preferred_element_type=jnp.float32)
        r0 = jax.nn.sigmoid(gi0[:, :H] + gh0[:, :H])
        z0 = jax.nn.sigmoid(gi0[:, H:2 * H] + gh0[:, H:2 * H])
        n0 = jnp.tanh(gi0[:, 2 * H:] + r0 * (gh0[:, 2 * H:] + prep["b0hn"]))
        h0 = (1.0 - z0) * n0 + z0 * h0

        gi1 = jnp.dot(h0.astype(jnp.bfloat16), prep["wih1"],
                      preferred_element_type=jnp.float32) + prep["b1"]
        gh1 = jnp.dot(h1.astype(jnp.bfloat16), prep["whh1"],
                      preferred_element_type=jnp.float32)
        r1 = jax.nn.sigmoid(gi1[:, :H] + gh1[:, :H])
        z1 = jax.nn.sigmoid(gi1[:, H:2 * H] + gh1[:, H:2 * H])
        n1 = jnp.tanh(gi1[:, 2 * H:] + r1 * (gh1[:, 2 * H:] + prep["b1hn"]))
        h1 = (1.0 - z1) * n1 + z1 * h1
    return h1


if __name__ == "__main__":
    B, T, I, H = 2, 8, 16, 32
    key = jax.random.PRNGKey(0)
    kx, kp = jax.random.split(key)
    x = jax.random.normal(kx, (B, T, I), jnp.float32)
    params = init_gru_params(kp, I, H, num_layers=2)
    prep = prepare_params(params)

    out = gru_encoder(x, prep)
    out = jax.block_until_ready(out)

    ref = gru_encoder_ref(x, prep)
    np.testing.assert_allclose(np.asarray(out), np.asarray(ref),
                               rtol=1e-4, atol=2e-4)
    assert out.shape == (B, H)
    print("KERNEL_OK")
</pallas_src>

<mosaic_0001>
module attributes {stable_mosaic.version = 11 : i64} {
  func.func @gru_fused_kernel(%arg0: i32, %arg1: memref<8x2x16xbf16, #tpu.memory_space<vmem>>, %arg2: memref<16x96xbf16, #tpu.memory_space<vmem>>, %arg3: memref<32x96xbf16, #tpu.memory_space<vmem>>, %arg4: memref<1x96xf32, #tpu.memory_space<vmem>>, %arg5: memref<1x32xf32, #tpu.memory_space<vmem>>, %arg6: memref<32x96xbf16, #tpu.memory_space<vmem>>, %arg7: memref<32x96xbf16, #tpu.memory_space<vmem>>, %arg8: memref<1x96xf32, #tpu.memory_space<vmem>>, %arg9: memref<1x32xf32, #tpu.memory_space<vmem>>, %arg10: memref<2x32xf32, #tpu.memory_space<vmem>>, %arg11: memref<2x32xf32, #tpu.memory_space<vmem>>, %arg12: memref<2x32xf32, #tpu.memory_space<vmem>>) attributes {dimension_semantics = [#tpu.dimension_semantics<arbitrary>], iteration_bounds = array<i64: 1>, scalar_prefetch = 0 : i64, scratch_operands = 2 : i64, tpu.core_type = #tpu.core_type<tc>, window_params = [{transform_indices = @transform_0, window_bounds = array<i64: 8, 2, 16>}, {pipeline_mode = #tpu.pipeline_mode<synchronous>, transform_indices = @transform_1, window_bounds = array<i64: 16, 96>}, {pipeline_mode = #tpu.pipeline_mode<synchronous>, transform_indices = @transform_2, window_bounds = array<i64: 32, 96>}, {pipeline_mode = #tpu.pipeline_mode<synchronous>, transform_indices = @transform_3, window_bounds = array<i64: 1, 96>}, {pipeline_mode = #tpu.pipeline_mode<synchronous>, transform_indices = @transform_4, window_bounds = array<i64: 1, 32>}, {pipeline_mode = #tpu.pipeline_mode<synchronous>, transform_indices = @transform_5, window_bounds = array<i64: 32, 96>}, {pipeline_mode = #tpu.pipeline_mode<synchronous>, transform_indices = @transform_6, window_bounds = array<i64: 32, 96>}, {pipeline_mode = #tpu.pipeline_mode<synchronous>, transform_indices = @transform_7, window_bounds = array<i64: 1, 96>}, {pipeline_mode = #tpu.pipeline_mode<synchronous>, transform_indices = @transform_8, window_bounds = array<i64: 1, 32>}, {pipeline_mode = #tpu.pipeline_mode<synchronous>, transform_indices = @transform_9, window_bounds = array<i64: 2, 32>}]} {
    %c0_i32 = arith.constant 0 : i32
    %0 = arith.cmpi eq, %arg0, %c0_i32 : i32
    %1 = arith.extui %0 : i1 to i32
    %c0_i32_0 = arith.constant 0 : i32
    %2 = arith.cmpi ne, %1, %c0_i32_0 : i32
    scf.if %2 {
      %cst_122 = arith.constant 0.000000e+00 : f32
      %554 = vector.broadcast %cst_122 : f32 to vector<2x32xf32>
      %c0_123 = arith.constant 0 : index
      %c0_124 = arith.constant 0 : index
      %555 = vector.load %arg11[%c0_123, %c0_124] : memref<2x32xf32, #tpu.memory_space<vmem>>, vector<2x32xf32>
      tpu.vector_store %arg11[%c0_123, %c0_124], %554 {strides = array<i32>} : memref<2x32xf32, #tpu.memory_space<vmem>>, vector<2x32xf32>,
      %cst_125 = arith.constant 0.000000e+00 : f32
      %556 = vector.broadcast %cst_125 : f32 to vector<2x32xf32>
      %c0_126 = arith.constant 0 : index
      %c0_127 = arith.constant 0 : index
      %557 = vector.load %arg12[%c0_126, %c0_127] : memref<2x32xf32, #tpu.memory_space<vmem>>, vector<2x32xf32>
      tpu.vector_store %arg12[%c0_126, %c0_127], %556 {strides = array<i32>} : memref<2x32xf32, #tpu.memory_space<vmem>>, vector<2x32xf32>,
    } else {
    }
    %c0 = arith.constant 0 : index
    %c0_1 = arith.constant 0 : index
    %3 = vector.load %arg2[%c0, %c0_1] : memref<16x96xbf16, #tpu.memory_space<vmem>>, vector<16x96xbf16>
    %c0_2 = arith.constant 0 : index
    %c0_3 = arith.constant 0 : index
    %4 = vector.load %arg3[%c0_2, %c0_3] : memref<32x96xbf16, #tpu.memory_space<vmem>>, vector<32x96xbf16>
    %c0_4 = arith.constant 0 : index
    %c0_5 = arith.constant 0 : index
    %5 = vector.load %arg6[%c0_4, %c0_5] : memref<32x96xbf16, #tpu.memory_space<vmem>>, vector<32x96xbf16>
    %c0_6 = arith.constant 0 : index
    %c0_7 = arith.constant 0 : index
    %6 = vector.load %arg7[%c0_6, %c0_7] : memref<32x96xbf16, #tpu.memory_space<vmem>>, vector<32x96xbf16>
    %c0_8 = arith.constant 0 : index
    %c0_9 = arith.constant 0 : index
    %7 = vector.load %arg4[%c0_8, %c0_9] : memref<1x96xf32, #tpu.memory_space<vmem>>, vector<1x96xf32>
    %8 = vector.shape_cast %7 : vector<1x96xf32> to vector<1x96xf32>
    %9 = vector.broadcast %8 : vector<1x96xf32> to vector<2x96xf32>
    %c0_10 = arith.constant 0 : index
    %c0_11 = arith.constant 0 : index
    %10 = vector.load %arg8[%c0_10, %c0_11] : memref<1x96xf32, #tpu.memory_space<vmem>>, vector<1x96xf32>
    %11 = vector.shape_cast %10 : vector<1x96xf32> to vector<1x96xf32>
    %12 = vector.broadcast %11 : vector<1x96xf32> to vector<2x96xf32>
    %c0_12 = arith.constant 0 : index
    %c0_13 = arith.constant 0 : index
    %13 = vector.load %arg5[%c0_12, %c0_13] : memref<1x32xf32, #tpu.memory_space<vmem>>, vector<1x32xf32>
    %14 = vector.shape_cast %13 : vector<1x32xf32> to vector<1x32xf32>
    %15 = vector.broadcast %14 : vector<1x32xf32> to vector<2x32xf32>
    %c0_14 = arith.constant 0 : index
    %c0_15 = arith.constant 0 : index
    %16 = vector.load %arg9[%c0_14, %c0_15] : memref<1x32xf32, #tpu.memory_space<vmem>>, vector<1x32xf32>
    %17 = vector.shape_cast %16 : vector<1x32xf32> to vector<1x32xf32>
    %18 = vector.broadcast %17 : vector<1x32xf32> to vector<2x32xf32>
    %c0_16 = arith.constant 0 : index
    %c0_17 = arith.constant 0 : index
    %19 = vector.load %arg11[%c0_16, %c0_17] : memref<2x32xf32, #tpu.memory_space<vmem>>, vector<2x32xf32>
    %c0_18 = arith.constant 0 : index
    %c0_19 = arith.constant 0 : index
    %20 = vector.load %arg12[%c0_18, %c0_19] : memref<2x32xf32, #tpu.memory_space<vmem>>, vector<2x32xf32>
    %c0_i32_20 = arith.constant 0 : i32
    %21 = arith.index_cast %c0_i32_20 : i32 to index
    %c0_21 = arith.constant 0 : index
    %c0_22 = arith.constant 0 : index
    %22 = vector.load %arg1[%21, %c0_21, %c0_22] : memref<8x2x16xbf16, #tpu.memory_space<vmem>>, vector<1x2x16xbf16>
    %23 = vector.shape_cast %22 : vector<1x2x16xbf16> to vector<2x16xbf16>
    %cst = arith.constant dense<0.000000e+00> : vector<2x96xf32>
    %24 = tpu.matmul %23, %3, %cst {dimension_numbers = #tpu.dot_dimension_numbers<[1], [0], [0], [1], [0, 0, 1, 1], [], []>} : vector<2x16xbf16>, vector<16x96xbf16>, vector<2x96xf32> -> vector<2x96xf32>
    %25 = arith.addf %24, %9 : vector<2x96xf32>
    %26 = arith.truncf %19 : vector<2x32xf32> to vector<2x32xbf16>
    %cst_23 = arith.constant dense<0.000000e+00> : vector<2x96xf32>
    %27 = tpu.matmul %26, %4, %cst_23 {dimension_numbers = #tpu.dot_dimension_numbers<[1], [0], [0], [1], [0, 0, 1, 1], [], []>} : vector<2x32xbf16>, vector<32x96xbf16>, vector<2x96xf32> -> vector<2x96xf32>
    %28 = vector.extract_strided_slice %25 {offsets = [0, 0], sizes = [2, 32], strides = [1, 1]} : vector<2x96xf32> to vector<2x32xf32>
    %29 = vector.extract_strided_slice %27 {offsets = [0, 0], sizes = [2, 32], strides = [1, 1]} : vector<2x96xf32> to vector<2x32xf32>
    %30 = arith.addf %28, %29 : vector<2x32xf32>
    %31 = arith.negf %30 : vector<2x32xf32>
    %32 = math.exp %31 : vector<2x32xf32>
    %cst_24 = arith.constant 1.000000e+00 : f32
    %33 = vector.broadcast %cst_24 : f32 to vector<2x32xf32>
    %34 = arith.addf %33, %32 : vector<2x32xf32>
    %35 = arith.divf %33, %34 : vector<2x32xf32>
    %36 = vector.extract_strided_slice %25 {offsets = [0, 32], sizes = [2, 32], strides = [1, 1]} : vector<2x96xf32> to vector<2x32xf32>
    %37 = vector.extract_strided_slice %27 {offsets = [0, 32], sizes = [2, 32], strides = [1, 1]} : vector<2x96xf32> to vector<2x32xf32>
    %38 = arith.addf %36, %37 : vector<2x32xf32>
    %39 = arith.negf %38 : vector<2x32xf32>
    %40 = math.exp %39 : vector<2x32xf32>
    %cst_25 = arith.constant 1.000000e+00 : f32
    %41 = vector.broadcast %cst_25 : f32 to vector<2x32xf32>
    %42 = arith.addf %41, %40 : vector<2x32xf32>
    %43 = arith.divf %41, %42 : vector<2x32xf32>
    %44 = vector.extract_strided_slice %25 {offsets = [0, 64], sizes = [2, 32], strides = [1, 1]} : vector<2x96xf32> to vector<2x32xf32>
    %45 = vector.extract_strided_slice %27 {offsets = [0, 64], sizes = [2, 32], strides = [1, 1]} : vector<2x96xf32> to vector<2x32xf32>
    %46 = arith.addf %45, %15 : vector<2x32xf32>
    %47 = arith.mulf %35, %46 : vector<2x32xf32>
    %48 = arith.addf %44, %47 : vector<2x32xf32>
    %49 = math.tanh %48 : vector<2x32xf32>
    %cst_26 = arith.constant 1.000000e+00 : f32
    %50 = vector.broadcast %cst_26 : f32 to vector<2x32xf32>
    %51 = arith.subf %50, %43 : vector<2x32xf32>
    %52 = arith.mulf %51, %49 : vector<2x32xf32>
    %53 = arith.mulf %43, %19 : vector<2x32xf32>
    %54 = arith.addf %52, %53 : vector<2x32xf32>
    %55 = arith.truncf %54 : vector<2x32xf32> to vector<2x32xbf16>
    %cst_27 = arith.constant dense<0.000000e+00> : vector<2x96xf32>
    %56 = tpu.matmul %55, %5, %cst_27 {dimension_numbers = #tpu.dot_dimension_numbers<[1], [0], [0], [1], [0, 0, 1, 1], [], []>} : vector<2x32xbf16>, vector<32x96xbf16>, vector<2x96xf32> -> vector<2x96xf32>
    %57 = arith.addf %56, %12 : vector<2x96xf32>
    %58 = arith.truncf %20 : vector<2x32xf32> to vector<2x32xbf16>
    %cst_28 = arith.constant dense<0.000000e+00> : vector<2x96xf32>
    %59 = tpu.matmul %58, %6, %cst_28 {dimension_numbers = #tpu.dot_dimension_numbers<[1], [0], [0], [1], [0, 0, 1, 1], [], []>} : vector<2x32xbf16>, vector<32x96xbf16>, vector<2x96xf32> -> vector<2x96xf32>
    %60 = vector.extract_strided_slice %57 {offsets = [0, 0], sizes = [2, 32], strides = [1, 1]} : vector<2x96xf32> to vector<2x32xf32>
    %61 = vector.extract_strided_slice %59 {offsets = [0, 0], sizes = [2, 32], strides = [1, 1]} : vector<2x96xf32> to vector<2x32xf32>
    %62 = arith.addf %60, %61 : vector<2x32xf32>
    %63 = arith.negf %62 : vector<2x32xf32>
    %64 = math.exp %63 : vector<2x32xf32>
    %cst_29 = arith.constant 1.000000e+00 : f32
    %65 = vector.broadcast %cst_29 : f32 to vector<2x32xf32>
    %66 = arith.addf %65, %64 : vector<2x32xf32>
    %67 = arith.divf %65, %66 : vector<2x32xf32>
    %68 = vector.extract_strided_slice %57 {offsets = [0, 32], sizes = [2, 32], strides = [1, 1]} : vector<2x96xf32> to vector<2x32xf32>
    %69 = vector.extract_strided_slice %59 {offsets = [0, 32], sizes = [2, 32], strides = [1, 1]} : vector<2x96xf32> to vector<2x32xf32>
    %70 = arith.addf %68, %69 : vector<2x32xf32>
    %71 = arith.negf %70 : vector<2x32xf32>
    %72 = math.exp %71 : vector<2x32xf32>
    %cst_30 = arith.constant 1.000000e+00 : f32
    %73 = vector.broadcast %cst_30 : f32 to vector<2x32xf32>
    %74 = arith.addf %73, %72 : vector<2x32xf32>
    %75 = arith.divf %73, %74 : vector<2x32xf32>
    %76 = vector.extract_strided_slice %57 {offsets = [0, 64], sizes = [2, 32], strides = [1, 1]} : vector<2x96xf32> to vector<2x32xf32>
    %77 = vector.extract_strided_slice %59 {offsets = [0, 64], sizes = [2, 32], strides = [1, 1]} : vector<2x96xf32> to vector<2x32xf32>
    %78 = arith.addf %77, %18 : vector<2x32xf32>
    %79 = arith.mulf %67, %78 : vector<2x32xf32>
    %80 = arith.addf %76, %79 : vector<2x32xf32>
    %81 = math.tanh %80 : vector<2x32xf32>
    %cst_31 = arith.constant 1.000000e+00 : f32
    %82 = vector.broadcast %cst_31 : f32 to vector<2x32xf32>
    %83 = arith.subf %82, %75 : vector<2x32xf32>
    %84 = arith.mulf %83, %81 : vector<2x32xf32>
    %85 = arith.mulf %75, %20 : vector<2x32xf32>
    %86 = arith.addf %84, %85 : vector<2x32xf32>
    %c1_i32 = arith.constant 1 : i32
    %87 = arith.index_cast %c1_i32 : i32 to index
    %c0_32 = arith.constant 0 : index
    %c0_33 = arith.constant 0 : index
    %88 = vector.load %arg1[%87, %c0_32, %c0_33] : memref<8x2x16xbf16, #tpu.memory_space<vmem>>, vector<1x2x16xbf16>
    %89 = vector.shape_cast %88 : vector<1x2x16xbf16> to vector<2x16xbf16>
    %cst_34 = arith.constant dense<0.000000e+00> : vector<2x96xf32>
    %90 = tpu.matmul %89, %3, %cst_34 {dimension_numbers = #tpu.dot_dimension_numbers<[1], [0], [0], [1], [0, 0, 1, 1], [], []>} : vector<2x16xbf16>, vector<16x96xbf16>, vector<2x96xf32> -> vector<2x96xf32>
    %91 = arith.addf %90, %9 : vector<2x96xf32>
    %92 = arith.truncf %54 : vector<2x32xf32> to vector<2x32xbf16>
    %cst_35 = arith.constant dense<0.000000e+00> : vector<2x96xf32>
    %93 = tpu.matmul %92, %4, %cst_35 {dimension_numbers = #tpu.dot_dimension_numbers<[1], [0], [0], [1], [0, 0, 1, 1], [], []>} : vector<2x32xbf16>, vector<32x96xbf16>, vector<2x96xf32> -> vector<2x96xf32>
    %94 = vector.extract_strided_slice %91 {offsets = [0, 0], sizes = [2, 32], strides = [1, 1]} : vector<2x96xf32> to vector<2x32xf32>
    %95 = vector.extract_strided_slice %93 {offsets = [0, 0], sizes = [2, 32], strides = [1, 1]} : vector<2x96xf32> to vector<2x32xf32>
    %96 = arith.addf %94, %95 : vector<2x32xf32>
    %97 = arith.negf %96 : vector<2x32xf32>
    %98 = math.exp %97 : vector<2x32xf32>
    %cst_36 = arith.constant 1.000000e+00 : f32
    %99 = vector.broadcast %cst_36 : f32 to vector<2x32xf32>
    %100 = arith.addf %99, %98 : vector<2x32xf32>
    %101 = arith.divf %99, %100 : vector<2x32xf32>
    %102 = vector.extract_strided_slice %91 {offsets = [0, 32], sizes = [2, 32], strides = [1, 1]} : vector<2x96xf32> to vector<2x32xf32>
    %103 = vector.extract_strided_slice %93 {offsets = [0, 32], sizes = [2, 32], strides = [1, 1]} : vector<2x96xf32> to vector<2x32xf32>
    %104 = arith.addf %102, %103 : vector<2x32xf32>
    %105 = arith.negf %104 : vector<2x32xf32>
    %106 = math.exp %105 : vector<2x32xf32>
    %cst_37 = arith.constant 1.000000e+00 : f32
    %107 = vector.broadcast %cst_37 : f32 to vector<2x32xf32>
    %108 = arith.addf %107, %106 : vector<2x32xf32>
    %109 = arith.divf %107, %108 : vector<2x32xf32>
    %110 = vector.extract_strided_slice %91 {offsets = [0, 64], sizes = [2, 32], strides = [1, 1]} : vector<2x96xf32> to vector<2x32xf32>
    %111 = vector.extract_strided_slice %93 {offsets = [0, 64], sizes = [2, 32], strides = [1, 1]} : vector<2x96xf32> to vector<2x32xf32>
    %112 = arith.addf %111, %15 : vector<2x32xf32>
    %113 = arith.mulf %101, %112 : vector<2x32xf32>
    %114 = arith.addf %110, %113 : vector<2x32xf32>
    %115 = math.tanh %114 : vector<2x32xf32>
    %cst_38 = arith.constant 1.000000e+00 : f32
    %116 = vector.broadcast %cst_38 : f32 to vector<2x32xf32>
    %117 = arith.subf %116, %109 : vector<2x32xf32>
    %118 = arith.mulf %117, %115 : vector<2x32xf32>
    %119 = arith.mulf %109, %54 : vector<2x32xf32>
    %120 = arith.addf %118, %119 : vector<2x32xf32>
    %121 = arith.truncf %120 : vector<2x32xf32> to vector<2x32xbf16>
    %cst_39 = arith.constant dense<0.000000e+00> : vector<2x96xf32>
    %122 = tpu.matmul %121, %5, %cst_39 {dimension_numbers = #tpu.dot_dimension_numbers<[1], [0], [0], [1], [0, 0, 1, 1], [], []>} : vector<2x32xbf16>, vector<32x96xbf16>, vector<2x96xf32> -> vector<2x96xf32>
    %123 = arith.addf %122, %12 : vector<2x96xf32>
    %124 = arith.truncf %86 : vector<2x32xf32> to vector<2x32xbf16>
    %cst_40 = arith.constant dense<0.000000e+00> : vector<2x96xf32>
    %125 = tpu.matmul %124, %6, %cst_40 {dimension_numbers = #tpu.dot_dimension_numbers<[1], [0], [0], [1], [0, 0, 1, 1], [], []>} : vector<2x32xbf16>, vector<32x96xbf16>, vector<2x96xf32> -> vector<2x96xf32>
    %126 = vector.extract_strided_slice %123 {offsets = [0, 0], sizes = [2, 32], strides = [1, 1]} : vector<2x96xf32> to vector<2x32xf32>
    %127 = vector.extract_strided_slice %125 {offsets = [0, 0], sizes = [2, 32], strides = [1, 1]} : vector<2x96xf32> to vector<2x32xf32>
    %128 = arith.addf %126, %127 : vector<2x32xf32>
    %129 = arith.negf %128 : vector<2x32xf32>
    %130 = math.exp %129 : vector<2x32xf32>
    %cst_41 = arith.constant 1.000000e+00 : f32
    %131 = vector.broadcast %cst_41 : f32 to vector<2x32xf32>
    %132 = arith.addf %131, %130 : vector<2x32xf32>
    %133 = arith.divf %131, %132 : vector<2x32xf32>
    %134 = vector.extract_strided_slice %123 {offsets = [0, 32], sizes = [2, 32], strides = [1, 1]} : vector<2x96xf32> to vector<2x32xf32>
    %135 = vector.extract_strided_slice %125 {offsets = [0, 32], sizes = [2, 32], strides = [1, 1]} : vector<2x96xf32> to vector<2x32xf32>
    %136 = arith.addf %134, %135 : vector<2x32xf32>
    %137 = arith.negf %136 : vector<2x32xf32>
    %138 = math.exp %137 : vector<2x32xf32>
    %cst_42 = arith.constant 1.000000e+00 : f32
    %139 = vector.broadcast %cst_42 : f32 to vector<2x32xf32>
    %140 = arith.addf %139, %138 : vector<2x32xf32>
    %141 = arith.divf %139, %140 : vector<2x32xf32>
    %142 = vector.extract_strided_slice %123 {offsets = [0, 64], sizes = [2, 32], strides = [1, 1]} : vector<2x96xf32> to vector<2x32xf32>
    %143 = vector.extract_strided_slice %125 {offsets = [0, 64], sizes = [2, 32], strides = [1, 1]} : vector<2x96xf32> to vector<2x32xf32>
    %144 = arith.addf %143, %18 : vector<2x32xf32>
    %145 = arith.mulf %133, %144 : vector<2x32xf32>
    %146 = arith.addf %142, %145 : vector<2x32xf32>
    %147 = math.tanh %146 : vector<2x32xf32>
    %cst_43 = arith.constant 1.000000e+00 : f32
    %148 = vector.broadcast %cst_43 : f32 to vector<2x32xf32>
    %149 = arith.subf %148, %141 : vector<2x32xf32>
    %150 = arith.mulf %149, %147 : vector<2x32xf32>
    %151 = arith.mulf %141, %86 : vector<2x32xf32>
    %152 = arith.addf %150, %151 : vector<2x32xf32>
    %c2_i32 = arith.constant 2 : i32
    %153 = arith.index_cast %c2_i32 : i32 to index
    %c0_44 = arith.constant 0 : index
    %c0_45 = arith.constant 0 : index
    %154 = vector.load %arg1[%153, %c0_44, %c0_45] : memref<8x2x16xbf16, #tpu.memory_space<vmem>>, vector<1x2x16xbf16>
    %155 = vector.shape_cast %154 : vector<1x2x16xbf16> to vector<2x16xbf16>
    %cst_46 = arith.constant dense<0.000000e+00> : vector<2x96xf32>
    %156 = tpu.matmul %155, %3, %cst_46 {dimension_numbers = #tpu.dot_dimension_numbers<[1], [0], [0], [1], [0, 0, 1, 1], [], []>} : vector<2x16xbf16>, vector<16x96xbf16>, vector<2x96xf32> -> vector<2x96xf32>
    %157 = arith.addf %156, %9 : vector<2x96xf32>
    %158 = arith.truncf %120 : vector<2x32xf32> to vector<2x32xbf16>
    %cst_47 = arith.constant dense<0.000000e+00> : vector<2x96xf32>
    %159 = tpu.matmul %158, %4, %cst_47 {dimension_numbers = #tpu.dot_dimension_numbers<[1], [0], [0], [1], [0, 0, 1, 1], [], []>} : vector<2x32xbf16>, vector<32x96xbf16>, vector<2x96xf32> -> vector<2x96xf32>
    %160 = vector.extract_strided_slice %157 {offsets = [0, 0], sizes = [2, 32], strides = [1, 1]} : vector<2x96xf32> to vector<2x32xf32>
    %161 = vector.extract_strided_slice %159 {offsets = [0, 0], sizes = [2, 32], strides = [1, 1]} : vector<2x96xf32> to vector<2x32xf32>
    %162 = arith.addf %160, %161 : vector<2x32xf32>
    %163 = arith.negf %162 : vector<2x32xf32>
    %164 = math.exp %163 : vector<2x32xf32>
    %cst_48 = arith.constant 1.000000e+00 : f32
    %165 = vector.broadcast %cst_48 : f32 to vector<2x32xf32>
    %166 = arith.addf %165, %164 : vector<2x32xf32>
    %167 = arith.divf %165, %166 : vector<2x32xf32>
    %168 = vector.extract_strided_slice %157 {offsets = [0, 32], sizes = [2, 32], strides = [1, 1]} : vector<2x96xf32> to vector<2x32xf32>
    %169 = vector.extract_strided_slice %159 {offsets = [0, 32], sizes = [2, 32], strides = [1, 1]} : vector<2x96xf32> to vector<2x32xf32>
    %170 = arith.addf %168, %169 : vector<2x32xf32>
    %171 = arith.negf %170 : vector<2x32xf32>
    %172 = math.exp %171 : vector<2x32xf32>
    %cst_49 = arith.constant 1.000000e+00 : f32
    %173 = vector.broadcast %cst_49 : f32 to vector<2x32xf32>
    %174 = arith.addf %173, %172 : vector<2x32xf32>
    %175 = arith.divf %173, %174 : vector<2x32xf32>
    %176 = vector.extract_strided_slice %157 {offsets = [0, 64], sizes = [2, 32], strides = [1, 1]} : vector<2x96xf32> to vector<2x32xf32>
    %177 = vector.extract_strided_slice %159 {offsets = [0, 64], sizes = [2, 32], strides = [1, 1]} : vector<2x96xf32> to vector<2x32xf32>
    %178 = arith.addf %177, %15 : vector<2x32xf32>
    %179 = arith.mulf %167, %178 : vector<2x32xf32>
    %180 = arith.addf %176, %179 : vector<2x32xf32>
    %181 = math.tanh %180 : vector<2x32xf32>
    %cst_50 = arith.constant 1.000000e+00 : f32
    %182 = vector.broadcast %cst_50 : f32 to vector<2x32xf32>
    %183 = arith.subf %182, %175 : vector<2x32xf32>
    %184 = arith.mulf %183, %181 : vector<2x32xf32>
    %185 = arith.mulf %175, %120 : vector<2x32xf32>
    %186 = arith.addf %184, %185 : vector<2x32xf32>
    %187 = arith.truncf %186 : vector<2x32xf32> to vector<2x32xbf16>
    %cst_51 = arith.constant dense<0.000000e+00> : vector<2x96xf32>
    %188 = tpu.matmul %187, %5, %cst_51 {dimension_numbers = #tpu.dot_dimension_numbers<[1], [0], [0], [1], [0, 0, 1, 1], [], []>} : vector<2x32xbf16>, vector<32x96xbf16>, vector<2x96xf32> -> vector<2x96xf32>
    %189 = arith.addf %188, %12 : vector<2x96xf32>
    %190 = arith.truncf %152 : vector<2x32xf32> to vector<2x32xbf16>
    %cst_52 = arith.constant dense<0.000000e+00> : vector<2x96xf32>
    %191 = tpu.matmul %190, %6, %cst_52 {dimension_numbers = #tpu.dot_dimension_numbers<[1], [0], [0], [1], [0, 0, 1, 1], [], []>} : vector<2x32xbf16>, vector<32x96xbf16>, vector<2x96xf32> -> vector<2x96xf32>
    %192 = vector.extract_strided_slice %189 {offsets = [0, 0], sizes = [2, 32], strides = [1, 1]} : vector<2x96xf32> to vector<2x32xf32>
    %193 = vector.extract_strided_slice %191 {offsets = [0, 0], sizes = [2, 32], strides = [1, 1]} : vector<2x96xf32> to vector<2x32xf32>
    %194 = arith.addf %192, %193 : vector<2x32xf32>
    %195 = arith.negf %194 : vector<2x32xf32>
    %196 = math.exp %195 : vector<2x32xf32>
    %cst_53 = arith.constant 1.000000e+00 : f32
    %197 = vector.broadcast %cst_53 : f32 to vector<2x32xf32>
    %198 = arith.addf %197, %196 : vector<2x32xf32>
    %199 = arith.divf %197, %198 : vector<2x32xf32>
    %200 = vector.extract_strided_slice %189 {offsets = [0, 32], sizes = [2, 32], strides = [1, 1]} : vector<2x96xf32> to vector<2x32xf32>
    %201 = vector.extract_strided_slice %191 {offsets = [0, 32], sizes = [2, 32], strides = [1, 1]} : vector<2x96xf32> to vector<2x32xf32>
    %202 = arith.addf %200, %201 : vector<2x32xf32>
    %203 = arith.negf %202 : vector<2x32xf32>
    %204 = math.exp %203 : vector<2x32xf32>
    %cst_54 = arith.constant 1.000000e+00 : f32
    %205 = vector.broadcast %cst_54 : f32 to vector<2x32xf32>
    %206 = arith.addf %205, %204 : vector<2x32xf32>
    %207 = arith.divf %205, %206 : vector<2x32xf32>
    %208 = vector.extract_strided_slice %189 {offsets = [0, 64], sizes = [2, 32], strides = [1, 1]} : vector<2x96xf32> to vector<2x32xf32>
    %209 = vector.extract_strided_slice %191 {offsets = [0, 64], sizes = [2, 32], strides = [1, 1]} : vector<2x96xf32> to vector<2x32xf32>
    %210 = arith.addf %209, %18 : vector<2x32xf32>
    %211 = arith.mulf %199, %210 : vector<2x32xf32>
    %212 = arith.addf %208, %211 : vector<2x32xf32>
    %213 = math.tanh %212 : vector<2x32xf32>
    %cst_55 = arith.constant 1.000000e+00 : f32
    %214 = vector.broadcast %cst_55 : f32 to vector<2x32xf32>
    %215 = arith.subf %214, %207 : vector<2x32xf32>
    %216 = arith.mulf %215, %213 : vector<2x32xf32>
    %217 = arith.mulf %207, %152 : vector<2x32xf32>
    %218 = arith.addf %216, %217 : vector<2x32xf32>
    %c3_i32 = arith.constant 3 : i32
    %219 = arith.index_cast %c3_i32 : i32 to index
    %c0_56 = arith.constant 0 : index
    %c0_57 = arith.constant 0 : index
    %220 = vector.load %arg1[%219, %c0_56, %c0_57] : memref<8x2x16xbf16, #tpu.memory_space<vmem>>, vector<1x2x16xbf16>
    %221 = vector.shape_cast %220 : vector<1x2x16xbf16> to vector<2x16xbf16>
    %cst_58 = arith.constant dense<0.000000e+00> : vector<2x96xf32>
    %222 = tpu.matmul %221, %3, %cst_58 {dimension_numbers = #tpu.dot_dimension_numbers<[1], [0], [0], [1], [0, 0, 1, 1], [], []>} : vector<2x16xbf16>, vector<16x96xbf16>, vector<2x96xf32> -> vector<2x96xf32>
    %223 = arith.addf %222, %9 : vector<2x96xf32>
    %224 = arith.truncf %186 : vector<2x32xf32> to vector<2x32xbf16>
    %cst_59 = arith.constant dense<0.000000e+00> : vector<2x96xf32>
    %225 = tpu.matmul %224, %4, %cst_59 {dimension_numbers = #tpu.dot_dimension_numbers<[1], [0], [0], [1], [0, 0, 1, 1], [], []>} : vector<2x32xbf16>, vector<32x96xbf16>, vector<2x96xf32> -> vector<2x96xf32>
    %226 = vector.extract_strided_slice %223 {offsets = [0, 0], sizes = [2, 32], strides = [1, 1]} : vector<2x96xf32> to vector<2x32xf32>
    %227 = vector.extract_strided_slice %225 {offsets = [0, 0], sizes = [2, 32], strides = [1, 1]} : vector<2x96xf32> to vector<2x32xf32>
    %228 = arith.addf %226, %227 : vector<2x32xf32>
    %229 = arith.negf %228 : vector<2x32xf32>
    %230 = math.exp %229 : vector<2x32xf32>
    %cst_60 = arith.constant 1.000000e+00 : f32
    %231 = vector.broadcast %cst_60 : f32 to vector<2x32xf32>
    %232 = arith.addf %231, %230 : vector<2x32xf32>
    %233 = arith.divf %231, %232 : vector<2x32xf32>
    %234 = vector.extract_strided_slice %223 {offsets = [0, 32], sizes = [2, 32], strides = [1, 1]} : vector<2x96xf32> to vector<2x32xf32>
    %235 = vector.extract_strided_slice %225 {offsets = [0, 32], sizes = [2, 32], strides = [1, 1]} : vector<2x96xf32> to vector<2x32xf32>
    %236 = arith.addf %234, %235 : vector<2x32xf32>
    %237 = arith.negf %236 : vector<2x32xf32>
    %238 = math.exp %237 : vector<2x32xf32>
    %cst_61 = arith.constant 1.000000e+00 : f32
    %239 = vector.broadcast %cst_61 : f32 to vector<2x32xf32>
    %240 = arith.addf %239, %238 : vector<2x32xf32>
    %241 = arith.divf %239, %240 : vector<2x32xf32>
    %242 = vector.extract_strided_slice %223 {offsets = [0, 64], sizes = [2, 32], strides = [1, 1]} : vector<2x96xf32> to vector<2x32xf32>
    %243 = vector.extract_strided_slice %225 {offsets = [0, 64], sizes = [2, 32], strides = [1, 1]} : vector<2x96xf32> to vector<2x32xf32>
    %244 = arith.addf %243, %15 : vector<2x32xf32>
    %245 = arith.mulf %233, %244 : vector<2x32xf32>
    %246 = arith.addf %242, %245 : vector<2x32xf32>
    %247 = math.tanh %246 : vector<2x32xf32>
    %cst_62 = arith.constant 1.000000e+00 : f32
    %248 = vector.broadcast %cst_62 : f32 to vector<2x32xf32>
    %249 = arith.subf %248, %241 : vector<2x32xf32>
    %250 = arith.mulf %249, %247 : vector<2x32xf32>
    %251 = arith.mulf %241, %186 : vector<2x32xf32>
    %252 = arith.addf %250, %251 : vector<2x32xf32>
    %253 = arith.truncf %252 : vector<2x32xf32> to vector<2x32xbf16>
    %cst_63 = arith.constant dense<0.000000e+00> : vector<2x96xf32>
    %254 = tpu.matmul %253, %5, %cst_63 {dimension_numbers = #tpu.dot_dimension_numbers<[1], [0], [0], [1], [0, 0, 1, 1], [], []>} : vector<2x32xbf16>, vector<32x96xbf16>, vector<2x96xf32> -> vector<2x96xf32>
    %255 = arith.addf %254, %12 : vector<2x96xf32>
    %256 = arith.truncf %218 : vector<2x32xf32> to vector<2x32xbf16>
    %cst_64 = arith.constant dense<0.000000e+00> : vector<2x96xf32>
    %257 = tpu.matmul %256, %6, %cst_64 {dimension_numbers = #tpu.dot_dimension_numbers<[1], [0], [0], [1], [0, 0, 1, 1], [], []>} : vector<2x32xbf16>, vector<32x96xbf16>, vector<2x96xf32> -> vector<2x96xf32>
    %258 = vector.extract_strided_slice %255 {offsets = [0, 0], sizes = [2, 32], strides = [1, 1]} : vector<2x96xf32> to vector<2x32xf32>
    %259 = vector.extract_strided_slice %257 {offsets = [0, 0], sizes = [2, 32], strides = [1, 1]} : vector<2x96xf32> to vector<2x32xf32>
    %260 = arith.addf %258, %259 : vector<2x32xf32>
    %261 = arith.negf %260 : vector<2x32xf32>
    %262 = math.exp %261 : vector<2x32xf32>
    %cst_65 = arith.constant 1.000000e+00 : f32
    %263 = vector.broadcast %cst_65 : f32 to vector<2x32xf32>
    %264 = arith.addf %263, %262 : vector<2x32xf32>
    %265 = arith.divf %263, %264 : vector<2x32xf32>
    %266 = vector.extract_strided_slice %255 {offsets = [0, 32], sizes = [2, 32], strides = [1, 1]} : vector<2x96xf32> to vector<2x32xf32>
    %267 = vector.extract_strided_slice %257 {offsets = [0, 32], sizes = [2, 32], strides = [1, 1]} : vector<2x96xf32> to vector<2x32xf32>
    %268 = arith.addf %266, %267 : vector<2x32xf32>
    %269 = arith.negf %268 : vector<2x32xf32>
    %270 = math.exp %269 : vector<2x32xf32>
    %cst_66 = arith.constant 1.000000e+00 : f32
    %271 = vector.broadcast %cst_66 : f32 to vector<2x32xf32>
    %272 = arith.addf %271, %270 : vector<2x32xf32>
    %273 = arith.divf %271, %272 : vector<2x32xf32>
    %274 = vector.extract_strided_slice %255 {offsets = [0, 64], sizes = [2, 32], strides = [1, 1]} : vector<2x96xf32> to vector<2x32xf32>
    %275 = vector.extract_strided_slice %257 {offsets = [0, 64], sizes = [2, 32], strides = [1, 1]} : vector<2x96xf32> to vector<2x32xf32>
    %276 = arith.addf %275, %18 : vector<2x32xf32>
    %277 = arith.mulf %265, %276 : vector<2x32xf32>
    %278 = arith.addf %274, %277 : vector<2x32xf32>
    %279 = math.tanh %278 : vector<2x32xf32>
    %cst_67 = arith.constant 1.000000e+00 : f32
    %280 = vector.broadcast %cst_67 : f32 to vector<2x32xf32>
    %281 = arith.subf %280, %273 : vector<2x32xf32>
    %282 = arith.mulf %281, %279 : vector<2x32xf32>
    %283 = arith.mulf %273, %218 : vector<2x32xf32>
    %284 = arith.addf %282, %283 : vector<2x32xf32>
    %c4_i32 = arith.constant 4 : i32
    %285 = arith.index_cast %c4_i32 : i32 to index
    %c0_68 = arith.constant 0 : index
    %c0_69 = arith.constant 0 : index
    %286 = vector.load %arg1[%285, %c0_68, %c0_69] : memref<8x2x16xbf16, #tpu.memory_space<vmem>>, vector<1x2x16xbf16>
    %287 = vector.shape_cast %286 : vector<1x2x16xbf16> to vector<2x16xbf16>
    %cst_70 = arith.constant dense<0.000000e+00> : vector<2x96xf32>
    %288 = tpu.matmul %287, %3, %cst_70 {dimension_numbers = #tpu.dot_dimension_numbers<[1], [0], [0], [1], [0, 0, 1, 1], [], []>} : vector<2x16xbf16>, vector<16x96xbf16>, vector<2x96xf32> -> vector<2x96xf32>
    %289 = arith.addf %288, %9 : vector<2x96xf32>
    %290 = arith.truncf %252 : vector<2x32xf32> to vector<2x32xbf16>
    %cst_71 = arith.constant dense<0.000000e+00> : vector<2x96xf32>
    %291 = tpu.matmul %290, %4, %cst_71 {dimension_numbers = #tpu.dot_dimension_numbers<[1], [0], [0], [1], [0, 0, 1, 1], [], []>} : vector<2x32xbf16>, vector<32x96xbf16>, vector<2x96xf32> -> vector<2x96xf32>
    %292 = vector.extract_strided_slice %289 {offsets = [0, 0], sizes = [2, 32], strides = [1, 1]} : vector<2x96xf32> to vector<2x32xf32>
    %293 = vector.extract_strided_slice %291 {offsets = [0, 0], sizes = [2, 32], strides = [1, 1]} : vector<2x96xf32> to vector<2x32xf32>
    %294 = arith.addf %292, %293 : vector<2x32xf32>
    %295 = arith.negf %294 : vector<2x32xf32>
    %296 = math.exp %295 : vector<2x32xf32>
    %cst_72 = arith.constant 1.000000e+00 : f32
    %297 = vector.broadcast %cst_72 : f32 to vector<2x32xf32>
    %298 = arith.addf %297, %296 : vector<2x32xf32>
    %299 = arith.divf %297, %298 : vector<2x32xf32>
    %300 = vector.extract_strided_slice %289 {offsets = [0, 32], sizes = [2, 32], strides = [1, 1]} : vector<2x96xf32> to vector<2x32xf32>
    %301 = vector.extract_strided_slice %291 {offsets = [0, 32], sizes = [2, 32], strides = [1, 1]} : vector<2x96xf32> to vector<2x32xf32>
    %302 = arith.addf %300, %301 : vector<2x32xf32>
    %303 = arith.negf %302 : vector<2x32xf32>
    %304 = math.exp %303 : vector<2x32xf32>
    %cst_73 = arith.constant 1.000000e+00 : f32
    %305 = vector.broadcast %cst_73 : f32 to vector<2x32xf32>
    %306 = arith.addf %305, %304 : vector<2x32xf32>
    %307 = arith.divf %305, %306 : vector<2x32xf32>
    %308 = vector.extract_strided_slice %289 {offsets = [0, 64], sizes = [2, 32], strides = [1, 1]} : vector<2x96xf32> to vector<2x32xf32>
    %309 = vector.extract_strided_slice %291 {offsets = [0, 64], sizes = [2, 32], strides = [1, 1]} : vector<2x96xf32> to vector<2x32xf32>
    %310 = arith.addf %309, %15 : vector<2x32xf32>
    %311 = arith.mulf %299, %310 : vector<2x32xf32>
    %312 = arith.addf %308, %311 : vector<2x32xf32>
    %313 = math.tanh %312 : vector<2x32xf32>
    %cst_74 = arith.constant 1.000000e+00 : f32
    %314 = vector.broadcast %cst_74 : f32 to vector<2x32xf32>
    %315 = arith.subf %314, %307 : vector<2x32xf32>
    %316 = arith.mulf %315, %313 : vector<2x32xf32>
    %317 = arith.mulf %307, %252 : vector<2x32xf32>
    %318 = arith.addf %316, %317 : vector<2x32xf32>
    %319 = arith.truncf %318 : vector<2x32xf32> to vector<2x32xbf16>
    %cst_75 = arith.constant dense<0.000000e+00> : vector<2x96xf32>
    %320 = tpu.matmul %319, %5, %cst_75 {dimension_numbers = #tpu.dot_dimension_numbers<[1], [0], [0], [1], [0, 0, 1, 1], [], []>} : vector<2x32xbf16>, vector<32x96xbf16>, vector<2x96xf32> -> vector<2x96xf32>
    %321 = arith.addf %320, %12 : vector<2x96xf32>
    %322 = arith.truncf %284 : vector<2x32xf32> to vector<2x32xbf16>
    %cst_76 = arith.constant dense<0.000000e+00> : vector<2x96xf32>
    %323 = tpu.matmul %322, %6, %cst_76 {dimension_numbers = #tpu.dot_dimension_numbers<[1], [0], [0], [1], [0, 0, 1, 1], [], []>} : vector<2x32xbf16>, vector<32x96xbf16>, vector<2x96xf32> -> vector<2x96xf32>
    %324 = vector.extract_strided_slice %321 {offsets = [0, 0], sizes = [2, 32], strides = [1, 1]} : vector<2x96xf32> to vector<2x32xf32>
    %325 = vector.extract_strided_slice %323 {offsets = [0, 0], sizes = [2, 32], strides = [1, 1]} : vector<2x96xf32> to vector<2x32xf32>
    %326 = arith.addf %324, %325 : vector<2x32xf32>
    %327 = arith.negf %326 : vector<2x32xf32>
    %328 = math.exp %327 : vector<2x32xf32>
    %cst_77 = arith.constant 1.000000e+00 : f32
    %329 = vector.broadcast %cst_77 : f32 to vector<2x32xf32>
    %330 = arith.addf %329, %328 : vector<2x32xf32>
    %331 = arith.divf %329, %330 : vector<2x32xf32>
    %332 = vector.extract_strided_slice %321 {offsets = [0, 32], sizes = [2, 32], strides = [1, 1]} : vector<2x96xf32> to vector<2x32xf32>
    %333 = vector.extract_strided_slice %323 {offsets = [0, 32], sizes = [2, 32], strides = [1, 1]} : vector<2x96xf32> to vector<2x32xf32>
    %334 = arith.addf %332, %333 : vector<2x32xf32>
    %335 = arith.negf %334 : vector<2x32xf32>
    %336 = math.exp %335 : vector<2x32xf32>
    %cst_78 = arith.constant 1.000000e+00 : f32
    %337 = vector.broadcast %cst_78 : f32 to vector<2x32xf32>
    %338 = arith.addf %337, %336 : vector<2x32xf32>
    %339 = arith.divf %337, %338 : vector<2x32xf32>
    %340 = vector.extract_strided_slice %321 {offsets = [0, 64], sizes = [2, 32], strides = [1, 1]} : vector<2x96xf32> to vector<2x32xf32>
    %341 = vector.extract_strided_slice %323 {offsets = [0, 64], sizes = [2, 32], strides = [1, 1]} : vector<2x96xf32> to vector<2x32xf32>
    %342 = arith.addf %341, %18 : vector<2x32xf32>
    %343 = arith.mulf %331, %342 : vector<2x32xf32>
    %344 = arith.addf %340, %343 : vector<2x32xf32>
    %345 = math.tanh %344 : vector<2x32xf32>
    %cst_79 = arith.constant 1.000000e+00 : f32
    %346 = vector.broadcast %cst_79 : f32 to vector<2x32xf32>
    %347 = arith.subf %346, %339 : vector<2x32xf32>
    %348 = arith.mulf %347, %345 : vector<2x32xf32>
    %349 = arith.mulf %339, %284 : vector<2x32xf32>
    %350 = arith.addf %348, %349 : vector<2x32xf32>
    %c5_i32 = arith.constant 5 : i32
    %351 = arith.index_cast %c5_i32 : i32 to index
    %c0_80 = arith.constant 0 : index
    %c0_81 = arith.constant 0 : index
    %352 = vector.load %arg1[%351, %c0_80, %c0_81] : memref<8x2x16xbf16, #tpu.memory_space<vmem>>, vector<1x2x16xbf16>
    %353 = vector.shape_cast %352 : vector<1x2x16xbf16> to vector<2x16xbf16>
    %cst_82 = arith.constant dense<0.000000e+00> : vector<2x96xf32>
    %354 = tpu.matmul %353, %3, %cst_82 {dimension_numbers = #tpu.dot_dimension_numbers<[1], [0], [0], [1], [0, 0, 1, 1], [], []>} : vector<2x16xbf16>, vector<16x96xbf16>, vector<2x96xf32> -> vector<2x96xf32>
    %355 = arith.addf %354, %9 : vector<2x96xf32>
    %356 = arith.truncf %318 : vector<2x32xf32> to vector<2x32xbf16>
    %cst_83 = arith.constant dense<0.000000e+00> : vector<2x96xf32>
    %357 = tpu.matmul %356, %4, %cst_83 {dimension_numbers = #tpu.dot_dimension_numbers<[1], [0], [0], [1], [0, 0, 1, 1], [], []>} : vector<2x32xbf16>, vector<32x96xbf16>, vector<2x96xf32> -> vector<2x96xf32>
    %358 = vector.extract_strided_slice %355 {offsets = [0, 0], sizes = [2, 32], strides = [1, 1]} : vector<2x96xf32> to vector<2x32xf32>
    %359 = vector.extract_strided_slice %357 {offsets = [0, 0], sizes = [2, 32], strides = [1, 1]} : vector<2x96xf32> to vector<2x32xf32>
    %360 = arith.addf %358, %359 : vector<2x32xf32>
    %361 = arith.negf %360 : vector<2x32xf32>
    %362 = math.exp %361 : vector<2x32xf32>
    %cst_84 = arith.constant 1.000000e+00 : f32
    %363 = vector.broadcast %cst_84 : f32 to vector<2x32xf32>
    %364 = arith.addf %363, %362 : vector<2x32xf32>
    %365 = arith.divf %363, %364 : vector<2x32xf32>
    %366 = vector.extract_strided_slice %355 {offsets = [0, 32], sizes = [2, 32], strides = [1, 1]} : vector<2x96xf32> to vector<2x32xf32>
    %367 = vector.extract_strided_slice %357 {offsets = [0, 32], sizes = [2, 32], strides = [1, 1]} : vector<2x96xf32> to vector<2x32xf32>
    %368 = arith.addf %366, %367 : vector<2x32xf32>
    %369 = arith.negf %368 : vector<2x32xf32>
    %370 = math.exp %369 : vector<2x32xf32>
    %cst_85 = arith.constant 1.000000e+00 : f32
    %371 = vector.broadcast %cst_85 : f32 to vector<2x32xf32>
    %372 = arith.addf %371, %370 : vector<2x32xf32>
    %373 = arith.divf %371, %372 : vector<2x32xf32>
    %374 = vector.extract_strided_slice %355 {offsets = [0, 64], sizes = [2, 32], strides = [1, 1]} : vector<2x96xf32> to vector<2x32xf32>
    %375 = vector.extract_strided_slice %357 {offsets = [0, 64], sizes = [2, 32], strides = [1, 1]} : vector<2x96xf32> to vector<2x32xf32>
    %376 = arith.addf %375, %15 : vector<2x32xf32>
    %377 = arith.mulf %365, %376 : vector<2x32xf32>
    %378 = arith.addf %374, %377 : vector<2x32xf32>
    %379 = math.tanh %378 : vector<2x32xf32>
    %cst_86 = arith.constant 1.000000e+00 : f32
    %380 = vector.broadcast %cst_86 : f32 to vector<2x32xf32>
    %381 = arith.subf %380, %373 : vector<2x32xf32>
    %382 = arith.mulf %381, %379 : vector<2x32xf32>
    %383 = arith.mulf %373, %318 : vector<2x32xf32>
    %384 = arith.addf %382, %383 : vector<2x32xf32>
    %385 = arith.truncf %384 : vector<2x32xf32> to vector<2x32xbf16>
    %cst_87 = arith.constant dense<0.000000e+00> : vector<2x96xf32>
    %386 = tpu.matmul %385, %5, %cst_87 {dimension_numbers = #tpu.dot_dimension_numbers<[1], [0], [0], [1], [0, 0, 1, 1], [], []>} : vector<2x32xbf16>, vector<32x96xbf16>, vector<2x96xf32> -> vector<2x96xf32>
    %387 = arith.addf %386, %12 : vector<2x96xf32>
    %388 = arith.truncf %350 : vector<2x32xf32> to vector<2x32xbf16>
    %cst_88 = arith.constant dense<0.000000e+00> : vector<2x96xf32>
    %389 = tpu.matmul %388, %6, %cst_88 {dimension_numbers = #tpu.dot_dimension_numbers<[1], [0], [0], [1], [0, 0, 1, 1], [], []>} : vector<2x32xbf16>, vector<32x96xbf16>, vector<2x96xf32> -> vector<2x96xf32>
    %390 = vector.extract_strided_slice %387 {offsets = [0, 0], sizes = [2, 32], strides = [1, 1]} : vector<2x96xf32> to vector<2x32xf32>
    %391 = vector.extract_strided_slice %389 {offsets = [0, 0], sizes = [2, 32], strides = [1, 1]} : vector<2x96xf32> to vector<2x32xf32>
    %392 = arith.addf %390, %391 : vector<2x32xf32>
    %393 = arith.negf %392 : vector<2x32xf32>
    %394 = math.exp %393 : vector<2x32xf32>
    %cst_89 = arith.constant 1.000000e+00 : f32
    %395 = vector.broadcast %cst_89 : f32 to vector<2x32xf32>
    %396 = arith.addf %395, %394 : vector<2x32xf32>
    %397 = arith.divf %395, %396 : vector<2x32xf32>
    %398 = vector.extract_strided_slice %387 {offsets = [0, 32], sizes = [2, 32], strides = [1, 1]} : vector<2x96xf32> to vector<2x32xf32>
    %399 = vector.extract_strided_slice %389 {offsets = [0, 32], sizes = [2, 32], strides = [1, 1]} : vector<2x96xf32> to vector<2x32xf32>
    %400 = arith.addf %398, %399 : vector<2x32xf32>
    %401 = arith.negf %400 : vector<2x32xf32>
    %402 = math.exp %401 : vector<2x32xf32>
    %cst_90 = arith.constant 1.000000e+00 : f32
    %403 = vector.broadcast %cst_90 : f32 to vector<2x32xf32>
    %404 = arith.addf %403, %402 : vector<2x32xf32>
    %405 = arith.divf %403, %404 : vector<2x32xf32>
    %406 = vector.extract_strided_slice %387 {offsets = [0, 64], sizes = [2, 32], strides = [1, 1]} : vector<2x96xf32> to vector<2x32xf32>
    %407 = vector.extract_strided_slice %389 {offsets = [0, 64], sizes = [2, 32], strides = [1, 1]} : vector<2x96xf32> to vector<2x32xf32>
    %408 = arith.addf %407, %18 : vector<2x32xf32>
    %409 = arith.mulf %397, %408 : vector<2x32xf32>
    %410 = arith.addf %406, %409 : vector<2x32xf32>
    %411 = math.tanh %410 : vector<2x32xf32>
    %cst_91 = arith.constant 1.000000e+00 : f32
    %412 = vector.broadcast %cst_91 : f32 to vector<2x32xf32>
    %413 = arith.subf %412, %405 : vector<2x32xf32>
    %414 = arith.mulf %413, %411 : vector<2x32xf32>
    %415 = arith.mulf %405, %350 : vector<2x32xf32>
    %416 = arith.addf %414, %415 : vector<2x32xf32>
    %c6_i32 = arith.constant 6 : i32
    %417 = arith.index_cast %c6_i32 : i32 to index
    %c0_92 = arith.constant 0 : index
    %c0_93 = arith.constant 0 : index
    %418 = vector.load %arg1[%417, %c0_92, %c0_93] : memref<8x2x16xbf16, #tpu.memory_space<vmem>>, vector<1x2x16xbf16>
    %419 = vector.shape_cast %418 : vector<1x2x16xbf16> to vector<2x16xbf16>
    %cst_94 = arith.constant dense<0.000000e+00> : vector<2x96xf32>
    %420 = tpu.matmul %419, %3, %cst_94 {dimension_numbers = #tpu.dot_dimension_numbers<[1], [0], [0], [1], [0, 0, 1, 1], [], []>} : vector<2x16xbf16>, vector<16x96xbf16>, vector<2x96xf32> -> vector<2x96xf32>
    %421 = arith.addf %420, %9 : vector<2x96xf32>
    %422 = arith.truncf %384 : vector<2x32xf32> to vector<2x32xbf16>
    %cst_95 = arith.constant dense<0.000000e+00> : vector<2x96xf32>
    %423 = tpu.matmul %422, %4, %cst_95 {dimension_numbers = #tpu.dot_dimension_numbers<[1], [0], [0], [1], [0, 0, 1, 1], [], []>} : vector<2x32xbf16>, vector<32x96xbf16>, vector<2x96xf32> -> vector<2x96xf32>
    %424 = vector.extract_strided_slice %421 {offsets = [0, 0], sizes = [2, 32], strides = [1, 1]} : vector<2x96xf32> to vector<2x32xf32>
    %425 = vector.extract_strided_slice %423 {offsets = [0, 0], sizes = [2, 32], strides = [1, 1]} : vector<2x96xf32> to vector<2x32xf32>
    %426 = arith.addf %424, %425 : vector<2x32xf32>
    %427 = arith.negf %426 : vector<2x32xf32>
    %428 = math.exp %427 : vector<2x32xf32>
    %cst_96 = arith.constant 1.000000e+00 : f32
    %429 = vector.broadcast %cst_96 : f32 to vector<2x32xf32>
    %430 = arith.addf %429, %428 : vector<2x32xf32>
    %431 = arith.divf %429, %430 : vector<2x32xf32>
    %432 = vector.extract_strided_slice %421 {offsets = [0, 32], sizes = [2, 32], strides = [1, 1]} : vector<2x96xf32> to vector<2x32xf32>
    %433 = vector.extract_strided_slice %423 {offsets = [0, 32], sizes = [2, 32], strides = [1, 1]} : vector<2x96xf32> to vector<2x32xf32>
    %434 = arith.addf %432, %433 : vector<2x32xf32>
    %435 = arith.negf %434 : vector<2x32xf32>
    %436 = math.exp %435 : vector<2x32xf32>
    %cst_97 = arith.constant 1.000000e+00 : f32
    %437 = vector.broadcast %cst_97 : f32 to vector<2x32xf32>
    %438 = arith.addf %437, %436 : vector<2x32xf32>
    %439 = arith.divf %437, %438 : vector<2x32xf32>
    %440 = vector.extract_strided_slice %421 {offsets = [0, 64], sizes = [2, 32], strides = [1, 1]} : vector<2x96xf32> to vector<2x32xf32>
    %441 = vector.extract_strided_slice %423 {offsets = [0, 64], sizes = [2, 32], strides = [1, 1]} : vector<2x96xf32> to vector<2x32xf32>
    %442 = arith.addf %441, %15 : vector<2x32xf32>
    %443 = arith.mulf %431, %442 : vector<2x32xf32>
    %444 = arith.addf %440, %443 : vector<2x32xf32>
    %445 = math.tanh %444 : vector<2x32xf32>
    %cst_98 = arith.constant 1.000000e+00 : f32
    %446 = vector.broadcast %cst_98 : f32 to vector<2x32xf32>
    %447 = arith.subf %446, %439 : vector<2x32xf32>
    %448 = arith.mulf %447, %445 : vector<2x32xf32>
    %449 = arith.mulf %439, %384 : vector<2x32xf32>
    %450 = arith.addf %448, %449 : vector<2x32xf32>
    %451 = arith.truncf %450 : vector<2x32xf32> to vector<2x32xbf16>
    %cst_99 = arith.constant dense<0.000000e+00> : vector<2x96xf32>
    %452 = tpu.matmul %451, %5, %cst_99 {dimension_numbers = #tpu.dot_dimension_numbers<[1], [0], [0], [1], [0, 0, 1, 1], [], []>} : vector<2x32xbf16>, vector<32x96xbf16>, vector<2x96xf32> -> vector<2x96xf32>
    %453 = arith.addf %452, %12 : vector<2x96xf32>
    %454 = arith.truncf %416 : vector<2x32xf32> to vector<2x32xbf16>
    %cst_100 = arith.constant dense<0.000000e+00> : vector<2x96xf32>
    %455 = tpu.matmul %454, %6, %cst_100 {dimension_numbers = #tpu.dot_dimension_numbers<[1], [0], [0], [1], [0, 0, 1, 1], [], []>} : vector<2x32xbf16>, vector<32x96xbf16>, vector<2x96xf32> -> vector<2x96xf32>
    %456 = vector.extract_strided_slice %453 {offsets = [0, 0], sizes = [2, 32], strides = [1, 1]} : vector<2x96xf32> to vector<2x32xf32>
    %457 = vector.extract_strided_slice %455 {offsets = [0, 0], sizes = [2, 32], strides = [1, 1]} : vector<2x96xf32> to vector<2x32xf32>
    %458 = arith.addf %456, %457 : vector<2x32xf32>
    %459 = arith.negf %458 : vector<2x32xf32>
    %460 = math.exp %459 : vector<2x32xf32>
    %cst_101 = arith.constant 1.000000e+00 : f32
    %461 = vector.broadcast %cst_101 : f32 to vector<2x32xf32>
    %462 = arith.addf %461, %460 : vector<2x32xf32>
    %463 = arith.divf %461, %462 : vector<2x32xf32>
    %464 = vector.extract_strided_slice %453 {offsets = [0, 32], sizes = [2, 32], strides = [1, 1]} : vector<2x96xf32> to vector<2x32xf32>
    %465 = vector.extract_strided_slice %455 {offsets = [0, 32], sizes = [2, 32], strides = [1, 1]} : vector<2x96xf32> to vector<2x32xf32>
    %466 = arith.addf %464, %465 : vector<2x32xf32>
    %467 = arith.negf %466 : vector<2x32xf32>
    %468 = math.exp %467 : vector<2x32xf32>
    %cst_102 = arith.constant 1.000000e+00 : f32
    %469 = vector.broadcast %cst_102 : f32 to vector<2x32xf32>
    %470 = arith.addf %469, %468 : vector<2x32xf32>
    %471 = arith.divf %469, %470 : vector<2x32xf32>
    %472 = vector.extract_strided_slice %453 {offsets = [0, 64], sizes = [2, 32], strides = [1, 1]} : vector<2x96xf32> to vector<2x32xf32>
    %473 = vector.extract_strided_slice %455 {offsets = [0, 64], sizes = [2, 32], strides = [1, 1]} : vector<2x96xf32> to vector<2x32xf32>
    %474 = arith.addf %473, %18 : vector<2x32xf32>
    %475 = arith.mulf %463, %474 : vector<2x32xf32>
    %476 = arith.addf %472, %475 : vector<2x32xf32>
    %477 = math.tanh %476 : vector<2x32xf32>
    %cst_103 = arith.constant 1.000000e+00 : f32
    %478 = vector.broadcast %cst_103 : f32 to vector<2x32xf32>
    %479 = arith.subf %478, %471 : vector<2x32xf32>
    %480 = arith.mulf %479, %477 : vector<2x32xf32>
    %481 = arith.mulf %471, %416 : vector<2x32xf32>
    %482 = arith.addf %480, %481 : vector<2x32xf32>
    %c7_i32 = arith.constant 7 : i32
    %483 = arith.index_cast %c7_i32 : i32 to index
    %c0_104 = arith.constant 0 : index
    %c0_105 = arith.constant 0 : index
    %484 = vector.load %arg1[%483, %c0_104, %c0_105] : memref<8x2x16xbf16, #tpu.memory_space<vmem>>, vector<1x2x16xbf16>
    %485 = vector.shape_cast %484 : vector<1x2x16xbf16> to vector<2x16xbf16>
    %cst_106 = arith.constant dense<0.000000e+00> : vector<2x96xf32>
    %486 = tpu.matmul %485, %3, %cst_106 {dimension_numbers = #tpu.dot_dimension_numbers<[1], [0], [0], [1], [0, 0, 1, 1], [], []>} : vector<2x16xbf16>, vector<16x96xbf16>, vector<2x96xf32> -> vector<2x96xf32>
    %487 = arith.addf %486, %9 : vector<2x96xf32>
    %488 = arith.truncf %450 : vector<2x32xf32> to vector<2x32xbf16>
    %cst_107 = arith.constant dense<0.000000e+00> : vector<2x96xf32>
    %489 = tpu.matmul %488, %4, %cst_107 {dimension_numbers = #tpu.dot_dimension_numbers<[1], [0], [0], [1], [0, 0, 1, 1], [], []>} : vector<2x32xbf16>, vector<32x96xbf16>, vector<2x96xf32> -> vector<2x96xf32>
    %490 = vector.extract_strided_slice %487 {offsets = [0, 0], sizes = [2, 32], strides = [1, 1]} : vector<2x96xf32> to vector<2x32xf32>
    %491 = vector.extract_strided_slice %489 {offsets = [0, 0], sizes = [2, 32], strides = [1, 1]} : vector<2x96xf32> to vector<2x32xf32>
    %492 = arith.addf %490, %491 : vector<2x32xf32>
    %493 = arith.negf %492 : vector<2x32xf32>
    %494 = math.exp %493 : vector<2x32xf32>
    %cst_108 = arith.constant 1.000000e+00 : f32
    %495 = vector.broadcast %cst_108 : f32 to vector<2x32xf32>
    %496 = arith.addf %495, %494 : vector<2x32xf32>
    %497 = arith.divf %495, %496 : vector<2x32xf32>
    %498 = vector.extract_strided_slice %487 {offsets = [0, 32], sizes = [2, 32], strides = [1, 1]} : vector<2x96xf32> to vector<2x32xf32>
    %499 = vector.extract_strided_slice %489 {offsets = [0, 32], sizes = [2, 32], strides = [1, 1]} : vector<2x96xf32> to vector<2x32xf32>
    %500 = arith.addf %498, %499 : vector<2x32xf32>
    %501 = arith.negf %500 : vector<2x32xf32>
    %502 = math.exp %501 : vector<2x32xf32>
    %cst_109 = arith.constant 1.000000e+00 : f32
    %503 = vector.broadcast %cst_109 : f32 to vector<2x32xf32>
    %504 = arith.addf %503, %502 : vector<2x32xf32>
    %505 = arith.divf %503, %504 : vector<2x32xf32>
    %506 = vector.extract_strided_slice %487 {offsets = [0, 64], sizes = [2, 32], strides = [1, 1]} : vector<2x96xf32> to vector<2x32xf32>
    %507 = vector.extract_strided_slice %489 {offsets = [0, 64], sizes = [2, 32], strides = [1, 1]} : vector<2x96xf32> to vector<2x32xf32>
    %508 = arith.addf %507, %15 : vector<2x32xf32>
    %509 = arith.mulf %497, %508 : vector<2x32xf32>
    %510 = arith.addf %506, %509 : vector<2x32xf32>
    %511 = math.tanh %510 : vector<2x32xf32>
    %cst_110 = arith.constant 1.000000e+00 : f32
    %512 = vector.broadcast %cst_110 : f32 to vector<2x32xf32>
    %513 = arith.subf %512, %505 : vector<2x32xf32>
    %514 = arith.mulf %513, %511 : vector<2x32xf32>
    %515 = arith.mulf %505, %450 : vector<2x32xf32>
    %516 = arith.addf %514, %515 : vector<2x32xf32>
    %517 = arith.truncf %516 : vector<2x32xf32> to vector<2x32xbf16>
    %cst_111 = arith.constant dense<0.000000e+00> : vector<2x96xf32>
    %518 = tpu.matmul %517, %5, %cst_111 {dimension_numbers = #tpu.dot_dimension_numbers<[1], [0], [0], [1], [0, 0, 1, 1], [], []>} : vector<2x32xbf16>, vector<32x96xbf16>, vector<2x96xf32> -> vector<2x96xf32>
    %519 = arith.addf %518, %12 : vector<2x96xf32>
    %520 = arith.truncf %482 : vector<2x32xf32> to vector<2x32xbf16>
    %cst_112 = arith.constant dense<0.000000e+00> : vector<2x96xf32>
    %521 = tpu.matmul %520, %6, %cst_112 {dimension_numbers = #tpu.dot_dimension_numbers<[1], [0], [0], [1], [0, 0, 1, 1], [], []>} : vector<2x32xbf16>, vector<32x96xbf16>, vector<2x96xf32> -> vector<2x96xf32>
    %522 = vector.extract_strided_slice %519 {offsets = [0, 0], sizes = [2, 32], strides = [1, 1]} : vector<2x96xf32> to vector<2x32xf32>
    %523 = vector.extract_strided_slice %521 {offsets = [0, 0], sizes = [2, 32], strides = [1, 1]} : vector<2x96xf32> to vector<2x32xf32>
    %524 = arith.addf %522, %523 : vector<2x32xf32>
    %525 = arith.negf %524 : vector<2x32xf32>
    %526 = math.exp %525 : vector<2x32xf32>
    %cst_113 = arith.constant 1.000000e+00 : f32
    %527 = vector.broadcast %cst_113 : f32 to vector<2x32xf32>
    %528 = arith.addf %527, %526 : vector<2x32xf32>
    %529 = arith.divf %527, %528 : vector<2x32xf32>
    %530 = vector.extract_strided_slice %519 {offsets = [0, 32], sizes = [2, 32], strides = [1, 1]} : vector<2x96xf32> to vector<2x32xf32>
    %531 = vector.extract_strided_slice %521 {offsets = [0, 32], sizes = [2, 32], strides = [1, 1]} : vector<2x96xf32> to vector<2x32xf32>
    %532 = arith.addf %530, %531 : vector<2x32xf32>
    %533 = arith.negf %532 : vector<2x32xf32>
    %534 = math.exp %533 : vector<2x32xf32>
    %cst_114 = arith.constant 1.000000e+00 : f32
    %535 = vector.broadcast %cst_114 : f32 to vector<2x32xf32>
    %536 = arith.addf %535, %534 : vector<2x32xf32>
    %537 = arith.divf %535, %536 : vector<2x32xf32>
    %538 = vector.extract_strided_slice %519 {offsets = [0, 64], sizes = [2, 32], strides = [1, 1]} : vector<2x96xf32> to vector<2x32xf32>
    %539 = vector.extract_strided_slice %521 {offsets = [0, 64], sizes = [2, 32], strides = [1, 1]} : vector<2x96xf32> to vector<2x32xf32>
    %540 = arith.addf %539, %18 : vector<2x32xf32>
    %541 = arith.mulf %529, %540 : vector<2x32xf32>
    %542 = arith.addf %538, %541 : vector<2x32xf32>
    %543 = math.tanh %542 : vector<2x32xf32>
    %cst_115 = arith.constant 1.000000e+00 : f32
    %544 = vector.broadcast %cst_115 : f32 to vector<2x32xf32>
    %545 = arith.subf %544, %537 : vector<2x32xf32>
    %546 = arith.mulf %545, %543 : vector<2x32xf32>
    %547 = arith.mulf %537, %482 : vector<2x32xf32>
    %548 = arith.addf %546, %547 : vector<2x32xf32>
    %c8_i32 = arith.constant 8 : i32
    %c0_116 = arith.constant 0 : index
    %c0_117 = arith.constant 0 : index
    %549 = vector.load %arg11[%c0_116, %c0_117] : memref<2x32xf32, #tpu.memory_space<vmem>>, vector<2x32xf32>
    tpu.vector_store %arg11[%c0_116, %c0_117], %516 {strides = array<i32>} : memref<2x32xf32, #tpu.memory_space<vmem>>, vector<2x32xf32>,
    %c0_118 = arith.constant 0 : index
    %c0_119 = arith.constant 0 : index
    %550 = vector.load %arg12[%c0_118, %c0_119] : memref<2x32xf32, #tpu.memory_space<vmem>>, vector<2x32xf32>
    tpu.vector_store %arg12[%c0_118, %c0_119], %548 {strides = array<i32>} : memref<2x32xf32, #tpu.memory_space<vmem>>, vector<2x32xf32>,
    %c0_i32_120 = arith.constant 0 : i32
    %551 = arith.cmpi eq, %arg0, %c0_i32_120 : i32
    %552 = arith.extui %551 : i1 to i32
    %c0_i32_121 = arith.constant 0 : i32
    %553 = arith.cmpi ne, %552, %c0_i32_121 : i32
    scf.if %553 {
      %c0_122 = arith.constant 0 : index
      %c0_123 = arith.constant 0 : index
      %554 = vector.load %arg10[%c0_122, %c0_123] : memref<2x32xf32, #tpu.memory_space<vmem>>, vector<2x32xf32>
      tpu.vector_store %arg10[%c0_122, %c0_123], %548 {strides = array<i32>} : memref<2x32xf32, #tpu.memory_space<vmem>>, vector<2x32xf32>,
    } else {
    }
    return
  }
  func.func @transform_0(%arg0: i32) -> (i32, i32, i32) {
    %c0_i32 = arith.constant 0 : i32
    %c0_i32_0 = arith.constant 0 : i32
    %c0_i32_1 = arith.constant 0 : i32
    return %arg0, %c0_i32, %c0_i32_0 : i32, i32, i32
  }
  func.func @transform_1(%arg0: i32) -> (i32, i32) {
    %c0_i32 = arith.constant 0 : i32
    %c0_i32_0 = arith.constant 0 : i32
    %c0_i32_1 = arith.constant 0 : i32
    return %c0_i32, %c0_i32_0 : i32, i32
  }
  func.func @transform_2(%arg0: i32) -> (i32, i32) {
    %c0_i32 = arith.constant 0 : i32
    %c0_i32_0 = arith.constant 0 : i32
    %c0_i32_1 = arith.constant 0 : i32
    return %c0_i32, %c0_i32_0 : i32, i32
  }
  func.func @transform_3(%arg0: i32) -> (i32, i32) {
    %c0_i32 = arith.constant 0 : i32
    %c0_i32_0 = arith.constant 0 : i32
    %c0_i32_1 = arith.constant 0 : i32
    return %c0_i32, %c0_i32_0 : i32, i32
  }
  func.func @transform_4(%arg0: i32) -> (i32, i32) {
    %c0_i32 = arith.constant 0 : i32
    %c0_i32_0 = arith.constant 0 : i32
    %c0_i32_1 = arith.constant 0 : i32
    return %c0_i32, %c0_i32_0 : i32, i32
  }
  func.func @transform_5(%arg0: i32) -> (i32, i32) {
    %c0_i32 = arith.constant 0 : i32
    %c0_i32_0 = arith.constant 0 : i32
    %c0_i32_1 = arith.constant 0 : i32
    return %c0_i32, %c0_i32_0 : i32, i32
  }
  func.func @transform_6(%arg0: i32) -> (i32, i32) {
    %c0_i32 = arith.constant 0 : i32
    %c0_i32_0 = arith.constant 0 : i32
    %c0_i32_1 = arith.constant 0 : i32
    return %c0_i32, %c0_i32_0 : i32, i32
  }
  func.func @transform_7(%arg0: i32) -> (i32, i32) {
    %c0_i32 = arith.constant 0 : i32
    %c0_i32_0 = arith.constant 0 : i32
    %c0_i32_1 = arith.constant 0 : i32
    return %c0_i32, %c0_i32_0 : i32, i32
  }
  func.func @transform_8(%arg0: i32) -> (i32, i32) {
    %c0_i32 = arith.constant 0 : i32
    %c0_i32_0 = arith.constant 0 : i32
    %c0_i32_1 = arith.constant 0 : i32
    return %c0_i32, %c0_i32_0 : i32, i32
  }
  func.func @transform_9(%arg0: i32) -> (i32, i32) {
    %c0_i32 = arith.constant 0 : i32
    %c0_i32_0 = arith.constant 0 : i32
    %c0_i32_1 = arith.constant 0 : i32
    return %c0_i32, %c0_i32_0 : i32, i32
  }
}

</mosaic_0001>

<llo_original>
// kernel: tpu_custom_call.1
$region0: #{tpu_custom_call.1}
  #allocation0 [shape = 'u32[]', space=smem, size = 0x4, offset = 0x4, fixed_abs, tag = 'smem constant byte address 0x4 - core index']
  #allocation1 [shape = 'u32[144,128]{1,0:T(1,128)}', space=vmem, size = 0x12000, scoped, tag = 'internal scratch']
  #allocation2 [shape = 'f32[2,32]{1,0:T(2,128)}', space=vmem, size = 0x400, scoped, tag = 'scratch operand']
  #allocation3 [shape = 'f32[2,32]{1,0:T(2,128)}', space=vmem, size = 0x400, scoped, tag = 'scratch operand']
  %s0 = inlined_call_operand.hbm [shape: bf16[8,2,16], index: 0, kind: input, shape index: {}]
  %s1 = inlined_call_operand.hbm [shape: bf16[16,96], index: 1, kind: input, shape index: {}]
  %s2 = inlined_call_operand.hbm [shape: bf16[32,96], index: 2, kind: input, shape index: {}]
  %s3 = inlined_call_operand.vmem [shape: f32[1,96], index: 3, kind: input, shape index: {}]
  %s4 = inlined_call_operand.vmem [shape: f32[1,32], index: 4, kind: input, shape index: {}]
  %s5 = inlined_call_operand.hbm [shape: bf16[32,96], index: 5, kind: input, shape index: {}]
  %s6 = inlined_call_operand.hbm [shape: bf16[32,96], index: 6, kind: input, shape index: {}]
  %s7 = inlined_call_operand.vmem [shape: f32[1,96], index: 7, kind: input, shape index: {}]
  %s8 = inlined_call_operand.vmem [shape: f32[1,32], index: 8, kind: input, shape index: {}]
  %s9 = inlined_call_operand.hbm [shape: f32[2,32], index: 9, kind: output, shape index: {}]
  %s10 = sld [smem:[#allocation0]]
  $region74: #{tpu_custom_call.1} parent=0
    _
  %s12 = ssub.s32 1, %s10
  %s13 = scalar_select 0, %s12, %s10
  $region1: #{tpu_custom_call.1} parent=0
    #allocation4 [shape = 'u8[4096]{0}', space=vmem, size = 0x1000, scoped, tag = 'input window, operand 0, single buffered']
    #allocation5 [shape = 's32[1]{0}', space=sflag, size = 0x4, scoped, tag = 'scoped memory for tpu_custom_call.1']
    #allocation6 [shape = 's32[1]{0}', space=sflag, size = 0x4, scoped, tag = 'scoped memory for tpu_custom_call.1']
    #allocation7 [shape = 'u8[4096]{0}', space=vmem, size = 0x1000, scoped, tag = 'input window, operand 1, single buffered']
    #allocation8 [shape = 's32[1]{0}', space=sflag, size = 0x4, scoped, tag = 'scoped memory for tpu_custom_call.1']
    #allocation9 [shape = 'u8[8192]{0}', space=vmem, size = 0x2000, scoped, tag = 'input window, operand 2, single buffered']
    #allocation10 [shape = 'u8[8192]{0}', space=vmem, size = 0x2000, scoped, tag = 'input window, operand 5, single buffered']
    #allocation11 [shape = 's32[1]{0}', space=sflag, size = 0x4, scoped, tag = 'scoped memory for tpu_custom_call.1']
    #allocation12 [shape = 'u8[8192]{0}', space=vmem, size = 0x2000, scoped, tag = 'input window, operand 6, single buffered']
    #allocation13 [shape = 'u8[1024]{0}', space=vmem, size = 0x400, scoped, tag = 'output window, operand 0, single buffered']
    %14 = vsyncpa [#allocation5], 0
    %15 = vsyncpa [#allocation8], 0
    %16 = vsyncpa [#allocation11], 0
    %17 = vsyncpa [#allocation6], 0
    // Predicated region
    $region2: #{tpu_custom_call.1} parent=1 // pred_check
      _
    $region3: #{tpu_custom_call.1} parent=1 // pred_check_branch
      %19 = sbr.rel (0) target = $region5
    $region4: #{tpu_custom_call.1} parent=1 // pred_region
      %s21 = ssub.s32 128, 128
      %22 = vsyncadd [#allocation5], %s21
      %s23 = sshll.u32 [#allocation4], 4
      %s24 = int_to_ptr.vmem [resolvable:$true] %s23
      %29 = dma.hbm_to_vmem [thread:$0]  %s0, 128, %s24, [#allocation5], 16, 16, 1
    $region5: #{tpu_custom_call.1} parent=1 // pred_fallthru
      _
    // Predicated region
    $region6: #{tpu_custom_call.1} parent=1 // pred_check
      _
    $region7: #{tpu_custom_call.1} parent=1 // pred_check_branch
      %31 = sbr.rel (0) target = $region9
    $region8: #{tpu_custom_call.1} parent=1 // pred_region
      %s33 = ssub.s32 128, 128
      %34 = vsyncadd [#allocation8], %s33
      %s35 = sshll.u32 [#allocation7], 4
      %s36 = int_to_ptr.vmem [resolvable:$true] %s35
      %41 = dma.hbm_to_vmem [thread:$0]  %s1, 128, %s36, [#allocation8], 64, 64, 4
    $region9: #{tpu_custom_call.1} parent=1 // pred_fallthru
      _
    // Predicated region
    $region10: #{tpu_custom_call.1} parent=1 // pred_check
      _
    $region11: #{tpu_custom_call.1} parent=1 // pred_check_branch
      %43 = sbr.rel (0) target = $region13
    $region12: #{tpu_custom_call.1} parent=1 // pred_region
      %s45 = ssub.s32 256, 256
      %46 = vsyncadd [#allocation8], %s45
      %s47 = sshll.u32 [#allocation9], 4
      %s48 = int_to_ptr.vmem [resolvable:$true] %s47
      %53 = dma.hbm_to_vmem [thread:$0]  %s2, 256, %s48, [#allocation8], 64, 64, 4
    $region13: #{tpu_custom_call.1} parent=1 // pred_fallthru
      _
    // Predicated region
    $region14: #{tpu_custom_call.1} parent=1 // pred_check
      _
    $region15: #{tpu_custom_call.1} parent=1 // pred_check_branch
      %55 = sbr.rel (0) target = $region17
    $region16: #{tpu_custom_call.1} parent=1 // pred_region
      _
    $region17: #{tpu_custom_call.1} parent=1 // pred_fallthru
      _
    // Predicated region
    $region18: #{tpu_custom_call.1} parent=1 // pred_check
      _
    $region19: #{tpu_custom_call.1} parent=1 // pred_check_branch
      %57 = sbr.rel (0) target = $region21
    $region20: #{tpu_custom_call.1} parent=1 // pred_region
      _
    $region21: #{tpu_custom_call.1} parent=1 // pred_fallthru
      _
    // Predicated region
    $region22: #{tpu_custom_call.1} parent=1 // pred_check
      _
    $region23: #{tpu_custom_call.1} parent=1 // pred_check_branch
      %59 = sbr.rel (0) target = $region25
    $region24: #{tpu_custom_call.1} parent=1 // pred_region
      %s61 = ssub.s32 256, 256
      %62 = vsyncadd [#allocation11], %s61
      %s63 = sshll.u32 [#allocation10], 4
      %s64 = int_to_ptr.vmem [resolvable:$true] %s63
      %69 = dma.hbm_to_vmem [thread:$0]  %s5, 256, %s64, [#allocation11], 64, 64, 4
    $region25: #{tpu_custom_call.1} parent=1 // pred_fallthru
      _
    // Predicated region
    $region26: #{tpu_custom_call.1} parent=1 // pred_check
      _
    $region27: #{tpu_custom_call.1} parent=1 // pred_check_branch
      %71 = sbr.rel (0) target = $region29
    $region28: #{tpu_custom_call.1} parent=1 // pred_region
      %s73 = ssub.s32 256, 256
      %74 = vsyncadd [#allocation11], %s73
      %s75 = sshll.u32 [#allocation12], 4
      %s76 = int_to_ptr.vmem [resolvable:$true] %s75
      %81 = dma.hbm_to_vmem [thread:$0]  %s6, 256, %s76, [#allocation11], 64, 64, 4
    $region29: #{tpu_custom_call.1} parent=1 // pred_fallthru
      _
    // Predicated region
    $region30: #{tpu_custom_call.1} parent=1 // pred_check
      _
    $region31: #{tpu_custom_call.1} parent=1 // pred_check_branch
      %83 = sbr.rel (0) target = $region33
    $region32: #{tpu_custom_call.1} parent=1 // pred_region
      _
    $region33: #{tpu_custom_call.1} parent=1 // pred_fallthru
      _
    // Predicated region
    $region34: #{tpu_custom_call.1} parent=1 // pred_check
      _
    $region35: #{tpu_custom_call.1} parent=1 // pred_check_branch
      %85 = sbr.rel (0) target = $region37
    $region36: #{tpu_custom_call.1} parent=1 // pred_region
      _
    $region37: #{tpu_custom_call.1} parent=1 // pred_fallthru
      _
    // Predicated region
    $region38: #{tpu_custom_call.1} parent=1 // pred_check
      _
    $region39: #{tpu_custom_call.1} parent=1 // pred_check_branch
      %87 = sbr.rel (0) target = $region41
    $region40: #{tpu_custom_call.1} parent=1 // pred_region
      %88 = dma.done [#allocation5], 128
    $region41: #{tpu_custom_call.1} parent=1 // pred_fallthru
      _
    // Predicated region
    $region42: #{tpu_custom_call.1} parent=1 // pred_check
      _
    $region43: #{tpu_custom_call.1} parent=1 // pred_check_branch
      %90 = sbr.rel (0) target = $region45
    $region44: #{tpu_custom_call.1} parent=1 // pred_region
      %91 = dma.done [#allocation8], 128
    $region45: #{tpu_custom_call.1} parent=1 // pred_fallthru
      _
    // Predicated region
    $region46: #{tpu_custom_call.1} parent=1 // pred_check
      _
    $region47: #{tpu_custom_call.1} parent=1 // pred_check_branch
      %93 = sbr.rel (0) target = $region49
    $region48: #{tpu_custom_call.1} parent=1 // pred_region
      %94 = dma.done [#allocation8], 256
    $region49: #{tpu_custom_call.1} parent=1 // pred_fallthru
      _
    // Predicated region
    $region50: #{tpu_custom_call.1} parent=1 // pred_check
      _
    $region51: #{tpu_custom_call.1} parent=1 // pred_check_branch
      %96 = sbr.rel (0) target = $region53
    $region52: #{tpu_custom_call.1} parent=1 // pred_region
      %97 = dma.done [#allocation11], 256
    $region53: #{tpu_custom_call.1} parent=1 // pred_fallthru
      _
    // Predicated region
    $region54: #{tpu_custom_call.1} parent=1 // pred_check
      _
    $region55: #{tpu_custom_call.1} parent=1 // pred_check_branch
      %99 = sbr.rel (0) target = $region57
    $region56: #{tpu_custom_call.1} parent=1 // pred_region
      %100 = dma.done [#allocation11], 256
    $region57: #{tpu_custom_call.1} parent=1 // pred_fallthru
      _
    %p102 = scmp.eq.s32.totalorder 0, 0
    // Predicated region
    $region58: #{tpu_custom_call.1} parent=1 // pred_check
      %p103 = pneg %p102
    $region59: #{tpu_custom_call.1} parent=1 // pred_check_branch
      %105 = sbr.rel (%p103) target = $region61
    $region60: #{tpu_custom_call.1} parent=1 // pred_region
      %vm106 = vcmask 254976
      %107 = vst.msk [vmem:[#allocation2] sm:$0x3] %vm106, 0.0
      %108 = vst.msk [vmem:[#allocation3] sm:$0x3] %vm106, 0.0
    $region61: #{tpu_custom_call.1} parent=1 // pred_fallthru
      _
    %v109 = vld [vmem:[#allocation7] sm:$0xf]
    %v110 = vld [vmem:[#allocation7 + $0x4] sm:$0xf]
    %v111 = vld [vmem:[#allocation9] sm:$0xf]
    %v112 = vld [vmem:[#allocation9 + $0x4] sm:$0xf]
    %v113 = vld [vmem:[#allocation9 + $0x8] sm:$0xf]
    %v114 = vld [vmem:[#allocation9 + $0xc] sm:$0xf]
    %v115 = vld [vmem:[#allocation10] sm:$0xf]
    %v116 = vld [vmem:[#allocation10 + $0x4] sm:$0xf]
    %v117 = vld [vmem:[#allocation10 + $0x8] sm:$0xf]
    %v118 = vld [vmem:[#allocation10 + $0xc] sm:$0xf]
    %v119 = vld [vmem:[#allocation12] sm:$0xf]
    %v120 = vld [vmem:[#allocation12 + $0x4] sm:$0xf]
    %v121 = vld [vmem:[#allocation12 + $0x8] sm:$0xf]
    %v122 = vld [vmem:[#allocation12 + $0xc] sm:$0xf]
    %v123 = vld [vmem:[%s3] sm:$0x1]
    %v125 = vlaneseq
    %v126 = vshrl.u32 %v125, 7
    %v127 = vsub.s32 0, %v126
    %v128 = vrot.slane %v123, %v127
    %v130 = vld [vmem:[%s7] sm:$0x1]
    %v132 = vlaneseq
    %v133 = vshrl.u32 %v132, 7
    %v134 = vsub.s32 0, %v133
    %v135 = vrot.slane %v130, %v134
    %v137 = vld [vmem:[%s4] sm:$0x1]
    %v139 = vlaneseq
    %v140 = vshrl.u32 %v139, 7
    %v141 = vsub.s32 0, %v140
    %v142 = vrot.slane %v137, %v141
    %v143 = vld [vmem:[%s8] sm:$0x1]
    %v145 = vlaneseq
    %v146 = vshrl.u32 %v145, 7
    %v147 = vsub.s32 0, %v146
    %v148 = vrot.slane %v143, %v147
    %v149 = vld [vmem:[#allocation2] sm:$0x3]
    %v150 = vld [vmem:[#allocation3] sm:$0x3]
    %v151 = vld [vmem:[#allocation4] sm:$0x1]
    %v154 = vunpack.c.l.b16 %v109
    %v155 = vunpack.c.l.b16 %v110
    %v156 = vpack.c.b16 %v155, %v154
    %vm158 = vcmask 130048
    %v160 = vsel %vm158, %v151, 0
    %162 = vmatprep.subr.bf16.mxu0 0
    %163 = vmatpush1.bf16.msra.mxu0 0
    %164 = vmatprep.subr.bf16.mxu0 0
    %165 = vmatpush1.bf16.msra.mxu0 0
    %166 = vmatprep.subr.bf16.mxu0 0
    %167 = vmatpush1.bf16.msra.mxu0 0
    %168 = vmatprep.subr.bf16.mxu0 0
    %169 = vmatpush1.bf16.msra.mxu0 0
    %170 = vmatprep.subr.bf16.mxu0 0
    %171 = vmatpush1.bf16.msra.mxu0 0
    %172 = vmatprep.subr.bf16.mxu0 0
    %173 = vmatpush1.bf16.msra.mxu0 0
    %174 = vmatprep.subr.bf16.mxu0 0
    %175 = vmatpush1.bf16.msra.mxu0 0
    %176 = vmatprep.subr.bf16.mxu0 0
    %177 = vmatpush1.bf16.msra.mxu0 %v156
    %178 = vmatprep.subr.bf16.mxu0 0
    %179 = vmatpush2.bf16.msra.mxu0 0
    %180 = vmatprep.subr.bf16.mxu0 0
    %181 = vmatpush2.bf16.msra.mxu0 0
    %182 = vmatprep.subr.bf16.mxu0 0
    %183 = vmatpush2.bf16.msra.mxu0 0
    %184 = vmatprep.subr.bf16.mxu0 0
    %185 = vmatpush2.bf16.msra.mxu0 0
    %186 = vmatprep.subr.bf16.mxu0 0
    %187 = vmatpush2.bf16.msra.mxu0 0
    %188 = vmatprep.subr.bf16.mxu0 0
    %189 = vmatpush2.bf16.msra.mxu0 0
    %190 = vmatprep.subr.bf16.mxu0 0
    %191 = vmatpush2.bf16.msra.mxu0 0
    %192 = vmatprep.subr.bf16.mxu0 0
    %193 = vmatpush2.bf16.msra.mxu0 0
    %194 = vmatprep.mubr.bf16.mxu0 0
    %195 = vmatmul.mubr.bf16.gmra.mxu0 %v160
    %v196 = vpop.f32.mrf.mxu0
    %v197 = vadd.f32 %v128, %v196
    %v198 = vpop.f32.mrf.mxu0
    %v199 = vpop.f32.mrf.mxu0
    %v200 = vpop.f32.mrf.mxu0
    %201 = vdwg.mxu0
    %v202 = vpack.c.bf16 %v149, %v149
    %v207 = vunpack.c.l.b16 %v111
    %v208 = vunpack.c.l.b16 %v112
    %v209 = vunpack.c.l.b16 %v113
    %v210 = vunpack.c.l.b16 %v114
    %v211 = vpack.c.b16 %v208, %v207
    %v212 = vpack.c.b16 %v210, %v209
    %vm215 = vcmask 261120
    %v217 = vsel %vm215, %v202, 0
    %219 = vmatprep.subr.bf16.mxu0 0
    %220 = vmatpush1.bf16.msra.mxu0 0
    %221 = vmatprep.subr.bf16.mxu0 0
    %222 = vmatpush1.bf16.msra.mxu0 0
    %223 = vmatprep.subr.bf16.mxu0 0
    %224 = vmatpush1.bf16.msra.mxu0 0
    %225 = vmatprep.subr.bf16.mxu0 0
    %226 = vmatpush1.bf16.msra.mxu0 0
    %227 = vmatprep.subr.bf16.mxu0 0
    %228 = vmatpush1.bf16.msra.mxu0 0
    %229 = vmatprep.subr.bf16.mxu0 0
    %230 = vmatpush1.bf16.msra.mxu0 0
    %231 = vmatprep.subr.bf16.mxu0 0
    %232 = vmatpush1.bf16.msra.mxu0 %v212
    %233 = vmatprep.subr.bf16.mxu0 0
    %234 = vmatpush1.bf16.msra.mxu0 %v211
    %235 = vmatprep.subr.bf16.mxu0 0
    %236 = vmatpush2.bf16.msra.mxu0 0
    %237 = vmatprep.subr.bf16.mxu0 0
    %238 = vmatpush2.bf16.msra.mxu0 0
    %239 = vmatprep.subr.bf16.mxu0 0
    %240 = vmatpush2.bf16.msra.mxu0 0
    %241 = vmatprep.subr.bf16.mxu0 0
    %242 = vmatpush2.bf16.msra.mxu0 0
    %243 = vmatprep.subr.bf16.mxu0 0
    %244 = vmatpush2.bf16.msra.mxu0 0
    %245 = vmatprep.subr.bf16.mxu0 0
    %246 = vmatpush2.bf16.msra.mxu0 0
    %247 = vmatprep.subr.bf16.mxu0 0
    %248 = vmatpush2.bf16.msra.mxu0 0
    %249 = vmatprep.subr.bf16.mxu0 0
    %250 = vmatpush2.bf16.msra.mxu0 0
    %251 = vmatprep.mubr.bf16.mxu0 0
    %252 = vmatmul.mubr.bf16.gmra.mxu0 %v217
    %v253 = vpop.f32.mrf.mxu0
    %v254 = vadd.f32 0.0, %v253
    %v255 = vpop.f32.mrf.mxu0
    %v256 = vpop.f32.mrf.mxu0
    %v257 = vpop.f32.mrf.mxu0
    %258 = vdwg.mxu0
    %v259 = vadd.f32 %v197, %v254
    %v260 = vxor.u32 %v259, 2147483648
    %v261 = vmul.f32 %v260, 1.442695
    %v262 = vpow.pop %v261
    %v263 = vadd.f32 %v262, 1.0
    %v264 = vrcp.pop %v263
    %v265 = vmul.f32 1.0, %v264
    %266 = vrot.lane.b32.xlu0 %v142, 64
    %v267 = vpop.permute.xlu0 %266
    %v269 = vadd.f32 %v254, %v267
    %271 = vrot.lane.b32.xlu0 %v269, 64
    %v272 = vpop.permute.xlu0 %271
    %v274 = vmul.f32 %v265, %v272
    %276 = vrot.lane.b32.xlu0 %v274, 64
    %v277 = vpop.permute.xlu0 %276
    %v279 = vadd.f32 %v197, %v277
    %v280 = vtanh.pop %v279
    %v281 = vsub.f32 1.0, %v265
    %283 = vrot.lane.b32.xlu0 %v280, 96
    %v284 = vpop.permute.xlu0 %283
    %v286 = vmul.f32 %v281, %v284
    %288 = vrot.lane.b32.xlu0 %v149, 32
    %v289 = vpop.permute.xlu0 %288
    %v291 = vmul.f32 %v265, %v289
    %v292 = vadd.f32 %v286, %v291
    %v293 = vpack.c.bf16 %v292, %v292
    %295 = vrot.lane.b32.xlu0 %v293, 96
    %v296 = vpop.permute.xlu0 %295
    %v301 = vunpack.c.l.b16 %v115
    %v302 = vunpack.c.l.b16 %v116
    %v303 = vunpack.c.l.b16 %v117
    %v304 = vunpack.c.l.b16 %v118
    %v305 = vpack.c.b16 %v302, %v301
    %v306 = vpack.c.b16 %v304, %v303
    %v310 = vsel %vm215, %v296, 0
    %312 = vmatprep.subr.bf16.mxu0 0
    %313 = vmatpush1.bf16.msra.mxu0 0
    %314 = vmatprep.subr.bf16.mxu0 0
    %315 = vmatpush1.bf16.msra.mxu0 0
    %316 = vmatprep.subr.bf16.mxu0 0
    %317 = vmatpush1.bf16.msra.mxu0 0
    %318 = vmatprep.subr.bf16.mxu0 0
    %319 = vmatpush1.bf16.msra.mxu0 0
    %320 = vmatprep.subr.bf16.mxu0 0
    %321 = vmatpush1.bf16.msra.mxu0 0
    %322 = vmatprep.subr.bf16.mxu0 0
    %323 = vmatpush1.bf16.msra.mxu0 0
    %324 = vmatprep.subr.bf16.mxu0 0
    %325 = vmatpush1.bf16.msra.mxu0 %v306
    %326 = vmatprep.subr.bf16.mxu0 0
    %327 = vmatpush1.bf16.msra.mxu0 %v305
    %328 = vmatprep.subr.bf16.mxu0 0
    %329 = vmatpush2.bf16.msra.mxu0 0
    %330 = vmatprep.subr.bf16.mxu0 0
    %331 = vmatpush2.bf16.msra.mxu0 0
    %332 = vmatprep.subr.bf16.mxu0 0
    %333 = vmatpush2.bf16.msra.mxu0 0
    %334 = vmatprep.subr.bf16.mxu0 0
    %335 = vmatpush2.bf16.msra.mxu0 0
    %336 = vmatprep.subr.bf16.mxu0 0
    %337 = vmatpush2.bf16.msra.mxu0 0
    %338 = vmatprep.subr.bf16.mxu0 0
    %339 = vmatpush2.bf16.msra.mxu0 0
    %340 = vmatprep.subr.bf16.mxu0 0
    %341 = vmatpush2.bf16.msra.mxu0 0
    %342 = vmatprep.subr.bf16.mxu0 0
    %343 = vmatpush2.bf16.msra.mxu0 0
    %344 = vmatprep.mubr.bf16.mxu0 0
    %345 = vmatmul.mubr.bf16.gmra.mxu0 %v310
    %v346 = vpop.f32.mrf.mxu0
    %v347 = vadd.f32 %v135, %v346
    %v348 = vpop.f32.mrf.mxu0
    %v349 = vpop.f32.mrf.mxu0
    %v350 = vpop.f32.mrf.mxu0
    %351 = vdwg.mxu0
    %v352 = vpack.c.bf16 %v150, %v150
    %v357 = vunpack.c.l.b16 %v119
    %v358 = vunpack.c.l.b16 %v120
    %v359 = vunpack.c.l.b16 %v121
    %v360 = vunpack.c.l.b16 %v122
    %v361 = vpack.c.b16 %v358, %v357
    %v362 = vpack.c.b16 %v360, %v359
    %v366 = vsel %vm215, %v352, 0
    %368 = vmatprep.subr.bf16.mxu0 0
    %369 = vmatpush1.bf16.msra.mxu0 0
    %370 = vmatprep.subr.bf16.mxu0 0
    %371 = vmatpush1.bf16.msra.mxu0 0
    %372 = vmatprep.subr.bf16.mxu0 0
    %373 = vmatpush1.bf16.msra.mxu0 0
    %374 = vmatprep.subr.bf16.mxu0 0
    %375 = vmatpush1.bf16.msra.mxu0 0
    %376 = vmatprep.subr.bf16.mxu0 0
    %377 = vmatpush1.bf16.msra.mxu0 0
    %378 = vmatprep.subr.bf16.mxu0 0
    %379 = vmatpush1.bf16.msra.mxu0 0
    %380 = vmatprep.subr.bf16.mxu0 0
    %381 = vmatpush1.bf16.msra.mxu0 %v362
    %382 = vmatprep.subr.bf16.mxu0 0
    %383 = vmatpush1.bf16.msra.mxu0 %v361
    %384 = vmatprep.subr.bf16.mxu0 0
    %385 = vmatpush2.bf16.msra.mxu0 0
    %386 = vmatprep.subr.bf16.mxu0 0
    %387 = vmatpush2.bf16.msra.mxu0 0
    %388 = vmatprep.subr.bf16.mxu0 0
    %389 = vmatpush2.bf16.msra.mxu0 0
    %390 = vmatprep.subr.bf16.mxu0 0
    %391 = vmatpush2.bf16.msra.mxu0 0
    %392 = vmatprep.subr.bf16.mxu0 0
    %393 = vmatpush2.bf16.msra.mxu0 0
    %394 = vmatprep.subr.bf16.mxu0 0
    %395 = vmatpush2.bf16.msra.mxu0 0
    %396 = vmatprep.subr.bf16.mxu0 0
    %397 = vmatpush2.bf16.msra.mxu0 0
    %398 = vmatprep.subr.bf16.mxu0 0
    %399 = vmatpush2.bf16.msra.mxu0 0
    %400 = vmatprep.mubr.bf16.mxu0 0
    %401 = vmatmul.mubr.bf16.gmra.mxu0 %v366
    %v402 = vpop.f32.mrf.mxu0
    %v403 = vadd.f32 0.0, %v402
    %v404 = vpop.f32.mrf.mxu0
    %v405 = vpop.f32.mrf.mxu0
    %v406 = vpop.f32.mrf.mxu0
    %407 = vdwg.mxu0
    %v408 = vadd.f32 %v347, %v403
    %v409 = vxor.u32 %v408, 2147483648
    %v410 = vmul.f32 %v409, 1.442695
    %v411 = vpow.pop %v410
    %v412 = vadd.f32 %v411, 1.0
    %v413 = vrcp.pop %v412
    %v414 = vmul.f32 1.0, %v413
    %415 = vrot.lane.b32.xlu0 %v148, 64
    %v416 = vpop.permute.xlu0 %415
    %v418 = vadd.f32 %v403, %v416
    %420 = vrot.lane.b32.xlu0 %v418, 64
    %v421 = vpop.permute.xlu0 %420
    %v423 = vmul.f32 %v414, %v421
    %425 = vrot.lane.b32.xlu0 %v423, 64
    %v426 = vpop.permute.xlu0 %425
    %v428 = vadd.f32 %v347, %v426
    %v429 = vtanh.pop %v428
    %v430 = vsub.f32 1.0, %v414
    %432 = vrot.lane.b32.xlu0 %v429, 96
    %v433 = vpop.permute.xlu0 %432
    %v435 = vmul.f32 %v430, %v433
    %437 = vrot.lane.b32.xlu0 %v150, 32
    %v438 = vpop.permute.xlu0 %437
    %v440 = vmul.f32 %v414, %v438
    %v441 = vadd.f32 %v435, %v440
    %s442 = scalar_lea.vmem [#allocation4], 1
    %v443 = vld [vmem:[%s442] sm:$0x1]
    %v445 = vsel %vm158, %v443, 0
    %447 = vmatprep.subr.bf16.mxu0 0
    %448 = vmatpush1.bf16.msra.mxu0 0
    %449 = vmatprep.subr.bf16.mxu0 0
    %450 = vmatpush1.bf16.msra.mxu0 0
    %451 = vmatprep.subr.bf16.mxu0 0
    %452 = vmatpush1.bf16.msra.mxu0 0
    %453 = vmatprep.subr.bf16.mxu0 0
    %454 = vmatpush1.bf16.msra.mxu0 0
    %455 = vmatprep.subr.bf16.mxu0 0
    %456 = vmatpush1.bf16.msra.mxu0 0
    %457 = vmatprep.subr.bf16.mxu0 0
    %458 = vmatpush1.bf16.msra.mxu0 0
    %459 = vmatprep.subr.bf16.mxu0 0
    %460 = vmatpush1.bf16.msra.mxu0 0
    %461 = vmatprep.subr.bf16.mxu0 0
    %462 = vmatpush1.bf16.msra.mxu0 %v156
    %463 = vmatprep.subr.bf16.mxu0 0
    %464 = vmatpush2.bf16.msra.mxu0 0
    %465 = vmatprep.subr.bf16.mxu0 0
    %466 = vmatpush2.bf16.msra.mxu0 0
    %467 = vmatprep.subr.bf16.mxu0 0
    %468 = vmatpush2.bf16.msra.mxu0 0
    %469 = vmatprep.subr.bf16.mxu0 0
    %470 = vmatpush2.bf16.msra.mxu0 0
    %471 = vmatprep.subr.bf16.mxu0 0
    %472 = vmatpush2.bf16.msra.mxu0 0
    %473 = vmatprep.subr.bf16.mxu0 0
    %474 = vmatpush2.bf16.msra.mxu0 0
    %475 = vmatprep.subr.bf16.mxu0 0
    %476 = vmatpush2.bf16.msra.mxu0 0
    %477 = vmatprep.subr.bf16.mxu0 0
    %478 = vmatpush2.bf16.msra.mxu0 0
    %479 = vmatprep.mubr.bf16.mxu0 0
    %480 = vmatmul.mubr.bf16.gmra.mxu0 %v445
    %v481 = vpop.f32.mrf.mxu0
    %v482 = vadd.f32 %v128, %v481
    %v483 = vpop.f32.mrf.mxu0
    %v484 = vpop.f32.mrf.mxu0
    %v485 = vpop.f32.mrf.mxu0
    %486 = vdwg.mxu0
    %487 = vmatprep.subr.bf16.mxu0 0
    %488 = vmatpush1.bf16.msra.mxu0 0
    %489 = vmatprep.subr.bf16.mxu0 0
    %490 = vmatpush1.bf16.msra.mxu0 0
    %491 = vmatprep.subr.bf16.mxu0 0
    %492 = vmatpush1.bf16.msra.mxu0 0
    %493 = vmatprep.subr.bf16.mxu0 0
    %494 = vmatpush1.bf16.msra.mxu0 0
    %495 = vmatprep.subr.bf16.mxu0 0
    %496 = vmatpush1.bf16.msra.mxu0 0
    %497 = vmatprep.subr.bf16.mxu0 0
    %498 = vmatpush1.bf16.msra.mxu0 0
    %499 = vmatprep.subr.bf16.mxu0 0
    %500 = vmatpush1.bf16.msra.mxu0 %v212
    %501 = vmatprep.subr.bf16.mxu0 0
    %502 = vmatpush1.bf16.msra.mxu0 %v211
    %503 = vmatprep.subr.bf16.mxu0 0
    %504 = vmatpush2.bf16.msra.mxu0 0
    %505 = vmatprep.subr.bf16.mxu0 0
    %506 = vmatpush2.bf16.msra.mxu0 0
    %507 = vmatprep.subr.bf16.mxu0 0
    %508 = vmatpush2.bf16.msra.mxu0 0
    %509 = vmatprep.subr.bf16.mxu0 0
    %510 = vmatpush2.bf16.msra.mxu0 0
    %511 = vmatprep.subr.bf16.mxu0 0
    %512 = vmatpush2.bf16.msra.mxu0 0
    %513 = vmatprep.subr.bf16.mxu0 0
    %514 = vmatpush2.bf16.msra.mxu0 0
    %515 = vmatprep.subr.bf16.mxu0 0
    %516 = vmatpush2.bf16.msra.mxu0 0
    %517 = vmatprep.subr.bf16.mxu0 0
    %518 = vmatpush2.bf16.msra.mxu0 0
    %519 = vmatprep.mubr.bf16.mxu0 0
    %520 = vmatmul.mubr.bf16.gmra.mxu0 %v310
    %v521 = vpop.f32.mrf.mxu0
    %v522 = vadd.f32 0.0, %v521
    %v523 = vpop.f32.mrf.mxu0
    %v524 = vpop.f32.mrf.mxu0
    %v525 = vpop.f32.mrf.mxu0
    %526 = vdwg.mxu0
    %v527 = vadd.f32 %v482, %v522
    %v528 = vxor.u32 %v527, 2147483648
    %v529 = vmul.f32 %v528, 1.442695
    %v530 = vpow.pop %v529
    %v531 = vadd.f32 %v530, 1.0
    %v532 = vrcp.pop %v531
    %v533 = vmul.f32 1.0, %v532
    %v534 = vadd.f32 %v522, %v267
    %536 = vrot.lane.b32.xlu0 %v534, 64
    %v537 = vpop.permute.xlu0 %536
    %v539 = vmul.f32 %v533, %v537
    %541 = vrot.lane.b32.xlu0 %v539, 64
    %v542 = vpop.permute.xlu0 %541
    %v544 = vadd.f32 %v482, %v542
    %v545 = vtanh.pop %v544
    %v546 = vsub.f32 1.0, %v533
    %548 = vrot.lane.b32.xlu0 %v545, 96
    %v549 = vpop.permute.xlu0 %548
    %v551 = vmul.f32 %v546, %v549
    %v552 = vmul.f32 %v533, %v292
    %v553 = vadd.f32 %v551, %v552
    %v554 = vpack.c.bf16 %v553, %v553
    %556 = vrot.lane.b32.xlu0 %v554, 96
    %v557 = vpop.permute.xlu0 %556
    %v559 = vsel %vm215, %v557, 0
    %561 = vmatprep.subr.bf16.mxu0 0
    %562 = vmatpush1.bf16.msra.mxu0 0
    %563 = vmatprep.subr.bf16.mxu0 0
    %564 = vmatpush1.bf16.msra.mxu0 0
    %565 = vmatprep.subr.bf16.mxu0 0
    %566 = vmatpush1.bf16.msra.mxu0 0
    %567 = vmatprep.subr.bf16.mxu0 0
    %568 = vmatpush1.bf16.msra.mxu0 0
    %569 = vmatprep.subr.bf16.mxu0 0
    %570 = vmatpush1.bf16.msra.mxu0 0
    %571 = vmatprep.subr.bf16.mxu0 0
    %572 = vmatpush1.bf16.msra.mxu0 0
    %573 = vmatprep.subr.bf16.mxu0 0
    %574 = vmatpush1.bf16.msra.mxu0 %v306
    %575 = vmatprep.subr.bf16.mxu0 0
    %576 = vmatpush1.bf16.msra.mxu0 %v305
    %577 = vmatprep.subr.bf16.mxu0 0
    %578 = vmatpush2.bf16.msra.mxu0 0
    %579 = vmatprep.subr.bf16.mxu0 0
    %580 = vmatpush2.bf16.msra.mxu0 0
    %581 = vmatprep.subr.bf16.mxu0 0
    %582 = vmatpush2.bf16.msra.mxu0 0
    %583 = vmatprep.subr.bf16.mxu0 0
    %584 = vmatpush2.bf16.msra.mxu0 0
    %585 = vmatprep.subr.bf16.mxu0 0
    %586 = vmatpush2.bf16.msra.mxu0 0
    %587 = vmatprep.subr.bf16.mxu0 0
    %588 = vmatpush2.bf16.msra.mxu0 0
    %589 = vmatprep.subr.bf16.mxu0 0
    %590 = vmatpush2.bf16.msra.mxu0 0
    %591 = vmatprep.subr.bf16.mxu0 0
    %592 = vmatpush2.bf16.msra.mxu0 0
    %593 = vmatprep.mubr.bf16.mxu0 0
    %594 = vmatmul.mubr.bf16.gmra.mxu0 %v559
    %v595 = vpop.f32.mrf.mxu0
    %v596 = vadd.f32 %v135, %v595
    %v597 = vpop.f32.mrf.mxu0
    %v598 = vpop.f32.mrf.mxu0
    %v599 = vpop.f32.mrf.mxu0
    %600 = vdwg.mxu0
    %v601 = vpack.c.bf16 %v441, %v441
    %603 = vrot.lane.b32.xlu0 %v601, 96
    %v604 = vpop.permute.xlu0 %603
    %v606 = vsel %vm215, %v604, 0
    %608 = vmatprep.subr.bf16.mxu0 0
    %609 = vmatpush1.bf16.msra.mxu0 0
    %610 = vmatprep.subr.bf16.mxu0 0
    %611 = vmatpush1.bf16.msra.mxu0 0
    %612 = vmatprep.subr.bf16.mxu0 0
    %613 = vmatpush1.bf16.msra.mxu0 0
    %614 = vmatprep.subr.bf16.mxu0 0
    %615 = vmatpush1.bf16.msra.mxu0 0
    %616 = vmatprep.subr.bf16.mxu0 0
    %617 = vmatpush1.bf16.msra.mxu0 0
    %618 = vmatprep.subr.bf16.mxu0 0
    %619 = vmatpush1.bf16.msra.mxu0 0
    %620 = vmatprep.subr.bf16.mxu0 0
    %621 = vmatpush1.bf16.msra.mxu0 %v362
    %622 = vmatprep.subr.bf16.mxu0 0
    %623 = vmatpush1.bf16.msra.mxu0 %v361
    %624 = vmatprep.subr.bf16.mxu0 0
    %625 = vmatpush2.bf16.msra.mxu0 0
    %626 = vmatprep.subr.bf16.mxu0 0
    %627 = vmatpush2.bf16.msra.mxu0 0
    %628 = vmatprep.subr.bf16.mxu0 0
    %629 = vmatpush2.bf16.msra.mxu0 0
    %630 = vmatprep.subr.bf16.mxu0 0
    %631 = vmatpush2.bf16.msra.mxu0 0
    %632 = vmatprep.subr.bf16.mxu0 0
    %633 = vmatpush2.bf16.msra.mxu0 0
    %634 = vmatprep.subr.bf16.mxu0 0
    %635 = vmatpush2.bf16.msra.mxu0 0
    %636 = vmatprep.subr.bf16.mxu0 0
    %637 = vmatpush2.bf16.msra.mxu0 0
    %638 = vmatprep.subr.bf16.mxu0 0
    %639 = vmatpush2.bf16.msra.mxu0 0
    %640 = vmatprep.mubr.bf16.mxu0 0
    %641 = vmatmul.mubr.bf16.gmra.mxu0 %v606
    %v642 = vpop.f32.mrf.mxu0
    %v643 = vadd.f32 0.0, %v642
    %v644 = vpop.f32.mrf.mxu0
    %v645 = vpop.f32.mrf.mxu0
    %v646 = vpop.f32.mrf.mxu0
    %647 = vdwg.mxu0
    %v648 = vadd.f32 %v596, %v643
    %v649 = vxor.u32 %v648, 2147483648
    %v650 = vmul.f32 %v649, 1.442695
    %v651 = vpow.pop %v650
    %v652 = vadd.f32 %v651, 1.0
    %v653 = vrcp.pop %v652
    %v654 = vmul.f32 1.0, %v653
    %v655 = vadd.f32 %v643, %v416
    %657 = vrot.lane.b32.xlu0 %v655, 64
    %v658 = vpop.permute.xlu0 %657
    %v660 = vmul.f32 %v654, %v658
    %662 = vrot.lane.b32.xlu0 %v660, 64
    %v663 = vpop.permute.xlu0 %662
    %v665 = vadd.f32 %v596, %v663
    %v666 = vtanh.pop %v665
    %v667 = vsub.f32 1.0, %v654
    %669 = vrot.lane.b32.xlu0 %v666, 96
    %v670 = vpop.permute.xlu0 %669
    %v672 = vmul.f32 %v667, %v670
    %v673 = vmul.f32 %v654, %v441
    %v674 = vadd.f32 %v672, %v673
    %s675 = scalar_lea.vmem [#allocation4], 2
    %v676 = vld [vmem:[%s675] sm:$0x1]
    %v678 = vsel %vm158, %v676, 0
    %680 = vmatprep.subr.bf16.mxu0 0
    %681 = vmatpush1.bf16.msra.mxu0 0
    %682 = vmatprep.subr.bf16.mxu0 0
    %683 = vmatpush1.bf16.msra.mxu0 0
    %684 = vmatprep.subr.bf16.mxu0 0
    %685 = vmatpush1.bf16.msra.mxu0 0
    %686 = vmatprep.subr.bf16.mxu0 0
    %687 = vmatpush1.bf16.msra.mxu0 0
    %688 = vmatprep.subr.bf16.mxu0 0
    %689 = vmatpush1.bf16.msra.mxu0 0
    %690 = vmatprep.subr.bf16.mxu0 0
    %691 = vmatpush1.bf16.msra.mxu0 0
    %692 = vmatprep.subr.bf16.mxu0 0
    %693 = vmatpush1.bf16.msra.mxu0 0
    %694 = vmatprep.subr.bf16.mxu0 0
    %695 = vmatpush1.bf16.msra.mxu0 %v156
    %696 = vmatprep.subr.bf16.mxu0 0
    %697 = vmatpush2.bf16.msra.mxu0 0
    %698 = vmatprep.subr.bf16.mxu0 0
    %699 = vmatpush2.bf16.msra.mxu0 0
    %700 = vmatprep.subr.bf16.mxu0 0
    %701 = vmatpush2.bf16.msra.mxu0 0
    %702 = vmatprep.subr.bf16.mxu0 0
    %703 = vmatpush2.bf16.msra.mxu0 0
    %704 = vmatprep.subr.bf16.mxu0 0
    %705 = vmatpush2.bf16.msra.mxu0 0
    %706 = vmatprep.subr.bf16.mxu0 0
    %707 = vmatpush2.bf16.msra.mxu0 0
    %708 = vmatprep.subr.bf16.mxu0 0
    %709 = vmatpush2.bf16.msra.mxu0 0
    %710 = vmatprep.subr.bf16.mxu0 0
    %711 = vmatpush2.bf16.msra.mxu0 0
    %712 = vmatprep.mubr.bf16.mxu0 0
    %713 = vmatmul.mubr.bf16.gmra.mxu0 %v678
    %v714 = vpop.f32.mrf.mxu0
    %v715 = vadd.f32 %v128, %v714
    %v716 = vpop.f32.mrf.mxu0
    %v717 = vpop.f32.mrf.mxu0
    %v718 = vpop.f32.mrf.mxu0
    %719 = vdwg.mxu0
    %720 = vmatprep.subr.bf16.mxu0 0
    %721 = vmatpush1.bf16.msra.mxu0 0
    %722 = vmatprep.subr.bf16.mxu0 0
    %723 = vmatpush1.bf16.msra.mxu0 0
    %724 = vmatprep.subr.bf16.mxu0 0
    %725 = vmatpush1.bf16.msra.mxu0 0
    %726 = vmatprep.subr.bf16.mxu0 0
    %727 = vmatpush1.bf16.msra.mxu0 0
    %728 = vmatprep.subr.bf16.mxu0 0
    %729 = vmatpush1.bf16.msra.mxu0 0
    %730 = vmatprep.subr.bf16.mxu0 0
    %731 = vmatpush1.bf16.msra.mxu0 0
    %732 = vmatprep.subr.bf16.mxu0 0
    %733 = vmatpush1.bf16.msra.mxu0 %v212
    %734 = vmatprep.subr.bf16.mxu0 0
    %735 = vmatpush1.bf16.msra.mxu0 %v211
    %736 = vmatprep.subr.bf16.mxu0 0
    %737 = vmatpush2.bf16.msra.mxu0 0
    %738 = vmatprep.subr.bf16.mxu0 0
    %739 = vmatpush2.bf16.msra.mxu0 0
    %740 = vmatprep.subr.bf16.mxu0 0
    %741 = vmatpush2.bf16.msra.mxu0 0
    %742 = vmatprep.subr.bf16.mxu0 0
    %743 = vmatpush2.bf16.msra.mxu0 0
    %744 = vmatprep.subr.bf16.mxu0 0
    %745 = vmatpush2.bf16.msra.mxu0 0
    %746 = vmatprep.subr.bf16.mxu0 0
    %747 = vmatpush2.bf16.msra.mxu0 0
    %748 = vmatprep.subr.bf16.mxu0 0
    %749 = vmatpush2.bf16.msra.mxu0 0
    %750 = vmatprep.subr.bf16.mxu0 0
    %751 = vmatpush2.bf16.msra.mxu0 0
    %752 = vmatprep.mubr.bf16.mxu0 0
    %753 = vmatmul.mubr.bf16.gmra.mxu0 %v559
    %v754 = vpop.f32.mrf.mxu0
    %v755 = vadd.f32 0.0, %v754
    %v756 = vpop.f32.mrf.mxu0
    %v757 = vpop.f32.mrf.mxu0
    %v758 = vpop.f32.mrf.mxu0
    %759 = vdwg.mxu0
    %v760 = vadd.f32 %v715, %v755
    %v761 = vxor.u32 %v760, 2147483648
    %v762 = vmul.f32 %v761, 1.442695
    %v763 = vpow.pop %v762
    %v764 = vadd.f32 %v763, 1.0
    %v765 = vrcp.pop %v764
    %v766 = vmul.f32 1.0, %v765
    %v767 = vadd.f32 %v755, %v267
    %769 = vrot.lane.b32.xlu0 %v767, 64
    %v770 = vpop.permute.xlu0 %769
    %v772 = vmul.f32 %v766, %v770
    %774 = vrot.lane.b32.xlu0 %v772, 64
    %v775 = vpop.permute.xlu0 %774
    %v777 = vadd.f32 %v715, %v775
    %v778 = vtanh.pop %v777
    %v779 = vsub.f32 1.0, %v766
    %781 = vrot.lane.b32.xlu0 %v778, 96
    %v782 = vpop.permute.xlu0 %781
    %v784 = vmul.f32 %v779, %v782
    %v785 = vmul.f32 %v766, %v553
    %v786 = vadd.f32 %v784, %v785
    %v787 = vpack.c.bf16 %v786, %v786
    %789 = vrot.lane.b32.xlu0 %v787, 96
    %v790 = vpop.permute.xlu0 %789
    %v792 = vsel %vm215, %v790, 0
    %794 = vmatprep.subr.bf16.mxu0 0
    %795 = vmatpush1.bf16.msra.mxu0 0
    %796 = vmatprep.subr.bf16.mxu0 0
    %797 = vmatpush1.bf16.msra.mxu0 0
    %798 = vmatprep.subr.bf16.mxu0 0
    %799 = vmatpush1.bf16.msra.mxu0 0
    %800 = vmatprep.subr.bf16.mxu0 0
    %801 = vmatpush1.bf16.msra.mxu0 0
    %802 = vmatprep.subr.bf16.mxu0 0
    %803 = vmatpush1.bf16.msra.mxu0 0
    %804 = vmatprep.subr.bf16.mxu0 0
    %805 = vmatpush1.bf16.msra.mxu0 0
    %806 = vmatprep.subr.bf16.mxu0 0
    %807 = vmatpush1.bf16.msra.mxu0 %v306
    %808 = vmatprep.subr.bf16.mxu0 0
    %809 = vmatpush1.bf16.msra.mxu0 %v305
    %810 = vmatprep.subr.bf16.mxu0 0
    %811 = vmatpush2.bf16.msra.mxu0 0
    %812 = vmatprep.subr.bf16.mxu0 0
    %813 = vmatpush2.bf16.msra.mxu0 0
    %814 = vmatprep.subr.bf16.mxu0 0
    %815 = vmatpush2.bf16.msra.mxu0 0
    %816 = vmatprep.subr.bf16.mxu0 0
    %817 = vmatpush2.bf16.msra.mxu0 0
    %818 = vmatprep.subr.bf16.mxu0 0
    %819 = vmatpush2.bf16.msra.mxu0 0
    %820 = vmatprep.subr.bf16.mxu0 0
    %821 = vmatpush2.bf16.msra.mxu0 0
    %822 = vmatprep.subr.bf16.mxu0 0
    %823 = vmatpush2.bf16.msra.mxu0 0
    %824 = vmatprep.subr.bf16.mxu0 0
    %825 = vmatpush2.bf16.msra.mxu0 0
    %826 = vmatprep.mubr.bf16.mxu0 0
    %827 = vmatmul.mubr.bf16.gmra.mxu0 %v792
    %v828 = vpop.f32.mrf.mxu0
    %v829 = vadd.f32 %v135, %v828
    %v830 = vpop.f32.mrf.mxu0
    %v831 = vpop.f32.mrf.mxu0
    %v832 = vpop.f32.mrf.mxu0
    %833 = vdwg.mxu0
    %v834 = vpack.c.bf16 %v674, %v674
    %836 = vrot.lane.b32.xlu0 %v834, 96
    %v837 = vpop.permute.xlu0 %836
    %v839 = vsel %vm215, %v837, 0
    %841 = vmatprep.subr.bf16.mxu0 0
    %842 = vmatpush1.bf16.msra.mxu0 0
    %843 = vmatprep.subr.bf16.mxu0 0
    %844 = vmatpush1.bf16.msra.mxu0 0
    %845 = vmatprep.subr.bf16.mxu0 0
    %846 = vmatpush1.bf16.msra.mxu0 0
    %847 = vmatprep.subr.bf16.mxu0 0
    %848 = vmatpush1.bf16.msra.mxu0 0
    %849 = vmatprep.subr.bf16.mxu0 0
    %850 = vmatpush1.bf16.msra.mxu0 0
    %851 = vmatprep.subr.bf16.mxu0 0
    %852 = vmatpush1.bf16.msra.mxu0 0
    %853 = vmatprep.subr.bf16.mxu0 0
    %854 = vmatpush1.bf16.msra.mxu0 %v362
    %855 = vmatprep.subr.bf16.mxu0 0
    %856 = vmatpush1.bf16.msra.mxu0 %v361
    %857 = vmatprep.subr.bf16.mxu0 0
    %858 = vmatpush2.bf16.msra.mxu0 0
    %859 = vmatprep.subr.bf16.mxu0 0
    %860 = vmatpush2.bf16.msra.mxu0 0
    %861 = vmatprep.subr.bf16.mxu0 0
    %862 = vmatpush2.bf16.msra.mxu0 0
    %863 = vmatprep.subr.bf16.mxu0 0
    %864 = vmatpush2.bf16.msra.mxu0 0
    %865 = vmatprep.subr.bf16.mxu0 0
    %866 = vmatpush2.bf16.msra.mxu0 0
    %867 = vmatprep.subr.bf16.mxu0 0
    %868 = vmatpush2.bf16.msra.mxu0 0
    %869 = vmatprep.subr.bf16.mxu0 0
    %870 = vmatpush2.bf16.msra.mxu0 0
    %871 = vmatprep.subr.bf16.mxu0 0
    %872 = vmatpush2.bf16.msra.mxu0 0
    %873 = vmatprep.mubr.bf16.mxu0 0
    %874 = vmatmul.mubr.bf16.gmra.mxu0 %v839
    %v875 = vpop.f32.mrf.mxu0
    %v876 = vadd.f32 0.0, %v875
    %v877 = vpop.f32.mrf.mxu0
    %v878 = vpop.f32.mrf.mxu0
    %v879 = vpop.f32.mrf.mxu0
    %880 = vdwg.mxu0
    %v881 = vadd.f32 %v829, %v876
    %v882 = vxor.u32 %v881, 2147483648
    %v883 = vmul.f32 %v882, 1.442695
    %v884 = vpow.pop %v883
    %v885 = vadd.f32 %v884, 1.0
    %v886 = vrcp.pop %v885
    %v887 = vmul.f32 1.0, %v886
    %v888 = vadd.f32 %v876, %v416
    %890 = vrot.lane.b32.xlu0 %v888, 64
    %v891 = vpop.permute.xlu0 %890
    %v893 = vmul.f32 %v887, %v891
    %895 = vrot.lane.b32.xlu0 %v893, 64
    %v896 = vpop.permute.xlu0 %895
    %v898 = vadd.f32 %v829, %v896
    %v899 = vtanh.pop %v898
    %v900 = vsub.f32 1.0, %v887
    %902 = vrot.lane.b32.xlu0 %v899, 96
    %v903 = vpop.permute.xlu0 %902
    %v905 = vmul.f32 %v900, %v903
    %v906 = vmul.f32 %v887, %v674
    %v907 = vadd.f32 %v905, %v906
    %s908 = scalar_lea.vmem [#allocation4], 3
    %v909 = vld [vmem:[%s908] sm:$0x1]
    %v911 = vsel %vm158, %v909, 0
    %913 = vmatprep.subr.bf16.mxu0 0
    %914 = vmatpush1.bf16.msra.mxu0 0
    %915 = vmatprep.subr.bf16.mxu0 0
    %916 = vmatpush1.bf16.msra.mxu0 0
    %917 = vmatprep.subr.bf16.mxu0 0
    %918 = vmatpush1.bf16.msra.mxu0 0
    %919 = vmatprep.subr.bf16.mxu0 0
    %920 = vmatpush1.bf16.msra.mxu0 0
    %921 = vmatprep.subr.bf16.mxu0 0
    %922 = vmatpush1.bf16.msra.mxu0 0
    %923 = vmatprep.subr.bf16.mxu0 0
    %924 = vmatpush1.bf16.msra.mxu0 0
    %925 = vmatprep.subr.bf16.mxu0 0
    %926 = vmatpush1.bf16.msra.mxu0 0
    %927 = vmatprep.subr.bf16.mxu0 0
    %928 = vmatpush1.bf16.msra.mxu0 %v156
    %929 = vmatprep.subr.bf16.mxu0 0
    %930 = vmatpush2.bf16.msra.mxu0 0
    %931 = vmatprep.subr.bf16.mxu0 0
    %932 = vmatpush2.bf16.msra.mxu0 0
    %933 = vmatprep.subr.bf16.mxu0 0
    %934 = vmatpush2.bf16.msra.mxu0 0
    %935 = vmatprep.subr.bf16.mxu0 0
    %936 = vmatpush2.bf16.msra.mxu0 0
    %937 = vmatprep.subr.bf16.mxu0 0
    %938 = vmatpush2.bf16.msra.mxu0 0
    %939 = vmatprep.subr.bf16.mxu0 0
    %940 = vmatpush2.bf16.msra.mxu0 0
    %941 = vmatprep.subr.bf16.mxu0 0
    %942 = vmatpush2.bf16.msra.mxu0 0
    %943 = vmatprep.subr.bf16.mxu0 0
    %944 = vmatpush2.bf16.msra.mxu0 0
    %945 = vmatprep.mubr.bf16.mxu0 0
    %946 = vmatmul.mubr.bf16.gmra.mxu0 %v911
    %v947 = vpop.f32.mrf.mxu0
    %v948 = vadd.f32 %v128, %v947
    %v949 = vpop.f32.mrf.mxu0
    %v950 = vpop.f32.mrf.mxu0
    %v951 = vpop.f32.mrf.mxu0
    %952 = vdwg.mxu0
    %953 = vmatprep.subr.bf16.mxu0 0
    %954 = vmatpush1.bf16.msra.mxu0 0
    %955 = vmatprep.subr.bf16.mxu0 0
    %956 = vmatpush1.bf16.msra.mxu0 0
    %957 = vmatprep.subr.bf16.mxu0 0
    %958 = vmatpush1.bf16.msra.mxu0 0
    %959 = vmatprep.subr.bf16.mxu0 0
    %960 = vmatpush1.bf16.msra.mxu0 0
    %961 = vmatprep.subr.bf16.mxu0 0
    %962 = vmatpush1.bf16.msra.mxu0 0
    %963 = vmatprep.subr.bf16.mxu0 0
    %964 = vmatpush1.bf16.msra.mxu0 0
    %965 = vmatprep.subr.bf16.mxu0 0
    %966 = vmatpush1.bf16.msra.mxu0 %v212
    %967 = vmatprep.subr.bf16.mxu0 0
    %968 = vmatpush1.bf16.msra.mxu0 %v211
    %969 = vmatprep.subr.bf16.mxu0 0
    %970 = vmatpush2.bf16.msra.mxu0 0
    %971 = vmatprep.subr.bf16.mxu0 0
    %972 = vmatpush2.bf16.msra.mxu0 0
    %973 = vmatprep.subr.bf16.mxu0 0
    %974 = vmatpush2.bf16.msra.mxu0 0
    %975 = vmatprep.subr.bf16.mxu0 0
    %976 = vmatpush2.bf16.msra.mxu0 0
    %977 = vmatprep.subr.bf16.mxu0 0
    %978 = vmatpush2.bf16.msra.mxu0 0
    %979 = vmatprep.subr.bf16.mxu0 0
    %980 = vmatpush2.bf16.msra.mxu0 0
    %981 = vmatprep.subr.bf16.mxu0 0
    %982 = vmatpush2.bf16.msra.mxu0 0
    %983 = vmatprep.subr.bf16.mxu0 0
    %984 = vmatpush2.bf16.msra.mxu0 0
    %985 = vmatprep.mubr.bf16.mxu0 0
    %986 = vmatmul.mubr.bf16.gmra.mxu0 %v792
    %v987 = vpop.f32.mrf.mxu0
    %v988 = vadd.f32 0.0, %v987
    %v989 = vpop.f32.mrf.mxu0
    %v990 = vpop.f32.mrf.mxu0
    %v991 = vpop.f32.mrf.mxu0
    %992 = vdwg.mxu0
    %v993 = vadd.f32 %v948, %v988
    %v994 = vxor.u32 %v993, 2147483648
    %v995 = vmul.f32 %v994, 1.442695
    %v996 = vpow.pop %v995
    %v997 = vadd.f32 %v996, 1.0
    %v998 = vrcp.pop %v997
    %v999 = vmul.f32 1.0, %v998
    %v1000 = vadd.f32 %v988, %v267
    %1002 = vrot.lane.b32.xlu0 %v1000, 64
    %v1003 = vpop.permute.xlu0 %1002
    %v1005 = vmul.f32 %v999, %v1003
    %1007 = vrot.lane.b32.xlu0 %v1005, 64
    %v1008 = vpop.permute.xlu0 %1007
    %v1010 = vadd.f32 %v948, %v1008
    %v1011 = vtanh.pop %v1010
    %v1012 = vsub.f32 1.0, %v999
    %1014 = vrot.lane.b32.xlu0 %v1011, 96
    %v1015 = vpop.permute.xlu0 %1014
    %v1017 = vmul.f32 %v1012, %v1015
    %v1018 = vmul.f32 %v999, %v786
    %v1019 = vadd.f32 %v1017, %v1018
    %v1020 = vpack.c.bf16 %v1019, %v1019
    %1022 = vrot.lane.b32.xlu0 %v1020, 96
    %v1023 = vpop.permute.xlu0 %1022
    %v1025 = vsel %vm215, %v1023, 0
    %1027 = vmatprep.subr.bf16.mxu0 0
    %1028 = vmatpush1.bf16.msra.mxu0 0
    %1029 = vmatprep.subr.bf16.mxu0 0
    %1030 = vmatpush1.bf16.msra.mxu0 0
    %1031 = vmatprep.subr.bf16.mxu0 0
    %1032 = vmatpush1.bf16.msra.mxu0 0
    %1033 = vmatprep.subr.bf16.mxu0 0
    %1034 = vmatpush1.bf16.msra.mxu0 0
    %1035 = vmatprep.subr.bf16.mxu0 0
    %1036 = vmatpush1.bf16.msra.mxu0 0
    %1037 = vmatprep.subr.bf16.mxu0 0
    %1038 = vmatpush1.bf16.msra.mxu0 0
    %1039 = vmatprep.subr.bf16.mxu0 0
    %1040 = vmatpush1.bf16.msra.mxu0 %v306
    %1041 = vmatprep.subr.bf16.mxu0 0
    %1042 = vmatpush1.bf16.msra.mxu0 %v305
    %1043 = vmatprep.subr.bf16.mxu0 0
    %1044 = vmatpush2.bf16.msra.mxu0 0
    %1045 = vmatprep.subr.bf16.mxu0 0
    %1046 = vmatpush2.bf16.msra.mxu0 0
    %1047 = vmatprep.subr.bf16.mxu0 0
    %1048 = vmatpush2.bf16.msra.mxu0 0
    %1049 = vmatprep.subr.bf16.mxu0 0
    %1050 = vmatpush2.bf16.msra.mxu0 0
    %1051 = vmatprep.subr.bf16.mxu0 0
    %1052 = vmatpush2.bf16.msra.mxu0 0
    %1053 = vmatprep.subr.bf16.mxu0 0
    %1054 = vmatpush2.bf16.msra.mxu0 0
    %1055 = vmatprep.subr.bf16.mxu0 0
    %1056 = vmatpush2.bf16.msra.mxu0 0
    %1057 = vmatprep.subr.bf16.mxu0 0
    %1058 = vmatpush2.bf16.msra.mxu0 0
    %1059 = vmatprep.mubr.bf16.mxu0 0
    %1060 = vmatmul.mubr.bf16.gmra.mxu0 %v1025
    %v1061 = vpop.f32.mrf.mxu0
    %v1062 = vadd.f32 %v135, %v1061
    %v1063 = vpop.f32.mrf.mxu0
    %v1064 = vpop.f32.mrf.mxu0
    %v1065 = vpop.f32.mrf.mxu0
    %1066 = vdwg.mxu0
    %v1067 = vpack.c.bf16 %v907, %v907
    %1069 = vrot.lane.b32.xlu0 %v1067, 96
    %v1070 = vpop.permute.xlu0 %1069
    %v1072 = vsel %vm215, %v1070, 0
    %1074 = vmatprep.subr.bf16.mxu0 0
    %1075 = vmatpush1.bf16.msra.mxu0 0
    %1076 = vmatprep.subr.bf16.mxu0 0
    %1077 = vmatpush1.bf16.msra.mxu0 0
    %1078 = vmatprep.subr.bf16.mxu0 0
    %1079 = vmatpush1.bf16.msra.mxu0 0
    %1080 = vmatprep.subr.bf16.mxu0 0
    %1081 = vmatpush1.bf16.msra.mxu0 0
    %1082 = vmatprep.subr.bf16.mxu0 0
    %1083 = vmatpush1.bf16.msra.mxu0 0
    %1084 = vmatprep.subr.bf16.mxu0 0
    %1085 = vmatpush1.bf16.msra.mxu0 0
    %1086 = vmatprep.subr.bf16.mxu0 0
    %1087 = vmatpush1.bf16.msra.mxu0 %v362
    %1088 = vmatprep.subr.bf16.mxu0 0
    %1089 = vmatpush1.bf16.msra.mxu0 %v361
    %1090 = vmatprep.subr.bf16.mxu0 0
    %1091 = vmatpush2.bf16.msra.mxu0 0
    %1092 = vmatprep.subr.bf16.mxu0 0
    %1093 = vmatpush2.bf16.msra.mxu0 0
    %1094 = vmatprep.subr.bf16.mxu0 0
    %1095 = vmatpush2.bf16.msra.mxu0 0
    %1096 = vmatprep.subr.bf16.mxu0 0
    %1097 = vmatpush2.bf16.msra.mxu0 0
    %1098 = vmatprep.subr.bf16.mxu0 0
    %1099 = vmatpush2.bf16.msra.mxu0 0
    %1100 = vmatprep.subr.bf16.mxu0 0
    %1101 = vmatpush2.bf16.msra.mxu0 0
    %1102 = vmatprep.subr.bf16.mxu0 0
    %1103 = vmatpush2.bf16.msra.mxu0 0
    %1104 = vmatprep.subr.bf16.mxu0 0
    %1105 = vmatpush2.bf16.msra.mxu0 0
    %1106 = vmatprep.mubr.bf16.mxu0 0
    %1107 = vmatmul.mubr.bf16.gmra.mxu0 %v1072
    %v1108 = vpop.f32.mrf.mxu0
    %v1109 = vadd.f32 0.0, %v1108
    %v1110 = vpop.f32.mrf.mxu0
    %v1111 = vpop.f32.mrf.mxu0
    %v1112 = vpop.f32.mrf.mxu0
    %1113 = vdwg.mxu0
    %v1114 = vadd.f32 %v1062, %v1109
    %v1115 = vxor.u32 %v1114, 2147483648
    %v1116 = vmul.f32 %v1115, 1.442695
    %v1117 = vpow.pop %v1116
    %v1118 = vadd.f32 %v1117, 1.0
    %v1119 = vrcp.pop %v1118
    %v1120 = vmul.f32 1.0, %v1119
    %v1121 = vadd.f32 %v1109, %v416
    %1123 = vrot.lane.b32.xlu0 %v1121, 64
    %v1124 = vpop.permute.xlu0 %1123
    %v1126 = vmul.f32 %v1120, %v1124
    %1128 = vrot.lane.b32.xlu0 %v1126, 64
    %v1129 = vpop.permute.xlu0 %1128
    %v1131 = vadd.f32 %v1062, %v1129
    %v1132 = vtanh.pop %v1131
    %v1133 = vsub.f32 1.0, %v1120
    %1135 = vrot.lane.b32.xlu0 %v1132, 96
    %v1136 = vpop.permute.xlu0 %1135
    %v1138 = vmul.f32 %v1133, %v1136
    %v1139 = vmul.f32 %v1120, %v907
    %v1140 = vadd.f32 %v1138, %v1139
    %s1141 = scalar_lea.vmem [#allocation4], 4
    %v1142 = vld [vmem:[%s1141] sm:$0x1]
    %v1144 = vsel %vm158, %v1142, 0
    %1146 = vmatprep.subr.bf16.mxu0 0
    %1147 = vmatpush1.bf16.msra.mxu0 0
    %1148 = vmatprep.subr.bf16.mxu0 0
    %1149 = vmatpush1.bf16.msra.mxu0 0
    %1150 = vmatprep.subr.bf16.mxu0 0
    %1151 = vmatpush1.bf16.msra.mxu0 0
    %1152 = vmatprep.subr.bf16.mxu0 0
    %1153 = vmatpush1.bf16.msra.mxu0 0
    %1154 = vmatprep.subr.bf16.mxu0 0
    %1155 = vmatpush1.bf16.msra.mxu0 0
    %1156 = vmatprep.subr.bf16.mxu0 0
    %1157 = vmatpush1.bf16.msra.mxu0 0
    %1158 = vmatprep.subr.bf16.mxu0 0
    %1159 = vmatpush1.bf16.msra.mxu0 0
    %1160 = vmatprep.subr.bf16.mxu0 0
    %1161 = vmatpush1.bf16.msra.mxu0 %v156
    %1162 = vmatprep.subr.bf16.mxu0 0
    %1163 = vmatpush2.bf16.msra.mxu0 0
    %1164 = vmatprep.subr.bf16.mxu0 0
    %1165 = vmatpush2.bf16.msra.mxu0 0
    %1166 = vmatprep.subr.bf16.mxu0 0
    %1167 = vmatpush2.bf16.msra.mxu0 0
    %1168 = vmatprep.subr.bf16.mxu0 0
    %1169 = vmatpush2.bf16.msra.mxu0 0
    %1170 = vmatprep.subr.bf16.mxu0 0
    %1171 = vmatpush2.bf16.msra.mxu0 0
    %1172 = vmatprep.subr.bf16.mxu0 0
    %1173 = vmatpush2.bf16.msra.mxu0 0
    %1174 = vmatprep.subr.bf16.mxu0 0
    %1175 = vmatpush2.bf16.msra.mxu0 0
    %1176 = vmatprep.subr.bf16.mxu0 0
    %1177 = vmatpush2.bf16.msra.mxu0 0
    %1178 = vmatprep.mubr.bf16.mxu0 0
    %1179 = vmatmul.mubr.bf16.gmra.mxu0 %v1144
    %v1180 = vpop.f32.mrf.mxu0
    %v1181 = vadd.f32 %v128, %v1180
    %v1182 = vpop.f32.mrf.mxu0
    %v1183 = vpop.f32.mrf.mxu0
    %v1184 = vpop.f32.mrf.mxu0
    %1185 = vdwg.mxu0
    %1186 = vmatprep.subr.bf16.mxu0 0
    %1187 = vmatpush1.bf16.msra.mxu0 0
    %1188 = vmatprep.subr.bf16.mxu0 0
    %1189 = vmatpush1.bf16.msra.mxu0 0
    %1190 = vmatprep.subr.bf16.mxu0 0
    %1191 = vmatpush1.bf16.msra.mxu0 0
    %1192 = vmatprep.subr.bf16.mxu0 0
    %1193 = vmatpush1.bf16.msra.mxu0 0
    %1194 = vmatprep.subr.bf16.mxu0 0
    %1195 = vmatpush1.bf16.msra.mxu0 0
    %1196 = vmatprep.subr.bf16.mxu0 0
    %1197 = vmatpush1.bf16.msra.mxu0 0
    %1198 = vmatprep.subr.bf16.mxu0 0
    %1199 = vmatpush1.bf16.msra.mxu0 %v212
    %1200 = vmatprep.subr.bf16.mxu0 0
    %1201 = vmatpush1.bf16.msra.mxu0 %v211
    %1202 = vmatprep.subr.bf16.mxu0 0
    %1203 = vmatpush2.bf16.msra.mxu0 0
    %1204 = vmatprep.subr.bf16.mxu0 0
    %1205 = vmatpush2.bf16.msra.mxu0 0
    %1206 = vmatprep.subr.bf16.mxu0 0
    %1207 = vmatpush2.bf16.msra.mxu0 0
    %1208 = vmatprep.subr.bf16.mxu0 0
    %1209 = vmatpush2.bf16.msra.mxu0 0
    %1210 = vmatprep.subr.bf16.mxu0 0
    %1211 = vmatpush2.bf16.msra.mxu0 0
    %1212 = vmatprep.subr.bf16.mxu0 0
    %1213 = vmatpush2.bf16.msra.mxu0 0
    %1214 = vmatprep.subr.bf16.mxu0 0
    %1215 = vmatpush2.bf16.msra.mxu0 0
    %1216 = vmatprep.subr.bf16.mxu0 0
    %1217 = vmatpush2.bf16.msra.mxu0 0
    %1218 = vmatprep.mubr.bf16.mxu0 0
    %1219 = vmatmul.mubr.bf16.gmra.mxu0 %v1025
    %v1220 = vpop.f32.mrf.mxu0
    %v1221 = vadd.f32 0.0, %v1220
    %v1222 = vpop.f32.mrf.mxu0
    %v1223 = vpop.f32.mrf.mxu0
    %v1224 = vpop.f32.mrf.mxu0
    %1225 = vdwg.mxu0
    %v1226 = vadd.f32 %v1181, %v1221
    %v1227 = vxor.u32 %v1226, 2147483648
    %v1228 = vmul.f32 %v1227, 1.442695
    %v1229 = vpow.pop %v1228
    %v1230 = vadd.f32 %v1229, 1.0
    %v1231 = vrcp.pop %v1230
    %v1232 = vmul.f32 1.0, %v1231
    %v1233 = vadd.f32 %v1221, %v267
    %1235 = vrot.lane.b32.xlu0 %v1233, 64
    %v1236 = vpop.permute.xlu0 %1235
    %v1238 = vmul.f32 %v1232, %v1236
    %1240 = vrot.lane.b32.xlu0 %v1238, 64
    %v1241 = vpop.permute.xlu0 %1240
    %v1243 = vadd.f32 %v1181, %v1241
    %v1244 = vtanh.pop %v1243
    %v1245 = vsub.f32 1.0, %v1232
    %1247 = vrot.lane.b32.xlu0 %v1244, 96
    %v1248 = vpop.permute.xlu0 %1247
    %v1250 = vmul.f32 %v1245, %v1248
    %v1251 = vmul.f32 %v1232, %v1019
    %v1252 = vadd.f32 %v1250, %v1251
    %v1253 = vpack.c.bf16 %v1252, %v1252
    %1255 = vrot.lane.b32.xlu0 %v1253, 96
    %v1256 = vpop.permute.xlu0 %1255
    %v1258 = vsel %vm215, %v1256, 0
    %1260 = vmatprep.subr.bf16.mxu0 0
    %1261 = vmatpush1.bf16.msra.mxu0 0
    %1262 = vmatprep.subr.bf16.mxu0 0
    %1263 = vmatpush1.bf16.msra.mxu0 0
    %1264 = vmatprep.subr.bf16.mxu0 0
    %1265 = vmatpush1.bf16.msra.mxu0 0
    %1266 = vmatprep.subr.bf16.mxu0 0
    %1267 = vmatpush1.bf16.msra.mxu0 0
    %1268 = vmatprep.subr.bf16.mxu0 0
    %1269 = vmatpush1.bf16.msra.mxu0 0
    %1270 = vmatprep.subr.bf16.mxu0 0
    %1271 = vmatpush1.bf16.msra.mxu0 0
    %1272 = vmatprep.subr.bf16.mxu0 0
    %1273 = vmatpush1.bf16.msra.mxu0 %v306
    %1274 = vmatprep.subr.bf16.mxu0 0
    %1275 = vmatpush1.bf16.msra.mxu0 %v305
    %1276 = vmatprep.subr.bf16.mxu0 0
    %1277 = vmatpush2.bf16.msra.mxu0 0
    %1278 = vmatprep.subr.bf16.mxu0 0
    %1279 = vmatpush2.bf16.msra.mxu0 0
    %1280 = vmatprep.subr.bf16.mxu0 0
    %1281 = vmatpush2.bf16.msra.mxu0 0
    %1282 = vmatprep.subr.bf16.mxu0 0
    %1283 = vmatpush2.bf16.msra.mxu0 0
    %1284 = vmatprep.subr.bf16.mxu0 0
    %1285 = vmatpush2.bf16.msra.mxu0 0
    %1286 = vmatprep.subr.bf16.mxu0 0
    %1287 = vmatpush2.bf16.msra.mxu0 0
    %1288 = vmatprep.subr.bf16.mxu0 0
    %1289 = vmatpush2.bf16.msra.mxu0 0
    %1290 = vmatprep.subr.bf16.mxu0 0
    %1291 = vmatpush2.bf16.msra.mxu0 0
    %1292 = vmatprep.mubr.bf16.mxu0 0
    %1293 = vmatmul.mubr.bf16.gmra.mxu0 %v1258
    %v1294 = vpop.f32.mrf.mxu0
    %v1295 = vadd.f32 %v135, %v1294
    %v1296 = vpop.f32.mrf.mxu0
    %v1297 = vpop.f32.mrf.mxu0
    %v1298 = vpop.f32.mrf.mxu0
    %1299 = vdwg.mxu0
    %v1300 = vpack.c.bf16 %v1140, %v1140
    %1302 = vrot.lane.b32.xlu0 %v1300, 96
    %v1303 = vpop.permute.xlu0 %1302
    %v1305 = vsel %vm215, %v1303, 0
    %1307 = vmatprep.subr.bf16.mxu0 0
    %1308 = vmatpush1.bf16.msra.mxu0 0
    %1309 = vmatprep.subr.bf16.mxu0 0
    %1310 = vmatpush1.bf16.msra.mxu0 0
    %1311 = vmatprep.subr.bf16.mxu0 0
    %1312 = vmatpush1.bf16.msra.mxu0 0
    %1313 = vmatprep.subr.bf16.mxu0 0
    %1314 = vmatpush1.bf16.msra.mxu0 0
    %1315 = vmatprep.subr.bf16.mxu0 0
    %1316 = vmatpush1.bf16.msra.mxu0 0
    %1317 = vmatprep.subr.bf16.mxu0 0
    %1318 = vmatpush1.bf16.msra.mxu0 0
    %1319 = vmatprep.subr.bf16.mxu0 0
    %1320 = vmatpush1.bf16.msra.mxu0 %v362
    %1321 = vmatprep.subr.bf16.mxu0 0
    %1322 = vmatpush1.bf16.msra.mxu0 %v361
    %1323 = vmatprep.subr.bf16.mxu0 0
    %1324 = vmatpush2.bf16.msra.mxu0 0
    %1325 = vmatprep.subr.bf16.mxu0 0
    %1326 = vmatpush2.bf16.msra.mxu0 0
    %1327 = vmatprep.subr.bf16.mxu0 0
    %1328 = vmatpush2.bf16.msra.mxu0 0
    %1329 = vmatprep.subr.bf16.mxu0 0
    %1330 = vmatpush2.bf16.msra.mxu0 0
    %1331 = vmatprep.subr.bf16.mxu0 0
    %1332 = vmatpush2.bf16.msra.mxu0 0
    %1333 = vmatprep.subr.bf16.mxu0 0
    %1334 = vmatpush2.bf16.msra.mxu0 0
    %1335 = vmatprep.subr.bf16.mxu0 0
    %1336 = vmatpush2.bf16.msra.mxu0 0
    %1337 = vmatprep.subr.bf16.mxu0 0
    %1338 = vmatpush2.bf16.msra.mxu0 0
    %1339 = vmatprep.mubr.bf16.mxu0 0
    %1340 = vmatmul.mubr.bf16.gmra.mxu0 %v1305
    %v1341 = vpop.f32.mrf.mxu0
    %v1342 = vadd.f32 0.0, %v1341
    %v1343 = vpop.f32.mrf.mxu0
    %v1344 = vpop.f32.mrf.mxu0
    %v1345 = vpop.f32.mrf.mxu0
    %1346 = vdwg.mxu0
    %v1347 = vadd.f32 %v1295, %v1342
    %v1348 = vxor.u32 %v1347, 2147483648
    %v1349 = vmul.f32 %v1348, 1.442695
    %v1350 = vpow.pop %v1349
    %v1351 = vadd.f32 %v1350, 1.0
    %v1352 = vrcp.pop %v1351
    %v1353 = vmul.f32 1.0, %v1352
    %v1354 = vadd.f32 %v1342, %v416
    %1356 = vrot.lane.b32.xlu0 %v1354, 64
    %v1357 = vpop.permute.xlu0 %1356
    %v1359 = vmul.f32 %v1353, %v1357
    %1361 = vrot.lane.b32.xlu0 %v1359, 64
    %v1362 = vpop.permute.xlu0 %1361
    %v1364 = vadd.f32 %v1295, %v1362
    %v1365 = vtanh.pop %v1364
    %v1366 = vsub.f32 1.0, %v1353
    %1368 = vrot.lane.b32.xlu0 %v1365, 96
    %v1369 = vpop.permute.xlu0 %1368
    %v1371 = vmul.f32 %v1366, %v1369
    %v1372 = vmul.f32 %v1353, %v1140
    %v1373 = vadd.f32 %v1371, %v1372
    %s1374 = scalar_lea.vmem [#allocation4], 5
    %v1375 = vld [vmem:[%s1374] sm:$0x1]
    %v1377 = vsel %vm158, %v1375, 0
    %1379 = vmatprep.subr.bf16.mxu0 0
    %1380 = vmatpush1.bf16.msra.mxu0 0
    %1381 = vmatprep.subr.bf16.mxu0 0
    %1382 = vmatpush1.bf16.msra.mxu0 0
    %1383 = vmatprep.subr.bf16.mxu0 0
    %1384 = vmatpush1.bf16.msra.mxu0 0
    %1385 = vmatprep.subr.bf16.mxu0 0
    %1386 = vmatpush1.bf16.msra.mxu0 0
    %1387 = vmatprep.subr.bf16.mxu0 0
    %1388 = vmatpush1.bf16.msra.mxu0 0
    %1389 = vmatprep.subr.bf16.mxu0 0
    %1390 = vmatpush1.bf16.msra.mxu0 0
    %1391 = vmatprep.subr.bf16.mxu0 0
    %1392 = vmatpush1.bf16.msra.mxu0 0
    %1393 = vmatprep.subr.bf16.mxu0 0
    %1394 = vmatpush1.bf16.msra.mxu0 %v156
    %1395 = vmatprep.subr.bf16.mxu0 0
    %1396 = vmatpush2.bf16.msra.mxu0 0
    %1397 = vmatprep.subr.bf16.mxu0 0
    %1398 = vmatpush2.bf16.msra.mxu0 0
    %1399 = vmatprep.subr.bf16.mxu0 0
    %1400 = vmatpush2.bf16.msra.mxu0 0
    %1401 = vmatprep.subr.bf16.mxu0 0
    %1402 = vmatpush2.bf16.msra.mxu0 0
    %1403 = vmatprep.subr.bf16.mxu0 0
    %1404 = vmatpush2.bf16.msra.mxu0 0
    %1405 = vmatprep.subr.bf16.mxu0 0
    %1406 = vmatpush2.bf16.msra.mxu0 0
    %1407 = vmatprep.subr.bf16.mxu0 0
    %1408 = vmatpush2.bf16.msra.mxu0 0
    %1409 = vmatprep.subr.bf16.mxu0 0
    %1410 = vmatpush2.bf16.msra.mxu0 0
    %1411 = vmatprep.mubr.bf16.mxu0 0
    %1412 = vmatmul.mubr.bf16.gmra.mxu0 %v1377
    %v1413 = vpop.f32.mrf.mxu0
    %v1414 = vadd.f32 %v128, %v1413
    %v1415 = vpop.f32.mrf.mxu0
    %v1416 = vpop.f32.mrf.mxu0
    %v1417 = vpop.f32.mrf.mxu0
    %1418 = vdwg.mxu0
    %1419 = vmatprep.subr.bf16.mxu0 0
    %1420 = vmatpush1.bf16.msra.mxu0 0
    %1421 = vmatprep.subr.bf16.mxu0 0
    %1422 = vmatpush1.bf16.msra.mxu0 0
    %1423 = vmatprep.subr.bf16.mxu0 0
    %1424 = vmatpush1.bf16.msra.mxu0 0
    %1425 = vmatprep.subr.bf16.mxu0 0
    %1426 = vmatpush1.bf16.msra.mxu0 0
    %1427 = vmatprep.subr.bf16.mxu0 0
    %1428 = vmatpush1.bf16.msra.mxu0 0
    %1429 = vmatprep.subr.bf16.mxu0 0
    %1430 = vmatpush1.bf16.msra.mxu0 0
    %1431 = vmatprep.subr.bf16.mxu0 0
    %1432 = vmatpush1.bf16.msra.mxu0 %v212
    %1433 = vmatprep.subr.bf16.mxu0 0
    %1434 = vmatpush1.bf16.msra.mxu0 %v211
    %1435 = vmatprep.subr.bf16.mxu0 0
    %1436 = vmatpush2.bf16.msra.mxu0 0
    %1437 = vmatprep.subr.bf16.mxu0 0
    %1438 = vmatpush2.bf16.msra.mxu0 0
    %1439 = vmatprep.subr.bf16.mxu0 0
    %1440 = vmatpush2.bf16.msra.mxu0 0
    %1441 = vmatprep.subr.bf16.mxu0 0
    %1442 = vmatpush2.bf16.msra.mxu0 0
    %1443 = vmatprep.subr.bf16.mxu0 0
    %1444 = vmatpush2.bf16.msra.mxu0 0
    %1445 = vmatprep.subr.bf16.mxu0 0
    %1446 = vmatpush2.bf16.msra.mxu0 0
    %1447 = vmatprep.subr.bf16.mxu0 0
    %1448 = vmatpush2.bf16.msra.mxu0 0
    %1449 = vmatprep.subr.bf16.mxu0 0
    %1450 = vmatpush2.bf16.msra.mxu0 0
    %1451 = vmatprep.mubr.bf16.mxu0 0
    %1452 = vmatmul.mubr.bf16.gmra.mxu0 %v1258
    %v1453 = vpop.f32.mrf.mxu0
    %v1454 = vadd.f32 0.0, %v1453
    %v1455 = vpop.f32.mrf.mxu0
    %v1456 = vpop.f32.mrf.mxu0
    %v1457 = vpop.f32.mrf.mxu0
    %1458 = vdwg.mxu0
    %v1459 = vadd.f32 %v1414, %v1454
    %v1460 = vxor.u32 %v1459, 2147483648
    %v1461 = vmul.f32 %v1460, 1.442695
    %v1462 = vpow.pop %v1461
    %v1463 = vadd.f32 %v1462, 1.0
    %v1464 = vrcp.pop %v1463
    %v1465 = vmul.f32 1.0, %v1464
    %v1466 = vadd.f32 %v1454, %v267
    %1468 = vrot.lane.b32.xlu0 %v1466, 64
    %v1469 = vpop.permute.xlu0 %1468
    %v1471 = vmul.f32 %v1465, %v1469
    %1473 = vrot.lane.b32.xlu0 %v1471, 64
    %v1474 = vpop.permute.xlu0 %1473
    %v1476 = vadd.f32 %v1414, %v1474
    %v1477 = vtanh.pop %v1476
    %v1478 = vsub.f32 1.0, %v1465
    %1480 = vrot.lane.b32.xlu0 %v1477, 96
    %v1481 = vpop.permute.xlu0 %1480
    %v1483 = vmul.f32 %v1478, %v1481
    %v1484 = vmul.f32 %v1465, %v1252
    %v1485 = vadd.f32 %v1483, %v1484
    %v1486 = vpack.c.bf16 %v1485, %v1485
    %1488 = vrot.lane.b32.xlu0 %v1486, 96
    %v1489 = vpop.permute.xlu0 %1488
    %v1491 = vsel %vm215, %v1489, 0
    %1493 = vmatprep.subr.bf16.mxu0 0
    %1494 = vmatpush1.bf16.msra.mxu0 0
    %1495 = vmatprep.subr.bf16.mxu0 0
    %1496 = vmatpush1.bf16.msra.mxu0 0
    %1497 = vmatprep.subr.bf16.mxu0 0
    %1498 = vmatpush1.bf16.msra.mxu0 0
    %1499 = vmatprep.subr.bf16.mxu0 0
    %1500 = vmatpush1.bf16.msra.mxu0 0
    %1501 = vmatprep.subr.bf16.mxu0 0
    %1502 = vmatpush1.bf16.msra.mxu0 0
    %1503 = vmatprep.subr.bf16.mxu0 0
    %1504 = vmatpush1.bf16.msra.mxu0 0
    %1505 = vmatprep.subr.bf16.mxu0 0
    %1506 = vmatpush1.bf16.msra.mxu0 %v306
    %1507 = vmatprep.subr.bf16.mxu0 0
    %1508 = vmatpush1.bf16.msra.mxu0 %v305
    %1509 = vmatprep.subr.bf16.mxu0 0
    %1510 = vmatpush2.bf16.msra.mxu0 0
    %1511 = vmatprep.subr.bf16.mxu0 0
    %1512 = vmatpush2.bf16.msra.mxu0 0
    %1513 = vmatprep.subr.bf16.mxu0 0
    %1514 = vmatpush2.bf16.msra.mxu0 0
    %1515 = vmatprep.subr.bf16.mxu0 0
    %1516 = vmatpush2.bf16.msra.mxu0 0
    %1517 = vmatprep.subr.bf16.mxu0 0
    %1518 = vmatpush2.bf16.msra.mxu0 0
    %1519 = vmatprep.subr.bf16.mxu0 0
    %1520 = vmatpush2.bf16.msra.mxu0 0
    %1521 = vmatprep.subr.bf16.mxu0 0
    %1522 = vmatpush2.bf16.msra.mxu0 0
    %1523 = vmatprep.subr.bf16.mxu0 0
    %1524 = vmatpush2.bf16.msra.mxu0 0
    %1525 = vmatprep.mubr.bf16.mxu0 0
    %1526 = vmatmul.mubr.bf16.gmra.mxu0 %v1491
    %v1527 = vpop.f32.mrf.mxu0
    %v1528 = vadd.f32 %v135, %v1527
    %v1529 = vpop.f32.mrf.mxu0
    %v1530 = vpop.f32.mrf.mxu0
    %v1531 = vpop.f32.mrf.mxu0
    %1532 = vdwg.mxu0
    %v1533 = vpack.c.bf16 %v1373, %v1373
    %1535 = vrot.lane.b32.xlu0 %v1533, 96
    %v1536 = vpop.permute.xlu0 %1535
    %v1538 = vsel %vm215, %v1536, 0
    %1540 = vmatprep.subr.bf16.mxu0 0
    %1541 = vmatpush1.bf16.msra.mxu0 0
    %1542 = vmatprep.subr.bf16.mxu0 0
    %1543 = vmatpush1.bf16.msra.mxu0 0
    %1544 = vmatprep.subr.bf16.mxu0 0
    %1545 = vmatpush1.bf16.msra.mxu0 0
    %1546 = vmatprep.subr.bf16.mxu0 0
    %1547 = vmatpush1.bf16.msra.mxu0 0
    %1548 = vmatprep.subr.bf16.mxu0 0
    %1549 = vmatpush1.bf16.msra.mxu0 0
    %1550 = vmatprep.subr.bf16.mxu0 0
    %1551 = vmatpush1.bf16.msra.mxu0 0
    %1552 = vmatprep.subr.bf16.mxu0 0
    %1553 = vmatpush1.bf16.msra.mxu0 %v362
    %1554 = vmatprep.subr.bf16.mxu0 0
    %1555 = vmatpush1.bf16.msra.mxu0 %v361
    %1556 = vmatprep.subr.bf16.mxu0 0
    %1557 = vmatpush2.bf16.msra.mxu0 0
    %1558 = vmatprep.subr.bf16.mxu0 0
    %1559 = vmatpush2.bf16.msra.mxu0 0
    %1560 = vmatprep.subr.bf16.mxu0 0
    %1561 = vmatpush2.bf16.msra.mxu0 0
    %1562 = vmatprep.subr.bf16.mxu0 0
    %1563 = vmatpush2.bf16.msra.mxu0 0
    %1564 = vmatprep.subr.bf16.mxu0 0
    %1565 = vmatpush2.bf16.msra.mxu0 0
    %1566 = vmatprep.subr.bf16.mxu0 0
    %1567 = vmatpush2.bf16.msra.mxu0 0
    %1568 = vmatprep.subr.bf16.mxu0 0
    %1569 = vmatpush2.bf16.msra.mxu0 0
    %1570 = vmatprep.subr.bf16.mxu0 0
    %1571 = vmatpush2.bf16.msra.mxu0 0
    %1572 = vmatprep.mubr.bf16.mxu0 0
    %1573 = vmatmul.mubr.bf16.gmra.mxu0 %v1538
    %v1574 = vpop.f32.mrf.mxu0
    %v1575 = vadd.f32 0.0, %v1574
    %v1576 = vpop.f32.mrf.mxu0
    %v1577 = vpop.f32.mrf.mxu0
    %v1578 = vpop.f32.mrf.mxu0
    %1579 = vdwg.mxu0
    %v1580 = vadd.f32 %v1528, %v1575
    %v1581 = vxor.u32 %v1580, 2147483648
    %v1582 = vmul.f32 %v1581, 1.442695
    %v1583 = vpow.pop %v1582
    %v1584 = vadd.f32 %v1583, 1.0
    %v1585 = vrcp.pop %v1584
    %v1586 = vmul.f32 1.0, %v1585
    %v1587 = vadd.f32 %v1575, %v416
    %1589 = vrot.lane.b32.xlu0 %v1587, 64
    %v1590 = vpop.permute.xlu0 %1589
    %v1592 = vmul.f32 %v1586, %v1590
    %1594 = vrot.lane.b32.xlu0 %v1592, 64
    %v1595 = vpop.permute.xlu0 %1594
    %v1597 = vadd.f32 %v1528, %v1595
    %v1598 = vtanh.pop %v1597
    %v1599 = vsub.f32 1.0, %v1586
    %1601 = vrot.lane.b32.xlu0 %v1598, 96
    %v1602 = vpop.permute.xlu0 %1601
    %v1604 = vmul.f32 %v1599, %v1602
    %v1605 = vmul.f32 %v1586, %v1373
    %v1606 = vadd.f32 %v1604, %v1605
    %s1607 = scalar_lea.vmem [#allocation4], 6
    %v1608 = vld [vmem:[%s1607] sm:$0x1]
    %v1610 = vsel %vm158, %v1608, 0
    %1612 = vmatprep.subr.bf16.mxu0 0
    %1613 = vmatpush1.bf16.msra.mxu0 0
    %1614 = vmatprep.subr.bf16.mxu0 0
    %1615 = vmatpush1.bf16.msra.mxu0 0
    %1616 = vmatprep.subr.bf16.mxu0 0
    %1617 = vmatpush1.bf16.msra.mxu0 0
    %1618 = vmatprep.subr.bf16.mxu0 0
    %1619 = vmatpush1.bf16.msra.mxu0 0
    %1620 = vmatprep.subr.bf16.mxu0 0
    %1621 = vmatpush1.bf16.msra.mxu0 0
    %1622 = vmatprep.subr.bf16.mxu0 0
    %1623 = vmatpush1.bf16.msra.mxu0 0
    %1624 = vmatprep.subr.bf16.mxu0 0
    %1625 = vmatpush1.bf16.msra.mxu0 0
    %1626 = vmatprep.subr.bf16.mxu0 0
    %1627 = vmatpush1.bf16.msra.mxu0 %v156
    %1628 = vmatprep.subr.bf16.mxu0 0
    %1629 = vmatpush2.bf16.msra.mxu0 0
    %1630 = vmatprep.subr.bf16.mxu0 0
    %1631 = vmatpush2.bf16.msra.mxu0 0
    %1632 = vmatprep.subr.bf16.mxu0 0
    %1633 = vmatpush2.bf16.msra.mxu0 0
    %1634 = vmatprep.subr.bf16.mxu0 0
    %1635 = vmatpush2.bf16.msra.mxu0 0
    %1636 = vmatprep.subr.bf16.mxu0 0
    %1637 = vmatpush2.bf16.msra.mxu0 0
    %1638 = vmatprep.subr.bf16.mxu0 0
    %1639 = vmatpush2.bf16.msra.mxu0 0
    %1640 = vmatprep.subr.bf16.mxu0 0
    %1641 = vmatpush2.bf16.msra.mxu0 0
    %1642 = vmatprep.subr.bf16.mxu0 0
    %1643 = vmatpush2.bf16.msra.mxu0 0
    %1644 = vmatprep.mubr.bf16.mxu0 0
    %1645 = vmatmul.mubr.bf16.gmra.mxu0 %v1610
    %v1646 = vpop.f32.mrf.mxu0
    %v1647 = vadd.f32 %v128, %v1646
    %v1648 = vpop.f32.mrf.mxu0
    %v1649 = vpop.f32.mrf.mxu0
    %v1650 = vpop.f32.mrf.mxu0
    %1651 = vdwg.mxu0
    %1652 = vmatprep.subr.bf16.mxu0 0
    %1653 = vmatpush1.bf16.msra.mxu0 0
    %1654 = vmatprep.subr.bf16.mxu0 0
    %1655 = vmatpush1.bf16.msra.mxu0 0
    %1656 = vmatprep.subr.bf16.mxu0 0
    %1657 = vmatpush1.bf16.msra.mxu0 0
    %1658 = vmatprep.subr.bf16.mxu0 0
    %1659 = vmatpush1.bf16.msra.mxu0 0
    %1660 = vmatprep.subr.bf16.mxu0 0
    %1661 = vmatpush1.bf16.msra.mxu0 0
    %1662 = vmatprep.subr.bf16.mxu0 0
    %1663 = vmatpush1.bf16.msra.mxu0 0
    %1664 = vmatprep.subr.bf16.mxu0 0
    %1665 = vmatpush1.bf16.msra.mxu0 %v212
    %1666 = vmatprep.subr.bf16.mxu0 0
    %1667 = vmatpush1.bf16.msra.mxu0 %v211
    %1668 = vmatprep.subr.bf16.mxu0 0
    %1669 = vmatpush2.bf16.msra.mxu0 0
    %1670 = vmatprep.subr.bf16.mxu0 0
    %1671 = vmatpush2.bf16.msra.mxu0 0
    %1672 = vmatprep.subr.bf16.mxu0 0
    %1673 = vmatpush2.bf16.msra.mxu0 0
    %1674 = vmatprep.subr.bf16.mxu0 0
    %1675 = vmatpush2.bf16.msra.mxu0 0
    %1676 = vmatprep.subr.bf16.mxu0 0
    %1677 = vmatpush2.bf16.msra.mxu0 0
    %1678 = vmatprep.subr.bf16.mxu0 0
    %1679 = vmatpush2.bf16.msra.mxu0 0
    %1680 = vmatprep.subr.bf16.mxu0 0
    %1681 = vmatpush2.bf16.msra.mxu0 0
    %1682 = vmatprep.subr.bf16.mxu0 0
    %1683 = vmatpush2.bf16.msra.mxu0 0
    %1684 = vmatprep.mubr.bf16.mxu0 0
    %1685 = vmatmul.mubr.bf16.gmra.mxu0 %v1491
    %v1686 = vpop.f32.mrf.mxu0
    %v1687 = vadd.f32 0.0, %v1686
    %v1688 = vpop.f32.mrf.mxu0
    %v1689 = vpop.f32.mrf.mxu0
    %v1690 = vpop.f32.mrf.mxu0
    %1691 = vdwg.mxu0
    %v1692 = vadd.f32 %v1647, %v1687
    %v1693 = vxor.u32 %v1692, 2147483648
    %v1694 = vmul.f32 %v1693, 1.442695
    %v1695 = vpow.pop %v1694
    %v1696 = vadd.f32 %v1695, 1.0
    %v1697 = vrcp.pop %v1696
    %v1698 = vmul.f32 1.0, %v1697
    %v1699 = vadd.f32 %v1687, %v267
    %1701 = vrot.lane.b32.xlu0 %v1699, 64
    %v1702 = vpop.permute.xlu0 %1701
    %v1704 = vmul.f32 %v1698, %v1702
    %1706 = vrot.lane.b32.xlu0 %v1704, 64
    %v1707 = vpop.permute.xlu0 %1706
    %v1709 = vadd.f32 %v1647, %v1707
    %v1710 = vtanh.pop %v1709
    %v1711 = vsub.f32 1.0, %v1698
    %1713 = vrot.lane.b32.xlu0 %v1710, 96
    %v1714 = vpop.permute.xlu0 %1713
    %v1716 = vmul.f32 %v1711, %v1714
    %v1717 = vmul.f32 %v1698, %v1485
    %v1718 = vadd.f32 %v1716, %v1717
    %v1719 = vpack.c.bf16 %v1718, %v1718
    %1721 = vrot.lane.b32.xlu0 %v1719, 96
    %v1722 = vpop.permute.xlu0 %1721
    %v1724 = vsel %vm215, %v1722, 0
    %1726 = vmatprep.subr.bf16.mxu0 0
    %1727 = vmatpush1.bf16.msra.mxu0 0
    %1728 = vmatprep.subr.bf16.mxu0 0
    %1729 = vmatpush1.bf16.msra.mxu0 0
    %1730 = vmatprep.subr.bf16.mxu0 0
    %1731 = vmatpush1.bf16.msra.mxu0 0
    %1732 = vmatprep.subr.bf16.mxu0 0
    %1733 = vmatpush1.bf16.msra.mxu0 0
    %1734 = vmatprep.subr.bf16.mxu0 0
    %1735 = vmatpush1.bf16.msra.mxu0 0
    %1736 = vmatprep.subr.bf16.mxu0 0
    %1737 = vmatpush1.bf16.msra.mxu0 0
    %1738 = vmatprep.subr.bf16.mxu0 0
    %1739 = vmatpush1.bf16.msra.mxu0 %v306
    %1740 = vmatprep.subr.bf16.mxu0 0
    %1741 = vmatpush1.bf16.msra.mxu0 %v305
    %1742 = vmatprep.subr.bf16.mxu0 0
    %1743 = vmatpush2.bf16.msra.mxu0 0
    %1744 = vmatprep.subr.bf16.mxu0 0
    %1745 = vmatpush2.bf16.msra.mxu0 0
    %1746 = vmatprep.subr.bf16.mxu0 0
    %1747 = vmatpush2.bf16.msra.mxu0 0
    %1748 = vmatprep.subr.bf16.mxu0 0
    %1749 = vmatpush2.bf16.msra.mxu0 0
    %1750 = vmatprep.subr.bf16.mxu0 0
    %1751 = vmatpush2.bf16.msra.mxu0 0
    %1752 = vmatprep.subr.bf16.mxu0 0
    %1753 = vmatpush2.bf16.msra.mxu0 0
    %1754 = vmatprep.subr.bf16.mxu0 0
    %1755 = vmatpush2.bf16.msra.mxu0 0
    %1756 = vmatprep.subr.bf16.mxu0 0
    %1757 = vmatpush2.bf16.msra.mxu0 0
    %1758 = vmatprep.mubr.bf16.mxu0 0
    %1759 = vmatmul.mubr.bf16.gmra.mxu0 %v1724
    %v1760 = vpop.f32.mrf.mxu0
    %v1761 = vadd.f32 %v135, %v1760
    %v1762 = vpop.f32.mrf.mxu0
    %v1763 = vpop.f32.mrf.mxu0
    %v1764 = vpop.f32.mrf.mxu0
    %1765 = vdwg.mxu0
    %v1766 = vpack.c.bf16 %v1606, %v1606
    %1768 = vrot.lane.b32.xlu0 %v1766, 96
    %v1769 = vpop.permute.xlu0 %1768
    %v1771 = vsel %vm215, %v1769, 0
    %1773 = vmatprep.subr.bf16.mxu0 0
    %1774 = vmatpush1.bf16.msra.mxu0 0
    %1775 = vmatprep.subr.bf16.mxu0 0
    %1776 = vmatpush1.bf16.msra.mxu0 0
    %1777 = vmatprep.subr.bf16.mxu0 0
    %1778 = vmatpush1.bf16.msra.mxu0 0
    %1779 = vmatprep.subr.bf16.mxu0 0
    %1780 = vmatpush1.bf16.msra.mxu0 0
    %1781 = vmatprep.subr.bf16.mxu0 0
    %1782 = vmatpush1.bf16.msra.mxu0 0
    %1783 = vmatprep.subr.bf16.mxu0 0
    %1784 = vmatpush1.bf16.msra.mxu0 0
    %1785 = vmatprep.subr.bf16.mxu0 0
    %1786 = vmatpush1.bf16.msra.mxu0 %v362
    %1787 = vmatprep.subr.bf16.mxu0 0
    %1788 = vmatpush1.bf16.msra.mxu0 %v361
    %1789 = vmatprep.subr.bf16.mxu0 0
    %1790 = vmatpush2.bf16.msra.mxu0 0
    %1791 = vmatprep.subr.bf16.mxu0 0
    %1792 = vmatpush2.bf16.msra.mxu0 0
    %1793 = vmatprep.subr.bf16.mxu0 0
    %1794 = vmatpush2.bf16.msra.mxu0 0
    %1795 = vmatprep.subr.bf16.mxu0 0
    %1796 = vmatpush2.bf16.msra.mxu0 0
    %1797 = vmatprep.subr.bf16.mxu0 0
    %1798 = vmatpush2.bf16.msra.mxu0 0
    %1799 = vmatprep.subr.bf16.mxu0 0
    %1800 = vmatpush2.bf16.msra.mxu0 0
    %1801 = vmatprep.subr.bf16.mxu0 0
    %1802 = vmatpush2.bf16.msra.mxu0 0
    %1803 = vmatprep.subr.bf16.mxu0 0
    %1804 = vmatpush2.bf16.msra.mxu0 0
    %1805 = vmatprep.mubr.bf16.mxu0 0
    %1806 = vmatmul.mubr.bf16.gmra.mxu0 %v1771
    %v1807 = vpop.f32.mrf.mxu0
    %v1808 = vadd.f32 0.0, %v1807
    %v1809 = vpop.f32.mrf.mxu0
    %v1810 = vpop.f32.mrf.mxu0
    %v1811 = vpop.f32.mrf.mxu0
    %1812 = vdwg.mxu0
    %v1813 = vadd.f32 %v1761, %v1808
    %v1814 = vxor.u32 %v1813, 2147483648
    %v1815 = vmul.f32 %v1814, 1.442695
    %v1816 = vpow.pop %v1815
    %v1817 = vadd.f32 %v1816, 1.0
    %v1818 = vrcp.pop %v1817
    %v1819 = vmul.f32 1.0, %v1818
    %v1820 = vadd.f32 %v1808, %v416
    %1822 = vrot.lane.b32.xlu0 %v1820, 64
    %v1823 = vpop.permute.xlu0 %1822
    %v1825 = vmul.f32 %v1819, %v1823
    %1827 = vrot.lane.b32.xlu0 %v1825, 64
    %v1828 = vpop.permute.xlu0 %1827
    %v1830 = vadd.f32 %v1761, %v1828
    %v1831 = vtanh.pop %v1830
    %v1832 = vsub.f32 1.0, %v1819
    %1834 = vrot.lane.b32.xlu0 %v1831, 96
    %v1835 = vpop.permute.xlu0 %1834
    %v1837 = vmul.f32 %v1832, %v1835
    %v1838 = vmul.f32 %v1819, %v1606
    %v1839 = vadd.f32 %v1837, %v1838
    %s1840 = scalar_lea.vmem [#allocation4], 7
    %v1841 = vld [vmem:[%s1840] sm:$0x1]
    %v1843 = vsel %vm158, %v1841, 0
    %1845 = vmatprep.subr.bf16.mxu0 0
    %1846 = vmatpush1.bf16.msra.mxu0 0
    %1847 = vmatprep.subr.bf16.mxu0 0
    %1848 = vmatpush1.bf16.msra.mxu0 0
    %1849 = vmatprep.subr.bf16.mxu0 0
    %1850 = vmatpush1.bf16.msra.mxu0 0
    %1851 = vmatprep.subr.bf16.mxu0 0
    %1852 = vmatpush1.bf16.msra.mxu0 0
    %1853 = vmatprep.subr.bf16.mxu0 0
    %1854 = vmatpush1.bf16.msra.mxu0 0
    %1855 = vmatprep.subr.bf16.mxu0 0
    %1856 = vmatpush1.bf16.msra.mxu0 0
    %1857 = vmatprep.subr.bf16.mxu0 0
    %1858 = vmatpush1.bf16.msra.mxu0 0
    %1859 = vmatprep.subr.bf16.mxu0 0
    %1860 = vmatpush1.bf16.msra.mxu0 %v156
    %1861 = vmatprep.subr.bf16.mxu0 0
    %1862 = vmatpush2.bf16.msra.mxu0 0
    %1863 = vmatprep.subr.bf16.mxu0 0
    %1864 = vmatpush2.bf16.msra.mxu0 0
    %1865 = vmatprep.subr.bf16.mxu0 0
    %1866 = vmatpush2.bf16.msra.mxu0 0
    %1867 = vmatprep.subr.bf16.mxu0 0
    %1868 = vmatpush2.bf16.msra.mxu0 0
    %1869 = vmatprep.subr.bf16.mxu0 0
    %1870 = vmatpush2.bf16.msra.mxu0 0
    %1871 = vmatprep.subr.bf16.mxu0 0
    %1872 = vmatpush2.bf16.msra.mxu0 0
    %1873 = vmatprep.subr.bf16.mxu0 0
    %1874 = vmatpush2.bf16.msra.mxu0 0
    %1875 = vmatprep.subr.bf16.mxu0 0
    %1876 = vmatpush2.bf16.msra.mxu0 0
    %1877 = vmatprep.mubr.bf16.mxu0 0
    %1878 = vmatmul.mubr.bf16.gmra.mxu0 %v1843
    %v1879 = vpop.f32.mrf.mxu0
    %v1880 = vadd.f32 %v128, %v1879
    %v1881 = vpop.f32.mrf.mxu0
    %v1882 = vpop.f32.mrf.mxu0
    %v1883 = vpop.f32.mrf.mxu0
    %1884 = vdwg.mxu0
    %1885 = vmatprep.subr.bf16.mxu0 0
    %1886 = vmatpush1.bf16.msra.mxu0 0
    %1887 = vmatprep.subr.bf16.mxu0 0
    %1888 = vmatpush1.bf16.msra.mxu0 0
    %1889 = vmatprep.subr.bf16.mxu0 0
    %1890 = vmatpush1.bf16.msra.mxu0 0
    %1891 = vmatprep.subr.bf16.mxu0 0
    %1892 = vmatpush1.bf16.msra.mxu0 0
    %1893 = vmatprep.subr.bf16.mxu0 0
    %1894 = vmatpush1.bf16.msra.mxu0 0
    %1895 = vmatprep.subr.bf16.mxu0 0
    %1896 = vmatpush1.bf16.msra.mxu0 0
    %1897 = vmatprep.subr.bf16.mxu0 0
    %1898 = vmatpush1.bf16.msra.mxu0 %v212
    %1899 = vmatprep.subr.bf16.mxu0 0
    %1900 = vmatpush1.bf16.msra.mxu0 %v211
    %1901 = vmatprep.subr.bf16.mxu0 0
    %1902 = vmatpush2.bf16.msra.mxu0 0
    %1903 = vmatprep.subr.bf16.mxu0 0
    %1904 = vmatpush2.bf16.msra.mxu0 0
    %1905 = vmatprep.subr.bf16.mxu0 0
    %1906 = vmatpush2.bf16.msra.mxu0 0
    %1907 = vmatprep.subr.bf16.mxu0 0
    %1908 = vmatpush2.bf16.msra.mxu0 0
    %1909 = vmatprep.subr.bf16.mxu0 0
    %1910 = vmatpush2.bf16.msra.mxu0 0
    %1911 = vmatprep.subr.bf16.mxu0 0
    %1912 = vmatpush2.bf16.msra.mxu0 0
    %1913 = vmatprep.subr.bf16.mxu0 0
    %1914 = vmatpush2.bf16.msra.mxu0 0
    %1915 = vmatprep.subr.bf16.mxu0 0
    %1916 = vmatpush2.bf16.msra.mxu0 0
    %1917 = vmatprep.mubr.bf16.mxu0 0
    %1918 = vmatmul.mubr.bf16.gmra.mxu0 %v1724
    %v1919 = vpop.f32.mrf.mxu0
    %v1920 = vadd.f32 0.0, %v1919
    %v1921 = vpop.f32.mrf.mxu0
    %v1922 = vpop.f32.mrf.mxu0
    %v1923 = vpop.f32.mrf.mxu0
    %1924 = vdwg.mxu0
    %v1925 = vadd.f32 %v1880, %v1920
    %v1926 = vxor.u32 %v1925, 2147483648
    %v1927 = vmul.f32 %v1926, 1.442695
    %v1928 = vpow.pop %v1927
    %v1929 = vadd.f32 %v1928, 1.0
    %v1930 = vrcp.pop %v1929
    %v1931 = vmul.f32 1.0, %v1930
    %v1932 = vadd.f32 %v1920, %v267
    %1934 = vrot.lane.b32.xlu0 %v1932, 64
    %v1935 = vpop.permute.xlu0 %1934
    %v1937 = vmul.f32 %v1931, %v1935
    %1939 = vrot.lane.b32.xlu0 %v1937, 64
    %v1940 = vpop.permute.xlu0 %1939
    %v1942 = vadd.f32 %v1880, %v1940
    %v1943 = vtanh.pop %v1942
    %v1944 = vsub.f32 1.0, %v1931
    %1946 = vrot.lane.b32.xlu0 %v1943, 96
    %v1947 = vpop.permute.xlu0 %1946
    %v1949 = vmul.f32 %v1944, %v1947
    %v1950 = vmul.f32 %v1931, %v1718
    %v1951 = vadd.f32 %v1949, %v1950
    %v1952 = vpack.c.bf16 %v1951, %v1951
    %1954 = vrot.lane.b32.xlu0 %v1952, 96
    %v1955 = vpop.permute.xlu0 %1954
    %v1957 = vsel %vm215, %v1955, 0
    %1959 = vmatprep.subr.bf16.mxu0 0
    %1960 = vmatpush1.bf16.msra.mxu0 0
    %1961 = vmatprep.subr.bf16.mxu0 0
    %1962 = vmatpush1.bf16.msra.mxu0 0
    %1963 = vmatprep.subr.bf16.mxu0 0
    %1964 = vmatpush1.bf16.msra.mxu0 0
    %1965 = vmatprep.subr.bf16.mxu0 0
    %1966 = vmatpush1.bf16.msra.mxu0 0
    %1967 = vmatprep.subr.bf16.mxu0 0
    %1968 = vmatpush1.bf16.msra.mxu0 0
    %1969 = vmatprep.subr.bf16.mxu0 0
    %1970 = vmatpush1.bf16.msra.mxu0 0
    %1971 = vmatprep.subr.bf16.mxu0 0
    %1972 = vmatpush1.bf16.msra.mxu0 %v306
    %1973 = vmatprep.subr.bf16.mxu0 0
    %1974 = vmatpush1.bf16.msra.mxu0 %v305
    %1975 = vmatprep.subr.bf16.mxu0 0
    %1976 = vmatpush2.bf16.msra.mxu0 0
    %1977 = vmatprep.subr.bf16.mxu0 0
    %1978 = vmatpush2.bf16.msra.mxu0 0
    %1979 = vmatprep.subr.bf16.mxu0 0
    %1980 = vmatpush2.bf16.msra.mxu0 0
    %1981 = vmatprep.subr.bf16.mxu0 0
    %1982 = vmatpush2.bf16.msra.mxu0 0
    %1983 = vmatprep.subr.bf16.mxu0 0
    %1984 = vmatpush2.bf16.msra.mxu0 0
    %1985 = vmatprep.subr.bf16.mxu0 0
    %1986 = vmatpush2.bf16.msra.mxu0 0
    %1987 = vmatprep.subr.bf16.mxu0 0
    %1988 = vmatpush2.bf16.msra.mxu0 0
    %1989 = vmatprep.subr.bf16.mxu0 0
    %1990 = vmatpush2.bf16.msra.mxu0 0
    %1991 = vmatprep.mubr.bf16.mxu0 0
    %1992 = vmatmul.mubr.bf16.gmra.mxu0 %v1957
    %v1993 = vpop.f32.mrf.mxu0
    %v1994 = vadd.f32 %v135, %v1993
    %v1995 = vpop.f32.mrf.mxu0
    %v1996 = vpop.f32.mrf.mxu0
    %v1997 = vpop.f32.mrf.mxu0
    %1998 = vdwg.mxu0
    %v1999 = vpack.c.bf16 %v1839, %v1839
    %2001 = vrot.lane.b32.xlu0 %v1999, 96
    %v2002 = vpop.permute.xlu0 %2001
    %v2004 = vsel %vm215, %v2002, 0
    %2006 = vmatprep.subr.bf16.mxu0 0
    %2007 = vmatpush1.bf16.msra.mxu0 0
    %2008 = vmatprep.subr.bf16.mxu0 0
    %2009 = vmatpush1.bf16.msra.mxu0 0
    %2010 = vmatprep.subr.bf16.mxu0 0
    %2011 = vmatpush1.bf16.msra.mxu0 0
    %2012 = vmatprep.subr.bf16.mxu0 0
    %2013 = vmatpush1.bf16.msra.mxu0 0
    %2014 = vmatprep.subr.bf16.mxu0 0
    %2015 = vmatpush1.bf16.msra.mxu0 0
    %2016 = vmatprep.subr.bf16.mxu0 0
    %2017 = vmatpush1.bf16.msra.mxu0 0
    %2018 = vmatprep.subr.bf16.mxu0 0
    %2019 = vmatpush1.bf16.msra.mxu0 %v362
    %2020 = vmatprep.subr.bf16.mxu0 0
    %2021 = vmatpush1.bf16.msra.mxu0 %v361
    %2022 = vmatprep.subr.bf16.mxu0 0
    %2023 = vmatpush2.bf16.msra.mxu0 0
    %2024 = vmatprep.subr.bf16.mxu0 0
    %2025 = vmatpush2.bf16.msra.mxu0 0
    %2026 = vmatprep.subr.bf16.mxu0 0
    %2027 = vmatpush2.bf16.msra.mxu0 0
    %2028 = vmatprep.subr.bf16.mxu0 0
    %2029 = vmatpush2.bf16.msra.mxu0 0
    %2030 = vmatprep.subr.bf16.mxu0 0
    %2031 = vmatpush2.bf16.msra.mxu0 0
    %2032 = vmatprep.subr.bf16.mxu0 0
    %2033 = vmatpush2.bf16.msra.mxu0 0
    %2034 = vmatprep.subr.bf16.mxu0 0
    %2035 = vmatpush2.bf16.msra.mxu0 0
    %2036 = vmatprep.subr.bf16.mxu0 0
    %2037 = vmatpush2.bf16.msra.mxu0 0
    %2038 = vmatprep.mubr.bf16.mxu0 0
    %2039 = vmatmul.mubr.bf16.gmra.mxu0 %v2004
    %v2040 = vpop.f32.mrf.mxu0
    %v2041 = vadd.f32 0.0, %v2040
    %v2042 = vpop.f32.mrf.mxu0
    %v2043 = vpop.f32.mrf.mxu0
    %v2044 = vpop.f32.mrf.mxu0
    %2045 = vdwg.mxu0
    %v2046 = vadd.f32 %v1994, %v2041
    %v2047 = vxor.u32 %v2046, 2147483648
    %v2048 = vmul.f32 %v2047, 1.442695
    %v2049 = vpow.pop %v2048
    %v2050 = vadd.f32 %v2049, 1.0
    %v2051 = vrcp.pop %v2050
    %v2052 = vmul.f32 1.0, %v2051
    %v2053 = vadd.f32 %v2041, %v416
    %2055 = vrot.lane.b32.xlu0 %v2053, 64
    %v2056 = vpop.permute.xlu0 %2055
    %v2058 = vmul.f32 %v2052, %v2056
    %2060 = vrot.lane.b32.xlu0 %v2058, 64
    %v2061 = vpop.permute.xlu0 %2060
    %v2063 = vadd.f32 %v1994, %v2061
    %v2064 = vtanh.pop %v2063
    %v2065 = vsub.f32 1.0, %v2052
    %2067 = vrot.lane.b32.xlu0 %v2064, 96
    %v2068 = vpop.permute.xlu0 %2067
    %v2070 = vmul.f32 %v2065, %v2068
    %v2071 = vmul.f32 %v2052, %v1839
    %v2072 = vadd.f32 %v2070, %v2071
    %2074 = vrot.lane.b32.xlu0 %v1951, 96
    %v2075 = vpop.permute.xlu0 %2074
    %vm2077 = vcmask 254976
    %2078 = vst.msk [vmem:[#allocation2] sm:$0x3] %vm2077, %v2075
    %2080 = vrot.lane.b32.xlu0 %v2072, 96
    %v2081 = vpop.permute.xlu0 %2080
    %2083 = vst.msk [vmem:[#allocation3] sm:$0x3] %vm2077, %v2081
    // Predicated region
    $region62: #{tpu_custom_call.1} parent=1 // pred_check
      %p2084 = pneg %p102
    $region63: #{tpu_custom_call.1} parent=1 // pred_check_branch
      %2086 = sbr.rel (%p2084) target = $region65
    $region64: #{tpu_custom_call.1} parent=1 // pred_region
      %2087 = vst.msk [vmem:[#allocation13] sm:$0x3] %vm2077, %v2081
    $region65: #{tpu_custom_call.1} parent=1 // pred_fallthru
      _
    // Predicated region
    $region66: #{tpu_custom_call.1} parent=1 // pred_check
      _
    $region67: #{tpu_custom_call.1} parent=1 // pred_check_branch
      %2089 = sbr.rel (0) target = $region69
    $region68: #{tpu_custom_call.1} parent=1 // pred_region
      %s2091 = ssub.s32 32, 32
      %2092 = vsyncadd [#allocation6], %s2091
      %s2094 = sshll.u32 [#allocation13], 4
      %s2095 = int_to_ptr.vmem [resolvable:$true] %s2094
      %2097 = dma.vmem_to_hbm [thread:$0]  %s2095, 32, %s9, [#allocation6]
    $region69: #{tpu_custom_call.1} parent=1 // pred_fallthru
      _
    // Predicated region
    $region70: #{tpu_custom_call.1} parent=1 // pred_check
      _
    $region71: #{tpu_custom_call.1} parent=1 // pred_check_branch
      %2099 = sbr.rel (0) target = $region73
    $region72: #{tpu_custom_call.1} parent=1 // pred_region
      %2100 = dma.done [#allocation6], 32
    $region73: #{tpu_custom_call.1} parent=1 // pred_fallthru
      _
    %2101 = vsyncpa [#allocation5], 1
    %2102 = vsyncpa [#allocation8], 1
    %2103 = vsyncpa [#allocation11], 1
    %2104 = vsyncpa [#allocation6], 1

</llo_original>
